<compile_context>
chip_gen: v7x
topology: tpu7x:2x2x1
jax: 0.10.0
libtpu: 0.0.40
codegen_flags: <defaults>
</compile_context>

<pallas_src>
import functools

import jax
import jax.numpy as jnp
from jax.experimental import pallas as pl
from jax.experimental.pallas import tpu as pltpu

EPS = 1e-5


def _dot16(a, b):
    """MXU matmul with bf16 operands and f32 accumulation."""
    return jnp.dot(a.astype(jnp.bfloat16), b.astype(jnp.bfloat16),
                   preferred_element_type=jnp.float32)


def _halo_rows(W):
    """Sublane-aligned number of zero halo rows per side (>= W+1, mult of 8)."""
    return ((W + 1 + 7) // 8) * 8


# ----------------------------------------------------------------------------
# BlockSpec helpers
# ----------------------------------------------------------------------------
def _rep_spec(shape):
    """Operand identical for every grid step (weights / folded BN params)."""
    nd = len(shape)
    return pl.BlockSpec(tuple(shape), lambda n, _nd=nd: (0,) * _nd)


def _img_spec(shape):
    """Per-image block: size-1 leading (batch) dim selected by grid index n."""
    nd = len(shape)
    return pl.BlockSpec((1,) + tuple(shape[1:]),
                        lambda n, _nd=nd: (n,) + (0,) * (_nd - 1))


# ----------------------------------------------------------------------------
# Single fused kernel: stem -> SE attention -> all residual blocks -> *att+att
# ----------------------------------------------------------------------------
def _make_bridge_kernel(H, W, num_blk, block_has_sc):
    HW = H * W
    PAD = _halo_rows(W)
    offsets = [(dy, dx) for dy in (-1, 0, 1) for dx in (-1, 0, 1)]

    def kernel(*refs):
        it = iter(refs)
        take = lambda n: [next(it) for _ in range(n)]

        x_ref = next(it)
        s1, b1, w1, s2, b2, w2, cb = take(7)                 # stem
        ses, seb, sw1, sb1, sw2, sb2 = take(6)               # SE block
        blk_refs = [take(12 if block_has_sc[bi] else 9) for bi in range(num_blk)]
        o_ref = next(it)
        pad_ref = next(it)                                   # VMEM scratch

        mid = pad_ref.shape[1]

        # ---- stem: BN-ReLU-1x1 -> BN-ReLU-1x1(+bias) ------------------------
        x = x_ref[0].astype(jnp.float32)                     # (HW, ch)
        a = jnp.maximum(x * s1[...] + b1[...], 0.0)
        h = _dot16(a, w1[...])                               # (HW, ch//2)
        a = jnp.maximum(h * s2[...] + b2[...], 0.0)
        stem = _dot16(a, w2[...]) + cb[...]                  # (HW, 2ch)

        # ---- SE attention: BN-ReLU-avgpool-FC-ReLU-FC-sigmoid ---------------
        sa = jnp.maximum(stem * ses[...] + seb[...], 0.0)
        m = jnp.mean(sa, axis=0, keepdims=True)              # (1, 2ch)
        hh = jnp.maximum(
            jnp.dot(m, sw1[...], preferred_element_type=jnp.float32) + sb1[...], 0.0)
        att = jax.nn.sigmoid(
            jnp.dot(hh, sw2[...], preferred_element_type=jnp.float32) + sb2[...])

        # ---- 3x3-conv halo scratch: zero ONLY the halo bands, once ----------
        pad_ref[pl.ds(0, PAD), :] = jnp.zeros((PAD, mid), jnp.float32)
        pad_ref[pl.ds(PAD + HW, PAD), :] = jnp.zeros((PAD, mid), jnp.float32)

        # dx boundary masks, hoisted out of the per-block / per-tap loops
        col = jax.lax.broadcasted_iota(jnp.int32, (HW, mid), 0) % W
        left_ok = col >= 1            # tap dx == -1 valid
        right_ok = col <= W - 2       # tap dx == +1 valid

        def tap_at(dy, dx):
            # row out-of-bounds falls into the zero halo; dx wrap is masked out
            t = pad_ref[pl.ds(PAD + dy * W + dx, HW), :]
            if dx == -1:
                t = jnp.where(left_ok, t, 0.0)
            elif dx == 1:
                t = jnp.where(right_ok, t, 0.0)
            return t

        # ---- pre-activation residual bottleneck blocks ----------------------
        out = stem
        for bi in range(num_blk):
            prm = iter(blk_refs[bi])
            bs1, bb1, bw1, bs2, bb2, bw33, bs3, bb3, bw3 = [next(prm) for _ in range(9)]

            a1 = jnp.maximum(out * bs1[...] + bb1[...], 0.0)
            h1 = _dot16(a1, bw1[...])                        # (HW, mid)
            a2 = jnp.maximum(h1 * bs2[...] + bb2[...], 0.0)

            pad_ref[pl.ds(PAD, HW), :] = a2                  # write middle only

            if mid < 128:
                # tiny mid: one K = 9*mid matmul over lane-concatenated taps
                tap_mat = jnp.concatenate(
                    [tap_at(dy, dx) for dy, dx in offsets], axis=1)   # (HW, 9*mid)
                h2 = _dot16(tap_mat, bw33[...])
            else:
                # real sizes: nine K = mid dots, no 9x lane-concat intermediate
                h2 = jnp.zeros((HW, mid), jnp.float32)
                for t, (dy, dx) in enumerate(offsets):
                    h2 = h2 + _dot16(tap_at(dy, dx), bw33[pl.ds(t * mid, mid), :])

            a3 = jnp.maximum(h2 * bs3[...] + bb3[...], 0.0)
            main = _dot16(a3, bw3[...])                      # (HW, ch)

            if block_has_sc[bi]:
                scs, scb, scw = [next(prm) for _ in range(3)]
                asc = jnp.maximum(out * scs[...] + scb[...], 0.0)
                out = main + _dot16(asc, scw[...])
            else:
                out = main + out                             # identity residual

        # ---- final epilogue: out * att + att --------------------------------
        o_ref[0] = out * att + att

    return kernel


def bridge_forward(x_nhwc, params, ch):
    N, H, W, C = x_nhwc.shape
    assert C == ch
    HW = H * W
    assert HW % 8 == 0, "H*W must be a multiple of 8 (sublane tiling)"
    mid = ch // 4
    PAD = _halo_rows(W)
    x3 = x_nhwc.reshape(N, HW, C).astype(jnp.float32)

    args = [x3]
    # stem
    args += [params['stem_bn1'][0].reshape(1, -1), params['stem_bn1'][1].reshape(1, -1),
             params['stem_w1'],
             params['stem_bn2'][0].reshape(1, -1), params['stem_bn2'][1].reshape(1, -1),
             params['stem_w2'], params['stem_b2'].reshape(1, -1)]
    # SE
    args += [params['se_bn'][0].reshape(1, -1), params['se_bn'][1].reshape(1, -1),
             params['se_w1'], params['se_b1'].reshape(1, -1),
             params['se_w2'], params['se_b2'].reshape(1, -1)]
    # residual blocks
    block_has_sc = []
    for blk in params['blocks']:
        args += [blk['bn1'][0].reshape(1, -1), blk['bn1'][1].reshape(1, -1), blk['w1'],
                 blk['bn2'][0].reshape(1, -1), blk['bn2'][1].reshape(1, -1),
                 blk['w3x3'].reshape(9 * mid, mid),
                 blk['bn3'][0].reshape(1, -1), blk['bn3'][1].reshape(1, -1), blk['w3']]
        has_sc = 'sc_w' in blk
        if has_sc:
            args += [blk['sc_bn'][0].reshape(1, -1), blk['sc_bn'][1].reshape(1, -1),
                     blk['sc_w']]
        block_has_sc.append(has_sc)

    in_specs = [_img_spec(x3.shape)] + [_rep_spec(a.shape) for a in args[1:]]
    kernel = _make_bridge_kernel(H, W, len(params['blocks']), tuple(block_has_sc))

    out = pl.pallas_call(
        kernel,
        out_shape=jax.ShapeDtypeStruct((N, HW, ch), jnp.float32),
        grid=(N,),
        in_specs=in_specs,
        out_specs=_img_spec((N, HW, ch)),
        scratch_shapes=[pltpu.VMEM((HW + 2 * PAD, mid), jnp.float32)],
        compiler_params=pltpu.CompilerParams(dimension_semantics=("parallel",)),
    )(*args)
    return out.reshape(N, H, W, ch)


# ----------------------------------------------------------------------------
# Parameter initialization (deterministic, synthetic, eval-mode folded BN)
# ----------------------------------------------------------------------------
def bn_params(key, c):
    k1, k2, k3, k4 = jax.random.split(key, 4)
    gamma = 1.0 + 0.1 * jax.random.normal(k1, (c,), jnp.float32)
    beta = 0.1 * jax.random.normal(k2, (c,), jnp.float32)
    mean = 0.1 * jax.random.normal(k3, (c,), jnp.float32)
    var = 1.0 + 0.1 * jax.random.uniform(k4, (c,), jnp.float32)
    scale = gamma * jax.lax.rsqrt(var + EPS)
    shift = beta - mean * scale
    return scale, shift


def init_params(key, ch, num_blk):
    keys = iter(jax.random.split(key, 64))
    nxt = lambda: next(keys)
    w = lambda shp: 0.1 * jax.random.normal(nxt(), shp, jnp.float32)
    p = {}
    # stem: BN(ch)-ReLU-Conv1x1(ch->ch//2, no bias)-BN(ch//2)-ReLU-Conv1x1(ch//2->2ch, bias)
    p['stem_bn1'] = bn_params(nxt(), ch)
    p['stem_w1'] = w((ch, ch // 2))
    p['stem_bn2'] = bn_params(nxt(), ch // 2)
    p['stem_w2'] = w((ch // 2, ch * 2))
    p['stem_b2'] = w((ch * 2,))
    # SE: BN(2ch)-ReLU-AvgPool-Conv(2ch->ch//16)-ReLU-Conv(ch//16->ch)-Sigmoid
    cse = max(ch // 16, 1)
    p['se_bn'] = bn_params(nxt(), ch * 2)
    p['se_w1'] = w((ch * 2, cse))
    p['se_b1'] = w((cse,))
    p['se_w2'] = w((cse, ch))
    p['se_b2'] = w((ch,))
    # Pre-activation residual bottleneck blocks (mid = ch // 4, convs bias-free)
    blocks = []
    in_ch = ch * 2
    mid = ch // 4
    for b in range(num_blk):
        blk = {
            'bn1': bn_params(nxt(), in_ch), 'w1': w((in_ch, mid)),
            'bn2': bn_params(nxt(), mid), 'w3x3': w((9, mid, mid)),
            'bn3': bn_params(nxt(), mid), 'w3': w((mid, ch)),
        }
        if b == 0:  # shortcut: BN(2ch)-ReLU-Conv1x1(2ch->ch, no bias)
            blk['sc_bn'] = bn_params(nxt(), in_ch)
            blk['sc_w'] = w((in_ch, ch))
        blocks.append(blk)
        in_ch = ch
    p['blocks'] = blocks
    return p


# ----------------------------------------------------------------------------
# Pure-JAX reference (same math, same bf16-matmul precision, via XLA)
# ----------------------------------------------------------------------------
def reference_forward(x_nhwc, params, ch):
    N, H, W, C = x_nhwc.shape
    HW = H * W

    def bnrelu(v, sb):
        return jnp.maximum(v * sb[0] + sb[1], 0.0)

    x2 = x_nhwc.reshape(N * HW, C).astype(jnp.float32)
    h = _dot16(bnrelu(x2, params['stem_bn1']), params['stem_w1'])
    stem = _dot16(bnrelu(h, params['stem_bn2']), params['stem_w2']) + params['stem_b2']

    sa = bnrelu(stem, params['se_bn']).reshape(N, HW, -1)
    m = jnp.mean(sa, axis=1)
    hh = jnp.maximum(jnp.dot(m, params['se_w1'], preferred_element_type=jnp.float32)
                     + params['se_b1'], 0.0)
    att = jax.nn.sigmoid(jnp.dot(hh, params['se_w2'], preferred_element_type=jnp.float32)
                         + params['se_b2'])                       # (N, ch)

    out = stem
    for blk in params['blocks']:
        a1 = bnrelu(out, blk['bn1'])
        h1 = _dot16(a1, blk['w1'])
        a2 = bnrelu(h1, blk['bn2'])
        mid = a2.shape[1]
        ap = jnp.pad(a2.reshape(N, H, W, mid), ((0, 0), (1, 1), (1, 1), (0, 0)))
        taps = [ap[:, dy:dy + H, dx:dx + W, :].reshape(N * HW, mid)
                for dy in range(3) for dx in range(3)]
        h2 = _dot16(jnp.concatenate(taps, axis=1), blk['w3x3'].reshape(9 * mid, mid))
        a3 = bnrelu(h2, blk['bn3'])
        main = _dot16(a3, blk['w3'])
        res = _dot16(bnrelu(out, blk['sc_bn']), blk['sc_w']) if 'sc_w' in blk else out
        out = main + res

    att_b = att.reshape(N, 1, ch)
    y = out.reshape(N, HW, ch) * att_b + att_b
    return y.reshape(N, H, W, ch)


if __name__ == "__main__":
    ch, num_blk = 32, 2
    N, H, W = 2, 8, 8

    key = jax.random.PRNGKey(0)
    kx, kp = jax.random.split(key)
    # NHWC input; equals a PyTorch NCHW input of shape (2, 32, 8, 8)
    x = jax.random.normal(kx, (N, H, W, ch), jnp.float32)
    params = init_params(kp, ch, num_blk)

    fwd = jax.jit(functools.partial(bridge_forward, ch=ch))
    y = jax.block_until_ready(fwd(x, params))
    assert y.shape == (N, H, W, ch)
    assert bool(jnp.all(jnp.isfinite(y))), "non-finite output"

    y_ref = reference_forward(x, params, ch)
    err = float(jnp.max(jnp.abs(y - y_ref)))
    assert err < 5e-3, f"mismatch vs reference: max abs err = {err}"
    print("KERNEL_OK")
</pallas_src>

<mosaic_0001>
module attributes {stable_mosaic.version = 11 : i64} {
  func.func @kernel(%arg0: i32, %arg1: memref<1x64x32xf32, #tpu.memory_space<vmem>>, %arg2: memref<1x32xf32, #tpu.memory_space<vmem>>, %arg3: memref<1x32xf32, #tpu.memory_space<vmem>>, %arg4: memref<32x16xf32, #tpu.memory_space<vmem>>, %arg5: memref<1x16xf32, #tpu.memory_space<vmem>>, %arg6: memref<1x16xf32, #tpu.memory_space<vmem>>, %arg7: memref<16x64xf32, #tpu.memory_space<vmem>>, %arg8: memref<1x64xf32, #tpu.memory_space<vmem>>, %arg9: memref<1x64xf32, #tpu.memory_space<vmem>>, %arg10: memref<1x64xf32, #tpu.memory_space<vmem>>, %arg11: memref<64x2xf32, #tpu.memory_space<vmem>>, %arg12: memref<1x2xf32, #tpu.memory_space<vmem>>, %arg13: memref<2x32xf32, #tpu.memory_space<vmem>>, %arg14: memref<1x32xf32, #tpu.memory_space<vmem>>, %arg15: memref<1x64xf32, #tpu.memory_space<vmem>>, %arg16: memref<1x64xf32, #tpu.memory_space<vmem>>, %arg17: memref<64x8xf32, #tpu.memory_space<vmem>>, %arg18: memref<1x8xf32, #tpu.memory_space<vmem>>, %arg19: memref<1x8xf32, #tpu.memory_space<vmem>>, %arg20: memref<72x8xf32, #tpu.memory_space<vmem>>, %arg21: memref<1x8xf32, #tpu.memory_space<vmem>>, %arg22: memref<1x8xf32, #tpu.memory_space<vmem>>, %arg23: memref<8x32xf32, #tpu.memory_space<vmem>>, %arg24: memref<1x64xf32, #tpu.memory_space<vmem>>, %arg25: memref<1x64xf32, #tpu.memory_space<vmem>>, %arg26: memref<64x32xf32, #tpu.memory_space<vmem>>, %arg27: memref<1x32xf32, #tpu.memory_space<vmem>>, %arg28: memref<1x32xf32, #tpu.memory_space<vmem>>, %arg29: memref<32x8xf32, #tpu.memory_space<vmem>>, %arg30: memref<1x8xf32, #tpu.memory_space<vmem>>, %arg31: memref<1x8xf32, #tpu.memory_space<vmem>>, %arg32: memref<72x8xf32, #tpu.memory_space<vmem>>, %arg33: memref<1x8xf32, #tpu.memory_space<vmem>>, %arg34: memref<1x8xf32, #tpu.memory_space<vmem>>, %arg35: memref<8x32xf32, #tpu.memory_space<vmem>>, %arg36: memref<1x64x32xf32, #tpu.memory_space<vmem>>, %arg37: memref<96x8xf32, #tpu.memory_space<vmem>>) attributes {dimension_semantics = [#tpu.dimension_semantics<parallel>], iteration_bounds = array<i64: 2>, scalar_prefetch = 0 : i64, scratch_operands = 1 : i64, tpu.core_type = #tpu.core_type<tc>, window_params = [{transform_indices = @transform_0, window_bounds = array<i64: 1, 64, 32>}, {pipeline_mode = #tpu.pipeline_mode<synchronous>, transform_indices = @transform_1, window_bounds = array<i64: 1, 32>}, {pipeline_mode = #tpu.pipeline_mode<synchronous>, transform_indices = @transform_2, window_bounds = array<i64: 1, 32>}, {pipeline_mode = #tpu.pipeline_mode<synchronous>, transform_indices = @transform_3, window_bounds = array<i64: 32, 16>}, {pipeline_mode = #tpu.pipeline_mode<synchronous>, transform_indices = @transform_4, window_bounds = array<i64: 1, 16>}, {pipeline_mode = #tpu.pipeline_mode<synchronous>, transform_indices = @transform_5, window_bounds = array<i64: 1, 16>}, {pipeline_mode = #tpu.pipeline_mode<synchronous>, transform_indices = @transform_6, window_bounds = array<i64: 16, 64>}, {pipeline_mode = #tpu.pipeline_mode<synchronous>, transform_indices = @transform_7, window_bounds = array<i64: 1, 64>}, {pipeline_mode = #tpu.pipeline_mode<synchronous>, transform_indices = @transform_8, window_bounds = array<i64: 1, 64>}, {pipeline_mode = #tpu.pipeline_mode<synchronous>, transform_indices = @transform_9, window_bounds = array<i64: 1, 64>}, {pipeline_mode = #tpu.pipeline_mode<synchronous>, transform_indices = @transform_10, window_bounds = array<i64: 64, 2>}, {pipeline_mode = #tpu.pipeline_mode<synchronous>, transform_indices = @transform_11, window_bounds = array<i64: 1, 2>}, {pipeline_mode = #tpu.pipeline_mode<synchronous>, transform_indices = @transform_12, window_bounds = array<i64: 2, 32>}, {pipeline_mode = #tpu.pipeline_mode<synchronous>, transform_indices = @transform_13, window_bounds = array<i64: 1, 32>}, {pipeline_mode = #tpu.pipeline_mode<synchronous>, transform_indices = @transform_14, window_bounds = array<i64: 1, 64>}, {pipeline_mode = #tpu.pipeline_mode<synchronous>, transform_indices = @transform_15, window_bounds = array<i64: 1, 64>}, {pipeline_mode = #tpu.pipeline_mode<synchronous>, transform_indices = @transform_16, window_bounds = array<i64: 64, 8>}, {pipeline_mode = #tpu.pipeline_mode<synchronous>, transform_indices = @transform_17, window_bounds = array<i64: 1, 8>}, {pipeline_mode = #tpu.pipeline_mode<synchronous>, transform_indices = @transform_18, window_bounds = array<i64: 1, 8>}, {pipeline_mode = #tpu.pipeline_mode<synchronous>, transform_indices = @transform_19, window_bounds = array<i64: 72, 8>}, {pipeline_mode = #tpu.pipeline_mode<synchronous>, transform_indices = @transform_20, window_bounds = array<i64: 1, 8>}, {pipeline_mode = #tpu.pipeline_mode<synchronous>, transform_indices = @transform_21, window_bounds = array<i64: 1, 8>}, {pipeline_mode = #tpu.pipeline_mode<synchronous>, transform_indices = @transform_22, window_bounds = array<i64: 8, 32>}, {pipeline_mode = #tpu.pipeline_mode<synchronous>, transform_indices = @transform_23, window_bounds = array<i64: 1, 64>}, {pipeline_mode = #tpu.pipeline_mode<synchronous>, transform_indices = @transform_24, window_bounds = array<i64: 1, 64>}, {pipeline_mode = #tpu.pipeline_mode<synchronous>, transform_indices = @transform_25, window_bounds = array<i64: 64, 32>}, {pipeline_mode = #tpu.pipeline_mode<synchronous>, transform_indices = @transform_26, window_bounds = array<i64: 1, 32>}, {pipeline_mode = #tpu.pipeline_mode<synchronous>, transform_indices = @transform_27, window_bounds = array<i64: 1, 32>}, {pipeline_mode = #tpu.pipeline_mode<synchronous>, transform_indices = @transform_28, window_bounds = array<i64: 32, 8>}, {pipeline_mode = #tpu.pipeline_mode<synchronous>, transform_indices = @transform_29, window_bounds = array<i64: 1, 8>}, {pipeline_mode = #tpu.pipeline_mode<synchronous>, transform_indices = @transform_30, window_bounds = array<i64: 1, 8>}, {pipeline_mode = #tpu.pipeline_mode<synchronous>, transform_indices = @transform_31, window_bounds = array<i64: 72, 8>}, {pipeline_mode = #tpu.pipeline_mode<synchronous>, transform_indices = @transform_32, window_bounds = array<i64: 1, 8>}, {pipeline_mode = #tpu.pipeline_mode<synchronous>, transform_indices = @transform_33, window_bounds = array<i64: 1, 8>}, {pipeline_mode = #tpu.pipeline_mode<synchronous>, transform_indices = @transform_34, window_bounds = array<i64: 8, 32>}, {transform_indices = @transform_35, window_bounds = array<i64: 1, 64, 32>}]} {
    %c0 = arith.constant 0 : index
    %c0_0 = arith.constant 0 : index
    %c0_1 = arith.constant 0 : index
    %0 = vector.load %arg1[%c0, %c0_0, %c0_1] : memref<1x64x32xf32, #tpu.memory_space<vmem>>, vector<1x64x32xf32>
    %1 = vector.shape_cast %0 : vector<1x64x32xf32> to vector<64x32xf32>
    %c0_2 = arith.constant 0 : index
    %c0_3 = arith.constant 0 : index
    %2 = vector.load %arg2[%c0_2, %c0_3] : memref<1x32xf32, #tpu.memory_space<vmem>>, vector<1x32xf32>
    %3 = vector.broadcast %2 : vector<1x32xf32> to vector<64x32xf32>
    %4 = arith.mulf %1, %3 : vector<64x32xf32>
    %c0_4 = arith.constant 0 : index
    %c0_5 = arith.constant 0 : index
    %5 = vector.load %arg3[%c0_4, %c0_5] : memref<1x32xf32, #tpu.memory_space<vmem>>, vector<1x32xf32>
    %6 = vector.broadcast %5 : vector<1x32xf32> to vector<64x32xf32>
    %7 = arith.addf %4, %6 : vector<64x32xf32>
    %cst = arith.constant 0.000000e+00 : f32
    %8 = vector.broadcast %cst : f32 to vector<64x32xf32>
    %9 = arith.maximumf %7, %8 : vector<64x32xf32>
    %c0_6 = arith.constant 0 : index
    %c0_7 = arith.constant 0 : index
    %10 = vector.load %arg4[%c0_6, %c0_7] : memref<32x16xf32, #tpu.memory_space<vmem>>, vector<32x16xf32>
    %11 = arith.truncf %9 : vector<64x32xf32> to vector<64x32xbf16>
    %12 = arith.truncf %10 : vector<32x16xf32> to vector<32x16xbf16>
    %cst_8 = arith.constant dense<0.000000e+00> : vector<64x16xf32>
    %13 = tpu.matmul %11, %12, %cst_8 {dimension_numbers = #tpu.dot_dimension_numbers<[1], [0], [0], [1], [0, 0, 1, 1], [], []>} : vector<64x32xbf16>, vector<32x16xbf16>, vector<64x16xf32> -> vector<64x16xf32>
    %c0_9 = arith.constant 0 : index
    %c0_10 = arith.constant 0 : index
    %14 = vector.load %arg5[%c0_9, %c0_10] : memref<1x16xf32, #tpu.memory_space<vmem>>, vector<1x16xf32>
    %15 = vector.broadcast %14 : vector<1x16xf32> to vector<64x16xf32>
    %16 = arith.mulf %13, %15 : vector<64x16xf32>
    %c0_11 = arith.constant 0 : index
    %c0_12 = arith.constant 0 : index
    %17 = vector.load %arg6[%c0_11, %c0_12] : memref<1x16xf32, #tpu.memory_space<vmem>>, vector<1x16xf32>
    %18 = vector.broadcast %17 : vector<1x16xf32> to vector<64x16xf32>
    %19 = arith.addf %16, %18 : vector<64x16xf32>
    %cst_13 = arith.constant 0.000000e+00 : f32
    %20 = vector.broadcast %cst_13 : f32 to vector<64x16xf32>
    %21 = arith.maximumf %19, %20 : vector<64x16xf32>
    %c0_14 = arith.constant 0 : index
    %c0_15 = arith.constant 0 : index
    %22 = vector.load %arg7[%c0_14, %c0_15] : memref<16x64xf32, #tpu.memory_space<vmem>>, vector<16x64xf32>
    %23 = arith.truncf %21 : vector<64x16xf32> to vector<64x16xbf16>
    %24 = arith.truncf %22 : vector<16x64xf32> to vector<16x64xbf16>
    %cst_16 = arith.constant dense<0.000000e+00> : vector<64x64xf32>
    %25 = tpu.matmul %23, %24, %cst_16 {dimension_numbers = #tpu.dot_dimension_numbers<[1], [0], [0], [1], [0, 0, 1, 1], [], []>} : vector<64x16xbf16>, vector<16x64xbf16>, vector<64x64xf32> -> vector<64x64xf32>
    %c0_17 = arith.constant 0 : index
    %c0_18 = arith.constant 0 : index
    %26 = vector.load %arg8[%c0_17, %c0_18] : memref<1x64xf32, #tpu.memory_space<vmem>>, vector<1x64xf32>
    %27 = vector.broadcast %26 : vector<1x64xf32> to vector<64x64xf32>
    %28 = arith.addf %25, %27 : vector<64x64xf32>
    %c0_19 = arith.constant 0 : index
    %c0_20 = arith.constant 0 : index
    %29 = vector.load %arg9[%c0_19, %c0_20] : memref<1x64xf32, #tpu.memory_space<vmem>>, vector<1x64xf32>
    %30 = vector.broadcast %29 : vector<1x64xf32> to vector<64x64xf32>
    %31 = arith.mulf %28, %30 : vector<64x64xf32>
    %c0_21 = arith.constant 0 : index
    %c0_22 = arith.constant 0 : index
    %32 = vector.load %arg10[%c0_21, %c0_22] : memref<1x64xf32, #tpu.memory_space<vmem>>, vector<1x64xf32>
    %33 = vector.broadcast %32 : vector<1x64xf32> to vector<64x64xf32>
    %34 = arith.addf %31, %33 : vector<64x64xf32>
    %cst_23 = arith.constant 0.000000e+00 : f32
    %35 = vector.broadcast %cst_23 : f32 to vector<64x64xf32>
    %36 = arith.maximumf %34, %35 : vector<64x64xf32>
    %cst_24 = arith.constant dense<0.000000e+00> : vector<64xf32>
    %37 = vector.multi_reduction <add>, %36, %cst_24 [0] : vector<64x64xf32> to vector<64xf32>
    %38 = vector.shape_cast %37 : vector<64xf32> to vector<1x64xf32>
    %cst_25 = arith.constant 6.400000e+01 : f32
    %39 = vector.broadcast %cst_25 : f32 to vector<1x64xf32>
    %40 = arith.divf %38, %39 : vector<1x64xf32>
    %c0_26 = arith.constant 0 : index
    %c0_27 = arith.constant 0 : index
    %41 = vector.load %arg11[%c0_26, %c0_27] : memref<64x2xf32, #tpu.memory_space<vmem>>, vector<64x2xf32>
    %cst_28 = arith.constant dense<0.000000e+00> : vector<1x2xf32>
    %42 = tpu.matmul %40, %41, %cst_28 {dimension_numbers = #tpu.dot_dimension_numbers<[1], [0], [0], [1], [0, 0, 1, 1], [], []>} : vector<1x64xf32>, vector<64x2xf32>, vector<1x2xf32> -> vector<1x2xf32>
    %c0_29 = arith.constant 0 : index
    %c0_30 = arith.constant 0 : index
    %43 = vector.load %arg12[%c0_29, %c0_30] : memref<1x2xf32, #tpu.memory_space<vmem>>, vector<1x2xf32>
    %44 = arith.addf %42, %43 : vector<1x2xf32>
    %cst_31 = arith.constant 0.000000e+00 : f32
    %45 = vector.broadcast %cst_31 : f32 to vector<1x2xf32>
    %46 = arith.maximumf %44, %45 : vector<1x2xf32>
    %c0_32 = arith.constant 0 : index
    %c0_33 = arith.constant 0 : index
    %47 = vector.load %arg13[%c0_32, %c0_33] : memref<2x32xf32, #tpu.memory_space<vmem>>, vector<2x32xf32>
    %cst_34 = arith.constant dense<0.000000e+00> : vector<1x32xf32>
    %48 = tpu.matmul %46, %47, %cst_34 {dimension_numbers = #tpu.dot_dimension_numbers<[1], [0], [0], [1], [0, 0, 1, 1], [], []>} : vector<1x2xf32>, vector<2x32xf32>, vector<1x32xf32> -> vector<1x32xf32>
    %c0_35 = arith.constant 0 : index
    %c0_36 = arith.constant 0 : index
    %49 = vector.load %arg14[%c0_35, %c0_36] : memref<1x32xf32, #tpu.memory_space<vmem>>, vector<1x32xf32>
    %50 = arith.addf %48, %49 : vector<1x32xf32>
    %51 = arith.negf %50 : vector<1x32xf32>
    %52 = math.exp %51 : vector<1x32xf32>
    %cst_37 = arith.constant 1.000000e+00 : f32
    %53 = vector.broadcast %cst_37 : f32 to vector<1x32xf32>
    %54 = arith.addf %53, %52 : vector<1x32xf32>
    %55 = arith.divf %53, %54 : vector<1x32xf32>
    %cst_38 = arith.constant 0.000000e+00 : f32
    %56 = vector.broadcast %cst_38 : f32 to vector<16x8xf32>
    %c0_39 = arith.constant 0 : index
    %c0_40 = arith.constant 0 : index
    %57 = vector.load %arg37[%c0_39, %c0_40] : memref<96x8xf32, #tpu.memory_space<vmem>>, vector<16x8xf32>
    tpu.vector_store %arg37[%c0_39, %c0_40], %56 {strides = array<i32>} : memref<96x8xf32, #tpu.memory_space<vmem>>, vector<16x8xf32>,
    %cst_41 = arith.constant 0.000000e+00 : f32
    %58 = vector.broadcast %cst_41 : f32 to vector<16x8xf32>
    %c80 = arith.constant 80 : index
    %c0_42 = arith.constant 0 : index
    %59 = vector.load %arg37[%c80, %c0_42] : memref<96x8xf32, #tpu.memory_space<vmem>>, vector<16x8xf32>
    tpu.vector_store %arg37[%c80, %c0_42], %58 {strides = array<i32>} : memref<96x8xf32, #tpu.memory_space<vmem>>, vector<16x8xf32>,
    %60 = tpu.iota {dimensions = array<i32: 0>} : vector<64x8xi32>
    %c8_i32 = arith.constant 8 : i32
    %c0_i32 = arith.constant 0 : i32
    %61 = arith.cmpi eq, %c8_i32, %c0_i32 : i32
    %c1_i32 = arith.constant 1 : i32
    %62 = arith.select %61, %c1_i32, %c8_i32 : i32
    %63 = vector.broadcast %62 : i32 to vector<64x8xi32>
    %64 = arith.remsi %60, %63 : vector<64x8xi32>
    %c0_i32_43 = arith.constant 0 : i32
    %65 = vector.broadcast %c0_i32_43 : i32 to vector<64x8xi32>
    %66 = arith.cmpi ne, %64, %65 : vector<64x8xi32>
    %c0_i32_44 = arith.constant 0 : i32
    %67 = vector.broadcast %c0_i32_44 : i32 to vector<64x8xi32>
    %68 = arith.cmpi slt, %64, %67 : vector<64x8xi32>
    %c0_i32_45 = arith.constant 0 : i32
    %69 = arith.cmpi slt, %62, %c0_i32_45 : i32
    %70 = vector.broadcast %69 : i1 to vector<64x8xi1>
    %71 = vector.broadcast %70 : vector<64x8xi1> to vector<64x8xi1>
    %72 = arith.xori %68, %71 : vector<64x8xi1>
    %73 = arith.andi %72, %66 : vector<64x8xi1>
    %74 = vector.broadcast %62 : i32 to vector<64x8xi32>
    %75 = arith.addi %64, %74 : vector<64x8xi32>
    %76 = arith.select %73, %75, %64 : vector<64x8xi1>, vector<64x8xi32>
    %c1_i32_46 = arith.constant 1 : i32
    %77 = vector.broadcast %c1_i32_46 : i32 to vector<64x8xi32>
    %78 = arith.cmpi sge, %76, %77 : vector<64x8xi32>
    %c6_i32 = arith.constant 6 : i32
    %79 = vector.broadcast %c6_i32 : i32 to vector<64x8xi32>
    %80 = arith.cmpi sle, %76, %79 : vector<64x8xi32>
    %c0_47 = arith.constant 0 : index
    %c0_48 = arith.constant 0 : index
    %81 = vector.load %arg15[%c0_47, %c0_48] : memref<1x64xf32, #tpu.memory_space<vmem>>, vector<1x64xf32>
    %82 = vector.broadcast %81 : vector<1x64xf32> to vector<64x64xf32>
    %83 = arith.mulf %28, %82 : vector<64x64xf32>
    %c0_49 = arith.constant 0 : index
    %c0_50 = arith.constant 0 : index
    %84 = vector.load %arg16[%c0_49, %c0_50] : memref<1x64xf32, #tpu.memory_space<vmem>>, vector<1x64xf32>
    %85 = vector.broadcast %84 : vector<1x64xf32> to vector<64x64xf32>
    %86 = arith.addf %83, %85 : vector<64x64xf32>
    %cst_51 = arith.constant 0.000000e+00 : f32
    %87 = vector.broadcast %cst_51 : f32 to vector<64x64xf32>
    %88 = arith.maximumf %86, %87 : vector<64x64xf32>
    %c0_52 = arith.constant 0 : index
    %c0_53 = arith.constant 0 : index
    %89 = vector.load %arg17[%c0_52, %c0_53] : memref<64x8xf32, #tpu.memory_space<vmem>>, vector<64x8xf32>
    %90 = arith.truncf %88 : vector<64x64xf32> to vector<64x64xbf16>
    %91 = arith.truncf %89 : vector<64x8xf32> to vector<64x8xbf16>
    %cst_54 = arith.constant dense<0.000000e+00> : vector<64x8xf32>
    %92 = tpu.matmul %90, %91, %cst_54 {dimension_numbers = #tpu.dot_dimension_numbers<[1], [0], [0], [1], [0, 0, 1, 1], [], []>} : vector<64x64xbf16>, vector<64x8xbf16>, vector<64x8xf32> -> vector<64x8xf32>
    %c0_55 = arith.constant 0 : index
    %c0_56 = arith.constant 0 : index
    %93 = vector.load %arg18[%c0_55, %c0_56] : memref<1x8xf32, #tpu.memory_space<vmem>>, vector<1x8xf32>
    %94 = vector.broadcast %93 : vector<1x8xf32> to vector<64x8xf32>
    %95 = arith.mulf %92, %94 : vector<64x8xf32>
    %c0_57 = arith.constant 0 : index
    %c0_58 = arith.constant 0 : index
    %96 = vector.load %arg19[%c0_57, %c0_58] : memref<1x8xf32, #tpu.memory_space<vmem>>, vector<1x8xf32>
    %97 = vector.broadcast %96 : vector<1x8xf32> to vector<64x8xf32>
    %98 = arith.addf %95, %97 : vector<64x8xf32>
    %cst_59 = arith.constant 0.000000e+00 : f32
    %99 = vector.broadcast %cst_59 : f32 to vector<64x8xf32>
    %100 = arith.maximumf %98, %99 : vector<64x8xf32>
    %c16 = arith.constant 16 : index
    %c0_60 = arith.constant 0 : index
    %101 = vector.load %arg37[%c16, %c0_60] : memref<96x8xf32, #tpu.memory_space<vmem>>, vector<64x8xf32>
    tpu.vector_store %arg37[%c16, %c0_60], %100 {strides = array<i32>} : memref<96x8xf32, #tpu.memory_space<vmem>>, vector<64x8xf32>,
    %c7 = arith.constant 7 : index
    %c0_61 = arith.constant 0 : index
    %102 = vector.load %arg37[%c7, %c0_61] : memref<96x8xf32, #tpu.memory_space<vmem>>, vector<64x8xf32>
    %cst_62 = arith.constant 0.000000e+00 : f32
    %103 = vector.broadcast %cst_62 : f32 to vector<64x8xf32>
    %104 = arith.select %78, %102, %103 : vector<64x8xi1>, vector<64x8xf32>
    %c8 = arith.constant 8 : index
    %c0_63 = arith.constant 0 : index
    %105 = vector.load %arg37[%c8, %c0_63] : memref<96x8xf32, #tpu.memory_space<vmem>>, vector<64x8xf32>
    %c9 = arith.constant 9 : index
    %c0_64 = arith.constant 0 : index
    %106 = vector.load %arg37[%c9, %c0_64] : memref<96x8xf32, #tpu.memory_space<vmem>>, vector<64x8xf32>
    %cst_65 = arith.constant 0.000000e+00 : f32
    %107 = vector.broadcast %cst_65 : f32 to vector<64x8xf32>
    %108 = arith.select %80, %106, %107 : vector<64x8xi1>, vector<64x8xf32>
    %c15 = arith.constant 15 : index
    %c0_66 = arith.constant 0 : index
    %109 = vector.load %arg37[%c15, %c0_66] : memref<96x8xf32, #tpu.memory_space<vmem>>, vector<64x8xf32>
    %cst_67 = arith.constant 0.000000e+00 : f32
    %110 = vector.broadcast %cst_67 : f32 to vector<64x8xf32>
    %111 = arith.select %78, %109, %110 : vector<64x8xi1>, vector<64x8xf32>
    %c16_68 = arith.constant 16 : index
    %c0_69 = arith.constant 0 : index
    %112 = vector.load %arg37[%c16_68, %c0_69] : memref<96x8xf32, #tpu.memory_space<vmem>>, vector<64x8xf32>
    %c17 = arith.constant 17 : index
    %c0_70 = arith.constant 0 : index
    %113 = vector.load %arg37[%c17, %c0_70] : memref<96x8xf32, #tpu.memory_space<vmem>>, vector<64x8xf32>
    %cst_71 = arith.constant 0.000000e+00 : f32
    %114 = vector.broadcast %cst_71 : f32 to vector<64x8xf32>
    %115 = arith.select %80, %113, %114 : vector<64x8xi1>, vector<64x8xf32>
    %c23 = arith.constant 23 : index
    %c0_72 = arith.constant 0 : index
    %116 = vector.load %arg37[%c23, %c0_72] : memref<96x8xf32, #tpu.memory_space<vmem>>, vector<64x8xf32>
    %cst_73 = arith.constant 0.000000e+00 : f32
    %117 = vector.broadcast %cst_73 : f32 to vector<64x8xf32>
    %118 = arith.select %78, %116, %117 : vector<64x8xi1>, vector<64x8xf32>
    %c24 = arith.constant 24 : index
    %c0_74 = arith.constant 0 : index
    %119 = vector.load %arg37[%c24, %c0_74] : memref<96x8xf32, #tpu.memory_space<vmem>>, vector<64x8xf32>
    %c25 = arith.constant 25 : index
    %c0_75 = arith.constant 0 : index
    %120 = vector.load %arg37[%c25, %c0_75] : memref<96x8xf32, #tpu.memory_space<vmem>>, vector<64x8xf32>
    %cst_76 = arith.constant 0.000000e+00 : f32
    %121 = vector.broadcast %cst_76 : f32 to vector<64x8xf32>
    %122 = arith.select %80, %120, %121 : vector<64x8xi1>, vector<64x8xf32>
    %123 = tpu.concatenate %104, %105, %108, %111, %112, %115, %118, %119, %122 in 1 : vector<64x8xf32>, vector<64x8xf32>, vector<64x8xf32>, vector<64x8xf32>, vector<64x8xf32>, vector<64x8xf32>, vector<64x8xf32>, vector<64x8xf32>, vector<64x8xf32> -> vector<64x72xf32>
    %c0_77 = arith.constant 0 : index
    %c0_78 = arith.constant 0 : index
    %124 = vector.load %arg20[%c0_77, %c0_78] : memref<72x8xf32, #tpu.memory_space<vmem>>, vector<72x8xf32>
    %125 = arith.truncf %123 : vector<64x72xf32> to vector<64x72xbf16>
    %126 = arith.truncf %124 : vector<72x8xf32> to vector<72x8xbf16>
    %cst_79 = arith.constant dense<0.000000e+00> : vector<64x8xf32>
    %127 = tpu.matmul %125, %126, %cst_79 {dimension_numbers = #tpu.dot_dimension_numbers<[1], [0], [0], [1], [0, 0, 1, 1], [], []>} : vector<64x72xbf16>, vector<72x8xbf16>, vector<64x8xf32> -> vector<64x8xf32>
    %c0_80 = arith.constant 0 : index
    %c0_81 = arith.constant 0 : index
    %128 = vector.load %arg21[%c0_80, %c0_81] : memref<1x8xf32, #tpu.memory_space<vmem>>, vector<1x8xf32>
    %129 = vector.broadcast %128 : vector<1x8xf32> to vector<64x8xf32>
    %130 = arith.mulf %127, %129 : vector<64x8xf32>
    %c0_82 = arith.constant 0 : index
    %c0_83 = arith.constant 0 : index
    %131 = vector.load %arg22[%c0_82, %c0_83] : memref<1x8xf32, #tpu.memory_space<vmem>>, vector<1x8xf32>
    %132 = vector.broadcast %131 : vector<1x8xf32> to vector<64x8xf32>
    %133 = arith.addf %130, %132 : vector<64x8xf32>
    %cst_84 = arith.constant 0.000000e+00 : f32
    %134 = vector.broadcast %cst_84 : f32 to vector<64x8xf32>
    %135 = arith.maximumf %133, %134 : vector<64x8xf32>
    %c0_85 = arith.constant 0 : index
    %c0_86 = arith.constant 0 : index
    %136 = vector.load %arg23[%c0_85, %c0_86] : memref<8x32xf32, #tpu.memory_space<vmem>>, vector<8x32xf32>
    %137 = arith.truncf %135 : vector<64x8xf32> to vector<64x8xbf16>
    %138 = arith.truncf %136 : vector<8x32xf32> to vector<8x32xbf16>
    %cst_87 = arith.constant dense<0.000000e+00> : vector<64x32xf32>
    %139 = tpu.matmul %137, %138, %cst_87 {dimension_numbers = #tpu.dot_dimension_numbers<[1], [0], [0], [1], [0, 0, 1, 1], [], []>} : vector<64x8xbf16>, vector<8x32xbf16>, vector<64x32xf32> -> vector<64x32xf32>
    %c0_88 = arith.constant 0 : index
    %c0_89 = arith.constant 0 : index
    %140 = vector.load %arg24[%c0_88, %c0_89] : memref<1x64xf32, #tpu.memory_space<vmem>>, vector<1x64xf32>
    %141 = vector.broadcast %140 : vector<1x64xf32> to vector<64x64xf32>
    %142 = arith.mulf %28, %141 : vector<64x64xf32>
    %c0_90 = arith.constant 0 : index
    %c0_91 = arith.constant 0 : index
    %143 = vector.load %arg25[%c0_90, %c0_91] : memref<1x64xf32, #tpu.memory_space<vmem>>, vector<1x64xf32>
    %144 = vector.broadcast %143 : vector<1x64xf32> to vector<64x64xf32>
    %145 = arith.addf %142, %144 : vector<64x64xf32>
    %cst_92 = arith.constant 0.000000e+00 : f32
    %146 = vector.broadcast %cst_92 : f32 to vector<64x64xf32>
    %147 = arith.maximumf %145, %146 : vector<64x64xf32>
    %c0_93 = arith.constant 0 : index
    %c0_94 = arith.constant 0 : index
    %148 = vector.load %arg26[%c0_93, %c0_94] : memref<64x32xf32, #tpu.memory_space<vmem>>, vector<64x32xf32>
    %149 = arith.truncf %147 : vector<64x64xf32> to vector<64x64xbf16>
    %150 = arith.truncf %148 : vector<64x32xf32> to vector<64x32xbf16>
    %cst_95 = arith.constant dense<0.000000e+00> : vector<64x32xf32>
    %151 = tpu.matmul %149, %150, %cst_95 {dimension_numbers = #tpu.dot_dimension_numbers<[1], [0], [0], [1], [0, 0, 1, 1], [], []>} : vector<64x64xbf16>, vector<64x32xbf16>, vector<64x32xf32> -> vector<64x32xf32>
    %152 = arith.addf %139, %151 : vector<64x32xf32>
    %c0_96 = arith.constant 0 : index
    %c0_97 = arith.constant 0 : index
    %153 = vector.load %arg27[%c0_96, %c0_97] : memref<1x32xf32, #tpu.memory_space<vmem>>, vector<1x32xf32>
    %154 = vector.broadcast %153 : vector<1x32xf32> to vector<64x32xf32>
    %155 = arith.mulf %152, %154 : vector<64x32xf32>
    %c0_98 = arith.constant 0 : index
    %c0_99 = arith.constant 0 : index
    %156 = vector.load %arg28[%c0_98, %c0_99] : memref<1x32xf32, #tpu.memory_space<vmem>>, vector<1x32xf32>
    %157 = vector.broadcast %156 : vector<1x32xf32> to vector<64x32xf32>
    %158 = arith.addf %155, %157 : vector<64x32xf32>
    %cst_100 = arith.constant 0.000000e+00 : f32
    %159 = vector.broadcast %cst_100 : f32 to vector<64x32xf32>
    %160 = arith.maximumf %158, %159 : vector<64x32xf32>
    %c0_101 = arith.constant 0 : index
    %c0_102 = arith.constant 0 : index
    %161 = vector.load %arg29[%c0_101, %c0_102] : memref<32x8xf32, #tpu.memory_space<vmem>>, vector<32x8xf32>
    %162 = arith.truncf %160 : vector<64x32xf32> to vector<64x32xbf16>
    %163 = arith.truncf %161 : vector<32x8xf32> to vector<32x8xbf16>
    %cst_103 = arith.constant dense<0.000000e+00> : vector<64x8xf32>
    %164 = tpu.matmul %162, %163, %cst_103 {dimension_numbers = #tpu.dot_dimension_numbers<[1], [0], [0], [1], [0, 0, 1, 1], [], []>} : vector<64x32xbf16>, vector<32x8xbf16>, vector<64x8xf32> -> vector<64x8xf32>
    %c0_104 = arith.constant 0 : index
    %c0_105 = arith.constant 0 : index
    %165 = vector.load %arg30[%c0_104, %c0_105] : memref<1x8xf32, #tpu.memory_space<vmem>>, vector<1x8xf32>
    %166 = vector.broadcast %165 : vector<1x8xf32> to vector<64x8xf32>
    %167 = arith.mulf %164, %166 : vector<64x8xf32>
    %c0_106 = arith.constant 0 : index
    %c0_107 = arith.constant 0 : index
    %168 = vector.load %arg31[%c0_106, %c0_107] : memref<1x8xf32, #tpu.memory_space<vmem>>, vector<1x8xf32>
    %169 = vector.broadcast %168 : vector<1x8xf32> to vector<64x8xf32>
    %170 = arith.addf %167, %169 : vector<64x8xf32>
    %cst_108 = arith.constant 0.000000e+00 : f32
    %171 = vector.broadcast %cst_108 : f32 to vector<64x8xf32>
    %172 = arith.maximumf %170, %171 : vector<64x8xf32>
    %c16_109 = arith.constant 16 : index
    %c0_110 = arith.constant 0 : index
    %173 = vector.load %arg37[%c16_109, %c0_110] : memref<96x8xf32, #tpu.memory_space<vmem>>, vector<64x8xf32>
    tpu.vector_store %arg37[%c16_109, %c0_110], %172 {strides = array<i32>} : memref<96x8xf32, #tpu.memory_space<vmem>>, vector<64x8xf32>,
    %c7_111 = arith.constant 7 : index
    %c0_112 = arith.constant 0 : index
    %174 = vector.load %arg37[%c7_111, %c0_112] : memref<96x8xf32, #tpu.memory_space<vmem>>, vector<64x8xf32>
    %cst_113 = arith.constant 0.000000e+00 : f32
    %175 = vector.broadcast %cst_113 : f32 to vector<64x8xf32>
    %176 = arith.select %78, %174, %175 : vector<64x8xi1>, vector<64x8xf32>
    %c8_114 = arith.constant 8 : index
    %c0_115 = arith.constant 0 : index
    %177 = vector.load %arg37[%c8_114, %c0_115] : memref<96x8xf32, #tpu.memory_space<vmem>>, vector<64x8xf32>
    %c9_116 = arith.constant 9 : index
    %c0_117 = arith.constant 0 : index
    %178 = vector.load %arg37[%c9_116, %c0_117] : memref<96x8xf32, #tpu.memory_space<vmem>>, vector<64x8xf32>
    %cst_118 = arith.constant 0.000000e+00 : f32
    %179 = vector.broadcast %cst_118 : f32 to vector<64x8xf32>
    %180 = arith.select %80, %178, %179 : vector<64x8xi1>, vector<64x8xf32>
    %c15_119 = arith.constant 15 : index
    %c0_120 = arith.constant 0 : index
    %181 = vector.load %arg37[%c15_119, %c0_120] : memref<96x8xf32, #tpu.memory_space<vmem>>, vector<64x8xf32>
    %cst_121 = arith.constant 0.000000e+00 : f32
    %182 = vector.broadcast %cst_121 : f32 to vector<64x8xf32>
    %183 = arith.select %78, %181, %182 : vector<64x8xi1>, vector<64x8xf32>
    %c16_122 = arith.constant 16 : index
    %c0_123 = arith.constant 0 : index
    %184 = vector.load %arg37[%c16_122, %c0_123] : memref<96x8xf32, #tpu.memory_space<vmem>>, vector<64x8xf32>
    %c17_124 = arith.constant 17 : index
    %c0_125 = arith.constant 0 : index
    %185 = vector.load %arg37[%c17_124, %c0_125] : memref<96x8xf32, #tpu.memory_space<vmem>>, vector<64x8xf32>
    %cst_126 = arith.constant 0.000000e+00 : f32
    %186 = vector.broadcast %cst_126 : f32 to vector<64x8xf32>
    %187 = arith.select %80, %185, %186 : vector<64x8xi1>, vector<64x8xf32>
    %c23_127 = arith.constant 23 : index
    %c0_128 = arith.constant 0 : index
    %188 = vector.load %arg37[%c23_127, %c0_128] : memref<96x8xf32, #tpu.memory_space<vmem>>, vector<64x8xf32>
    %cst_129 = arith.constant 0.000000e+00 : f32
    %189 = vector.broadcast %cst_129 : f32 to vector<64x8xf32>
    %190 = arith.select %78, %188, %189 : vector<64x8xi1>, vector<64x8xf32>
    %c24_130 = arith.constant 24 : index
    %c0_131 = arith.constant 0 : index
    %191 = vector.load %arg37[%c24_130, %c0_131] : memref<96x8xf32, #tpu.memory_space<vmem>>, vector<64x8xf32>
    %c25_132 = arith.constant 25 : index
    %c0_133 = arith.constant 0 : index
    %192 = vector.load %arg37[%c25_132, %c0_133] : memref<96x8xf32, #tpu.memory_space<vmem>>, vector<64x8xf32>
    %cst_134 = arith.constant 0.000000e+00 : f32
    %193 = vector.broadcast %cst_134 : f32 to vector<64x8xf32>
    %194 = arith.select %80, %192, %193 : vector<64x8xi1>, vector<64x8xf32>
    %195 = tpu.concatenate %176, %177, %180, %183, %184, %187, %190, %191, %194 in 1 : vector<64x8xf32>, vector<64x8xf32>, vector<64x8xf32>, vector<64x8xf32>, vector<64x8xf32>, vector<64x8xf32>, vector<64x8xf32>, vector<64x8xf32>, vector<64x8xf32> -> vector<64x72xf32>
    %c0_135 = arith.constant 0 : index
    %c0_136 = arith.constant 0 : index
    %196 = vector.load %arg32[%c0_135, %c0_136] : memref<72x8xf32, #tpu.memory_space<vmem>>, vector<72x8xf32>
    %197 = arith.truncf %195 : vector<64x72xf32> to vector<64x72xbf16>
    %198 = arith.truncf %196 : vector<72x8xf32> to vector<72x8xbf16>
    %cst_137 = arith.constant dense<0.000000e+00> : vector<64x8xf32>
    %199 = tpu.matmul %197, %198, %cst_137 {dimension_numbers = #tpu.dot_dimension_numbers<[1], [0], [0], [1], [0, 0, 1, 1], [], []>} : vector<64x72xbf16>, vector<72x8xbf16>, vector<64x8xf32> -> vector<64x8xf32>
    %c0_138 = arith.constant 0 : index
    %c0_139 = arith.constant 0 : index
    %200 = vector.load %arg33[%c0_138, %c0_139] : memref<1x8xf32, #tpu.memory_space<vmem>>, vector<1x8xf32>
    %201 = vector.broadcast %200 : vector<1x8xf32> to vector<64x8xf32>
    %202 = arith.mulf %199, %201 : vector<64x8xf32>
    %c0_140 = arith.constant 0 : index
    %c0_141 = arith.constant 0 : index
    %203 = vector.load %arg34[%c0_140, %c0_141] : memref<1x8xf32, #tpu.memory_space<vmem>>, vector<1x8xf32>
    %204 = vector.broadcast %203 : vector<1x8xf32> to vector<64x8xf32>
    %205 = arith.addf %202, %204 : vector<64x8xf32>
    %cst_142 = arith.constant 0.000000e+00 : f32
    %206 = vector.broadcast %cst_142 : f32 to vector<64x8xf32>
    %207 = arith.maximumf %205, %206 : vector<64x8xf32>
    %c0_143 = arith.constant 0 : index
    %c0_144 = arith.constant 0 : index
    %208 = vector.load %arg35[%c0_143, %c0_144] : memref<8x32xf32, #tpu.memory_space<vmem>>, vector<8x32xf32>
    %209 = arith.truncf %207 : vector<64x8xf32> to vector<64x8xbf16>
    %210 = arith.truncf %208 : vector<8x32xf32> to vector<8x32xbf16>
    %cst_145 = arith.constant dense<0.000000e+00> : vector<64x32xf32>
    %211 = tpu.matmul %209, %210, %cst_145 {dimension_numbers = #tpu.dot_dimension_numbers<[1], [0], [0], [1], [0, 0, 1, 1], [], []>} : vector<64x8xbf16>, vector<8x32xbf16>, vector<64x32xf32> -> vector<64x32xf32>
    %212 = arith.addf %211, %152 : vector<64x32xf32>
    %213 = vector.broadcast %55 : vector<1x32xf32> to vector<64x32xf32>
    %214 = arith.mulf %212, %213 : vector<64x32xf32>
    %215 = vector.broadcast %55 : vector<1x32xf32> to vector<64x32xf32>
    %216 = arith.addf %214, %215 : vector<64x32xf32>
    %c0_146 = arith.constant 0 : index
    %c0_147 = arith.constant 0 : index
    %c0_148 = arith.constant 0 : index
    %217 = vector.load %arg36[%c0_146, %c0_147, %c0_148] : memref<1x64x32xf32, #tpu.memory_space<vmem>>, vector<1x64x32xf32>
    %218 = vector.shape_cast %217 : vector<1x64x32xf32> to vector<64x32xf32>
    %219 = vector.shape_cast %216 : vector<64x32xf32> to vector<1x64x32xf32>
    tpu.vector_store %arg36[%c0_146, %c0_147, %c0_148], %219 {strides = array<i32>} : memref<1x64x32xf32, #tpu.memory_space<vmem>>, vector<1x64x32xf32>,
    return
  }
  func.func @transform_0(%arg0: i32) -> (i32, i32, i32) {
    %c0_i32 = arith.constant 0 : i32
    %c0_i32_0 = arith.constant 0 : i32
    %c0_i32_1 = arith.constant 0 : i32
    return %arg0, %c0_i32, %c0_i32_0 : i32, i32, i32
  }
  func.func @transform_1(%arg0: i32) -> (i32, i32) {
    %c0_i32 = arith.constant 0 : i32
    %c0_i32_0 = arith.constant 0 : i32
    %c0_i32_1 = arith.constant 0 : i32
    return %c0_i32, %c0_i32_0 : i32, i32
  }
  func.func @transform_2(%arg0: i32) -> (i32, i32) {
    %c0_i32 = arith.constant 0 : i32
    %c0_i32_0 = arith.constant 0 : i32
    %c0_i32_1 = arith.constant 0 : i32
    return %c0_i32, %c0_i32_0 : i32, i32
  }
  func.func @transform_3(%arg0: i32) -> (i32, i32) {
    %c0_i32 = arith.constant 0 : i32
    %c0_i32_0 = arith.constant 0 : i32
    %c0_i32_1 = arith.constant 0 : i32
    return %c0_i32, %c0_i32_0 : i32, i32
  }
  func.func @transform_4(%arg0: i32) -> (i32, i32) {
    %c0_i32 = arith.constant 0 : i32
    %c0_i32_0 = arith.constant 0 : i32
    %c0_i32_1 = arith.constant 0 : i32
    return %c0_i32, %c0_i32_0 : i32, i32
  }
  func.func @transform_5(%arg0: i32) -> (i32, i32) {
    %c0_i32 = arith.constant 0 : i32
    %c0_i32_0 = arith.constant 0 : i32
    %c0_i32_1 = arith.constant 0 : i32
    return %c0_i32, %c0_i32_0 : i32, i32
  }
  func.func @transform_6(%arg0: i32) -> (i32, i32) {
    %c0_i32 = arith.constant 0 : i32
    %c0_i32_0 = arith.constant 0 : i32
    %c0_i32_1 = arith.constant 0 : i32
    return %c0_i32, %c0_i32_0 : i32, i32
  }
  func.func @transform_7(%arg0: i32) -> (i32, i32) {
    %c0_i32 = arith.constant 0 : i32
    %c0_i32_0 = arith.constant 0 : i32
    %c0_i32_1 = arith.constant 0 : i32
    return %c0_i32, %c0_i32_0 : i32, i32
  }
  func.func @transform_8(%arg0: i32) -> (i32, i32) {
    %c0_i32 = arith.constant 0 : i32
    %c0_i32_0 = arith.constant 0 : i32
    %c0_i32_1 = arith.constant 0 : i32
    return %c0_i32, %c0_i32_0 : i32, i32
  }
  func.func @transform_9(%arg0: i32) -> (i32, i32) {
    %c0_i32 = arith.constant 0 : i32
    %c0_i32_0 = arith.constant 0 : i32
    %c0_i32_1 = arith.constant 0 : i32
    return %c0_i32, %c0_i32_0 : i32, i32
  }
  func.func @transform_10(%arg0: i32) -> (i32, i32) {
    %c0_i32 = arith.constant 0 : i32
    %c0_i32_0 = arith.constant 0 : i32
    %c0_i32_1 = arith.constant 0 : i32
    return %c0_i32, %c0_i32_0 : i32, i32
  }
  func.func @transform_11(%arg0: i32) -> (i32, i32) {
    %c0_i32 = arith.constant 0 : i32
    %c0_i32_0 = arith.constant 0 : i32
    %c0_i32_1 = arith.constant 0 : i32
    return %c0_i32, %c0_i32_0 : i32, i32
  }
  func.func @transform_12(%arg0: i32) -> (i32, i32) {
    %c0_i32 = arith.constant 0 : i32
    %c0_i32_0 = arith.constant 0 : i32
    %c0_i32_1 = arith.constant 0 : i32
    return %c0_i32, %c0_i32_0 : i32, i32
  }
  func.func @transform_13(%arg0: i32) -> (i32, i32) {
    %c0_i32 = arith.constant 0 : i32
    %c0_i32_0 = arith.constant 0 : i32
    %c0_i32_1 = arith.constant 0 : i32
    return %c0_i32, %c0_i32_0 : i32, i32
  }
  func.func @transform_14(%arg0: i32) -> (i32, i32) {
    %c0_i32 = arith.constant 0 : i32
    %c0_i32_0 = arith.constant 0 : i32
    %c0_i32_1 = arith.constant 0 : i32
    return %c0_i32, %c0_i32_0 : i32, i32
  }
  func.func @transform_15(%arg0: i32) -> (i32, i32) {
    %c0_i32 = arith.constant 0 : i32
    %c0_i32_0 = arith.constant 0 : i32
    %c0_i32_1 = arith.constant 0 : i32
    return %c0_i32, %c0_i32_0 : i32, i32
  }
  func.func @transform_16(%arg0: i32) -> (i32, i32) {
    %c0_i32 = arith.constant 0 : i32
    %c0_i32_0 = arith.constant 0 : i32
    %c0_i32_1 = arith.constant 0 : i32
    return %c0_i32, %c0_i32_0 : i32, i32
  }
  func.func @transform_17(%arg0: i32) -> (i32, i32) {
    %c0_i32 = arith.constant 0 : i32
    %c0_i32_0 = arith.constant 0 : i32
    %c0_i32_1 = arith.constant 0 : i32
    return %c0_i32, %c0_i32_0 : i32, i32
  }
  func.func @transform_18(%arg0: i32) -> (i32, i32) {
    %c0_i32 = arith.constant 0 : i32
    %c0_i32_0 = arith.constant 0 : i32
    %c0_i32_1 = arith.constant 0 : i32
    return %c0_i32, %c0_i32_0 : i32, i32
  }
  func.func @transform_19(%arg0: i32) -> (i32, i32) {
    %c0_i32 = arith.constant 0 : i32
    %c0_i32_0 = arith.constant 0 : i32
    %c0_i32_1 = arith.constant 0 : i32
    return %c0_i32, %c0_i32_0 : i32, i32
  }
  func.func @transform_20(%arg0: i32) -> (i32, i32) {
    %c0_i32 = arith.constant 0 : i32
    %c0_i32_0 = arith.constant 0 : i32
    %c0_i32_1 = arith.constant 0 : i32
    return %c0_i32, %c0_i32_0 : i32, i32
  }
  func.func @transform_21(%arg0: i32) -> (i32, i32) {
    %c0_i32 = arith.constant 0 : i32
    %c0_i32_0 = arith.constant 0 : i32
    %c0_i32_1 = arith.constant 0 : i32
    return %c0_i32, %c0_i32_0 : i32, i32
  }
  func.func @transform_22(%arg0: i32) -> (i32, i32) {
    %c0_i32 = arith.constant 0 : i32
    %c0_i32_0 = arith.constant 0 : i32
    %c0_i32_1 = arith.constant 0 : i32
    return %c0_i32, %c0_i32_0 : i32, i32
  }
  func.func @transform_23(%arg0: i32) -> (i32, i32) {
    %c0_i32 = arith.constant 0 : i32
    %c0_i32_0 = arith.constant 0 : i32
    %c0_i32_1 = arith.constant 0 : i32
    return %c0_i32, %c0_i32_0 : i32, i32
  }
  func.func @transform_24(%arg0: i32) -> (i32, i32) {
    %c0_i32 = arith.constant 0 : i32
    %c0_i32_0 = arith.constant 0 : i32
    %c0_i32_1 = arith.constant 0 : i32
    return %c0_i32, %c0_i32_0 : i32, i32
  }
  func.func @transform_25(%arg0: i32) -> (i32, i32) {
    %c0_i32 = arith.constant 0 : i32
    %c0_i32_0 = arith.constant 0 : i32
    %c0_i32_1 = arith.constant 0 : i32
    return %c0_i32, %c0_i32_0 : i32, i32
  }
  func.func @transform_26(%arg0: i32) -> (i32, i32) {
    %c0_i32 = arith.constant 0 : i32
    %c0_i32_0 = arith.constant 0 : i32
    %c0_i32_1 = arith.constant 0 : i32
    return %c0_i32, %c0_i32_0 : i32, i32
  }
  func.func @transform_27(%arg0: i32) -> (i32, i32) {
    %c0_i32 = arith.constant 0 : i32
    %c0_i32_0 = arith.constant 0 : i32
    %c0_i32_1 = arith.constant 0 : i32
    return %c0_i32, %c0_i32_0 : i32, i32
  }
  func.func @transform_28(%arg0: i32) -> (i32, i32) {
    %c0_i32 = arith.constant 0 : i32
    %c0_i32_0 = arith.constant 0 : i32
    %c0_i32_1 = arith.constant 0 : i32
    return %c0_i32, %c0_i32_0 : i32, i32
  }
  func.func @transform_29(%arg0: i32) -> (i32, i32) {
    %c0_i32 = arith.constant 0 : i32
    %c0_i32_0 = arith.constant 0 : i32
    %c0_i32_1 = arith.constant 0 : i32
    return %c0_i32, %c0_i32_0 : i32, i32
  }
  func.func @transform_30(%arg0: i32) -> (i32, i32) {
    %c0_i32 = arith.constant 0 : i32
    %c0_i32_0 = arith.constant 0 : i32
    %c0_i32_1 = arith.constant 0 : i32
    return %c0_i32, %c0_i32_0 : i32, i32
  }
  func.func @transform_31(%arg0: i32) -> (i32, i32) {
    %c0_i32 = arith.constant 0 : i32
    %c0_i32_0 = arith.constant 0 : i32
    %c0_i32_1 = arith.constant 0 : i32
    return %c0_i32, %c0_i32_0 : i32, i32
  }
  func.func @transform_32(%arg0: i32) -> (i32, i32) {
    %c0_i32 = arith.constant 0 : i32
    %c0_i32_0 = arith.constant 0 : i32
    %c0_i32_1 = arith.constant 0 : i32
    return %c0_i32, %c0_i32_0 : i32, i32
  }
  func.func @transform_33(%arg0: i32) -> (i32, i32) {
    %c0_i32 = arith.constant 0 : i32
    %c0_i32_0 = arith.constant 0 : i32
    %c0_i32_1 = arith.constant 0 : i32
    return %c0_i32, %c0_i32_0 : i32, i32
  }
  func.func @transform_34(%arg0: i32) -> (i32, i32) {
    %c0_i32 = arith.constant 0 : i32
    %c0_i32_0 = arith.constant 0 : i32
    %c0_i32_1 = arith.constant 0 : i32
    return %c0_i32, %c0_i32_0 : i32, i32
  }
  func.func @transform_35(%arg0: i32) -> (i32, i32, i32) {
    %c0_i32 = arith.constant 0 : i32
    %c0_i32_0 = arith.constant 0 : i32
    %c0_i32_1 = arith.constant 0 : i32
    return %arg0, %c0_i32, %c0_i32_0 : i32, i32, i32
  }
}

</mosaic_0001>

<llo_original>
// kernel: bridge_forward.1
$region0: #{bridge_forward.1}
  #allocation0 [shape = 'u32[]', space=smem, size = 0x4, offset = 0x4, fixed_abs, tag = 'smem constant byte address 0x4 - core index']
  #allocation1 [shape = 'u32[144,128]{1,0:T(1,128)}', space=vmem, size = 0x12000, scoped, tag = 'internal scratch']
  #allocation2 [shape = 'f32[96,8]{1,0:T(8,128)}', space=vmem, size = 0xc000, scoped, tag = 'scratch operand']
  %s0 = inlined_call_operand.smem [shape: u32[36], index: -1, kind: input, shape index: {}]
  %s1 = sld [smem:[%s0]]
  %s2 = scalar_lea.smem %s0, 1
  %s3 = sld [smem:[%s2]]
  %s4 = scalar_lea.smem %s0, 2
  %s5 = sld [smem:[%s4]]
  %s6 = scalar_lea.smem %s0, 3
  %s7 = sld [smem:[%s6]]
  %s8 = scalar_lea.smem %s0, 4
  %s9 = sld [smem:[%s8]]
  %s10 = scalar_lea.smem %s0, 5
  %s11 = sld [smem:[%s10]]
  %s12 = scalar_lea.smem %s0, 6
  %s13 = sld [smem:[%s12]]
  %s14 = scalar_lea.smem %s0, 7
  %s15 = sld [smem:[%s14]]
  %s16 = scalar_lea.smem %s0, 8
  %s17 = sld [smem:[%s16]]
  %s18 = scalar_lea.smem %s0, 9
  %s19 = sld [smem:[%s18]]
  %s20 = scalar_lea.smem %s0, 10
  %s21 = sld [smem:[%s20]]
  %s22 = scalar_lea.smem %s0, 11
  %s23 = sld [smem:[%s22]]
  %s24 = scalar_lea.smem %s0, 12
  %s25 = sld [smem:[%s24]]
  %s26 = scalar_lea.smem %s0, 13
  %s27 = sld [smem:[%s26]]
  %s28 = scalar_lea.smem %s0, 14
  %s29 = sld [smem:[%s28]]
  %s30 = scalar_lea.smem %s0, 15
  %s31 = sld [smem:[%s30]]
  %s32 = scalar_lea.smem %s0, 16
  %s33 = sld [smem:[%s32]]
  %s34 = scalar_lea.smem %s0, 17
  %s35 = sld [smem:[%s34]]
  %s36 = scalar_lea.smem %s0, 18
  %s37 = sld [smem:[%s36]]
  %s38 = scalar_lea.smem %s0, 19
  %s39 = sld [smem:[%s38]]
  %s40 = scalar_lea.smem %s0, 20
  %s41 = sld [smem:[%s40]]
  %s42 = scalar_lea.smem %s0, 21
  %s43 = sld [smem:[%s42]]
  %s44 = scalar_lea.smem %s0, 22
  %s45 = sld [smem:[%s44]]
  %s46 = scalar_lea.smem %s0, 23
  %s47 = sld [smem:[%s46]]
  %s48 = scalar_lea.smem %s0, 24
  %s49 = sld [smem:[%s48]]
  %s50 = scalar_lea.smem %s0, 25
  %s51 = sld [smem:[%s50]]
  %s52 = scalar_lea.smem %s0, 26
  %s53 = sld [smem:[%s52]]
  %s54 = scalar_lea.smem %s0, 27
  %s55 = sld [smem:[%s54]]
  %s56 = scalar_lea.smem %s0, 28
  %s57 = sld [smem:[%s56]]
  %s58 = scalar_lea.smem %s0, 29
  %s59 = sld [smem:[%s58]]
  %s60 = scalar_lea.smem %s0, 30
  %s61 = sld [smem:[%s60]]
  %s62 = scalar_lea.smem %s0, 31
  %s63 = sld [smem:[%s62]]
  %s64 = scalar_lea.smem %s0, 32
  %s65 = sld [smem:[%s64]]
  %s66 = scalar_lea.smem %s0, 33
  %s67 = sld [smem:[%s66]]
  %s68 = scalar_lea.smem %s0, 34
  %s69 = sld [smem:[%s68]]
  %s70 = scalar_lea.smem %s0, 35
  %s71 = sld [smem:[%s70]]
  %s72 = sld [smem:[#allocation0]]
  $region173: #{bridge_forward.1} parent=0
    _
  %s74 = ssub.s32 1, %s72
  %s75 = scalar_select 0, %s74, %s72
  $region1: #{bridge_forward.1} parent=0
    #allocation3 [shape = 'u8[65536]{0}', space=vmem, size = 0x10000, scoped, tag = 'output window, operand 0']
    #allocation4 [shape = 's32[2]{0}', space=sflag, size = 0x8, scoped, tag = 'scoped memory for bridge_forward.1']
    %76 = vsyncpa [#allocation4], 0
    %s77 = scalar_lea.sflag [#allocation4], 1
    %78 = vsyncpa %s77, 0
    loop: start=0, step=1, limit=4
    $region2: #{bridge_forward.1} parent=1 // loop_pre_header
      _
    $region3: #{bridge_forward.1} parent=1 // loop_header
      %s80 = sphi 0, %s84
      %p81 = scmp.ge.s32.totalorder %s80, 4
      %s90 = sphi 0, %s92
      %s93 = sphi 0, %s90
      %s94 = sphi 0, %s93
      %s110 = sphi 0, %s94
      %s114 = sphi 0, %s114
      %s116 = sphi 0, %s114
      %s117 = sphi 0, %s116
      %s131 = sphi 0, %s117
      %s135 = sphi 0, %s135
      %s137 = sphi 0, %s135
      %s138 = sphi 0, %s137
      %s152 = sphi 0, %s138
      %s156 = sphi 0, %s156
      %s158 = sphi 0, %s156
      %s159 = sphi 0, %s158
      %s173 = sphi 0, %s159
      %s177 = sphi 0, %s177
      %s179 = sphi 0, %s177
      %s180 = sphi 0, %s179
      %s194 = sphi 0, %s180
      %s198 = sphi 0, %s198
      %s200 = sphi 0, %s198
      %s201 = sphi 0, %s200
      %s215 = sphi 0, %s201
      %s219 = sphi 0, %s219
      %s221 = sphi 0, %s219
      %s222 = sphi 0, %s221
      %s236 = sphi 0, %s222
      %s240 = sphi 0, %s240
      %s242 = sphi 0, %s240
      %s243 = sphi 0, %s242
      %s257 = sphi 0, %s243
      %s261 = sphi 0, %s261
      %s263 = sphi 0, %s261
      %s264 = sphi 0, %s263
      %s278 = sphi 0, %s264
      %s282 = sphi 0, %s282
      %s284 = sphi 0, %s282
      %s285 = sphi 0, %s284
      %s299 = sphi 0, %s285
      %s303 = sphi 0, %s303
      %s305 = sphi 0, %s303
      %s306 = sphi 0, %s305
      %s320 = sphi 0, %s306
      %s324 = sphi 0, %s324
      %s326 = sphi 0, %s324
      %s327 = sphi 0, %s326
      %s341 = sphi 0, %s327
      %s345 = sphi 0, %s345
      %s347 = sphi 0, %s345
      %s348 = sphi 0, %s347
      %s362 = sphi 0, %s348
      %s366 = sphi 0, %s366
      %s368 = sphi 0, %s366
      %s369 = sphi 0, %s368
      %s383 = sphi 0, %s369
      %s387 = sphi 0, %s387
      %s389 = sphi 0, %s387
      %s390 = sphi 0, %s389
      %s404 = sphi 0, %s390
      %s408 = sphi 0, %s408
      %s410 = sphi 0, %s408
      %s411 = sphi 0, %s410
      %s425 = sphi 0, %s411
      %s429 = sphi 0, %s429
      %s431 = sphi 0, %s429
      %s432 = sphi 0, %s431
      %s446 = sphi 0, %s432
      %s450 = sphi 0, %s450
      %s452 = sphi 0, %s450
      %s453 = sphi 0, %s452
      %s467 = sphi 0, %s453
      %s471 = sphi 0, %s471
      %s473 = sphi 0, %s471
      %s474 = sphi 0, %s473
      %s488 = sphi 0, %s474
      %s492 = sphi 0, %s492
      %s494 = sphi 0, %s492
      %s495 = sphi 0, %s494
      %s509 = sphi 0, %s495
      %s513 = sphi 0, %s513
      %s515 = sphi 0, %s513
      %s516 = sphi 0, %s515
      %s530 = sphi 0, %s516
      %s534 = sphi 0, %s534
      %s536 = sphi 0, %s534
      %s537 = sphi 0, %s536
      %s551 = sphi 0, %s537
      %s555 = sphi 0, %s555
      %s557 = sphi 0, %s555
      %s558 = sphi 0, %s557
      %s572 = sphi 0, %s558
      %s576 = sphi 0, %s576
      %s578 = sphi 0, %s576
      %s579 = sphi 0, %s578
      %s593 = sphi 0, %s579
      %s597 = sphi 0, %s597
      %s599 = sphi 0, %s597
      %s600 = sphi 0, %s599
      %s614 = sphi 0, %s600
      %s618 = sphi 0, %s618
      %s620 = sphi 0, %s618
      %s621 = sphi 0, %s620
      %s635 = sphi 0, %s621
      %s639 = sphi 0, %s639
      %s641 = sphi 0, %s639
      %s642 = sphi 0, %s641
      %s656 = sphi 0, %s642
      %s660 = sphi 0, %s660
      %s662 = sphi 0, %s660
      %s663 = sphi 0, %s662
      %s677 = sphi 0, %s663
      %s681 = sphi 0, %s681
      %s683 = sphi 0, %s681
      %s684 = sphi 0, %s683
      %s698 = sphi 0, %s684
      %s702 = sphi 0, %s702
      %s704 = sphi 0, %s702
      %s705 = sphi 0, %s704
      %s719 = sphi 0, %s705
      %s723 = sphi 0, %s723
      %s725 = sphi 0, %s723
      %s726 = sphi 0, %s725
      %s740 = sphi 0, %s726
      %s744 = sphi 0, %s744
      %s746 = sphi 0, %s744
      %s747 = sphi 0, %s746
      %s761 = sphi 0, %s747
      %s765 = sphi 0, %s765
      %s767 = sphi 0, %s765
      %s768 = sphi 0, %s767
      %s782 = sphi 0, %s768
      %s786 = sphi 0, %s786
      %s788 = sphi 0, %s786
      %s789 = sphi 0, %s788
      %s803 = sphi 0, %s789
      %s807 = sphi 0, %s807
      %s809 = sphi 0, %s807
      %s810 = sphi 0, %s809
      %s824 = sphi 0, %s810
      %s830 = sphi 0, %s832
      %s833 = sphi 0, %s830
      %s834 = sphi 0, %s833
      %s850 = sphi 0, %s834
    $region4: #{bridge_forward.1} parent=1 // loop_header_branch
      %83 = sbr.rel (%p81) target = $region8
    $region5: #{bridge_forward.1} parent=1 // loop_body
      %s85 = ssub.s32 %s80, 1
      %s86 = ssub.s32 %s80, 2
      %s87 = sadd.s32 %s80, 1
      %s88 = ssub.s32 %s80, %s87
      %p89 = scmp.eq.s32.totalorder %s88, 0
      %s91 = sadd.s32 %s90, 1
      %s92 = scalar_select %p89, %s90, %s91
      %p95 = pneg %p89
      %p96 = scmp.eq.s32.totalorder %s80, 1
      %p97 = por %p95, %p96
      %p98 = scmp.ne.s32.totalorder %s90, %s93
      %p99 = scmp.eq.s32.totalorder %s80, 0
      %p100 = por %p98, %p99
      %p101 = scmp.ne.s32.totalorder %s90, %s93
      %p102 = scmp.eq.s32.totalorder %s85, 1
      %p103 = por %p101, %p102
      %p104 = scmp.ne.s32.totalorder %s93, %s94
      %p105 = scmp.eq.s32.totalorder %s85, 0
      %p106 = por %p104, %p105
      %p107 = scmp.ne.s32.totalorder %s93, %s94
      %p108 = scmp.eq.s32.totalorder %s86, 1
      %p109 = por %p107, %p108
      %p111 = scmp.ne.s32.totalorder %s94, %s110
      %p112 = scmp.eq.s32.totalorder %s86, 0
      %p113 = por %p111, %p112
      %s115 = sadd.s32 %s114, 1
      %p118 = scmp.eq.s32.totalorder %s80, 1
      %p119 = scmp.ne.s32.totalorder %s114, %s116
      %p120 = scmp.eq.s32.totalorder %s80, 0
      %p121 = por %p119, %p120
      %p122 = scmp.ne.s32.totalorder %s114, %s116
      %p123 = scmp.eq.s32.totalorder %s85, 1
      %p124 = por %p122, %p123
      %p125 = scmp.ne.s32.totalorder %s116, %s117
      %p126 = scmp.eq.s32.totalorder %s85, 0
      %p127 = por %p125, %p126
      %p128 = scmp.ne.s32.totalorder %s116, %s117
      %p129 = scmp.eq.s32.totalorder %s86, 1
      %p130 = por %p128, %p129
      %p132 = scmp.ne.s32.totalorder %s117, %s131
      %p133 = scmp.eq.s32.totalorder %s86, 0
      %p134 = por %p132, %p133
      %s136 = sadd.s32 %s135, 1
      %p139 = scmp.eq.s32.totalorder %s80, 1
      %p140 = scmp.ne.s32.totalorder %s135, %s137
      %p141 = scmp.eq.s32.totalorder %s80, 0
      %p142 = por %p140, %p141
      %p143 = scmp.ne.s32.totalorder %s135, %s137
      %p144 = scmp.eq.s32.totalorder %s85, 1
      %p145 = por %p143, %p144
      %p146 = scmp.ne.s32.totalorder %s137, %s138
      %p147 = scmp.eq.s32.totalorder %s85, 0
      %p148 = por %p146, %p147
      %p149 = scmp.ne.s32.totalorder %s137, %s138
      %p150 = scmp.eq.s32.totalorder %s86, 1
      %p151 = por %p149, %p150
      %p153 = scmp.ne.s32.totalorder %s138, %s152
      %p154 = scmp.eq.s32.totalorder %s86, 0
      %p155 = por %p153, %p154
      %s157 = sadd.s32 %s156, 1
      %p160 = scmp.eq.s32.totalorder %s80, 1
      %p161 = scmp.ne.s32.totalorder %s156, %s158
      %p162 = scmp.eq.s32.totalorder %s80, 0
      %p163 = por %p161, %p162
      %p164 = scmp.ne.s32.totalorder %s156, %s158
      %p165 = scmp.eq.s32.totalorder %s85, 1
      %p166 = por %p164, %p165
      %p167 = scmp.ne.s32.totalorder %s158, %s159
      %p168 = scmp.eq.s32.totalorder %s85, 0
      %p169 = por %p167, %p168
      %p170 = scmp.ne.s32.totalorder %s158, %s159
      %p171 = scmp.eq.s32.totalorder %s86, 1
      %p172 = por %p170, %p171
      %p174 = scmp.ne.s32.totalorder %s159, %s173
      %p175 = scmp.eq.s32.totalorder %s86, 0
      %p176 = por %p174, %p175
      %s178 = sadd.s32 %s177, 1
      %p181 = scmp.eq.s32.totalorder %s80, 1
      %p182 = scmp.ne.s32.totalorder %s177, %s179
      %p183 = scmp.eq.s32.totalorder %s80, 0
      %p184 = por %p182, %p183
      %p185 = scmp.ne.s32.totalorder %s177, %s179
      %p186 = scmp.eq.s32.totalorder %s85, 1
      %p187 = por %p185, %p186
      %p188 = scmp.ne.s32.totalorder %s179, %s180
      %p189 = scmp.eq.s32.totalorder %s85, 0
      %p190 = por %p188, %p189
      %p191 = scmp.ne.s32.totalorder %s179, %s180
      %p192 = scmp.eq.s32.totalorder %s86, 1
      %p193 = por %p191, %p192
      %p195 = scmp.ne.s32.totalorder %s180, %s194
      %p196 = scmp.eq.s32.totalorder %s86, 0
      %p197 = por %p195, %p196
      %s199 = sadd.s32 %s198, 1
      %p202 = scmp.eq.s32.totalorder %s80, 1
      %p203 = scmp.ne.s32.totalorder %s198, %s200
      %p204 = scmp.eq.s32.totalorder %s80, 0
      %p205 = por %p203, %p204
      %p206 = scmp.ne.s32.totalorder %s198, %s200
      %p207 = scmp.eq.s32.totalorder %s85, 1
      %p208 = por %p206, %p207
      %p209 = scmp.ne.s32.totalorder %s200, %s201
      %p210 = scmp.eq.s32.totalorder %s85, 0
      %p211 = por %p209, %p210
      %p212 = scmp.ne.s32.totalorder %s200, %s201
      %p213 = scmp.eq.s32.totalorder %s86, 1
      %p214 = por %p212, %p213
      %p216 = scmp.ne.s32.totalorder %s201, %s215
      %p217 = scmp.eq.s32.totalorder %s86, 0
      %p218 = por %p216, %p217
      %s220 = sadd.s32 %s219, 1
      %p223 = scmp.eq.s32.totalorder %s80, 1
      %p224 = scmp.ne.s32.totalorder %s219, %s221
      %p225 = scmp.eq.s32.totalorder %s80, 0
      %p226 = por %p224, %p225
      %p227 = scmp.ne.s32.totalorder %s219, %s221
      %p228 = scmp.eq.s32.totalorder %s85, 1
      %p229 = por %p227, %p228
      %p230 = scmp.ne.s32.totalorder %s221, %s222
      %p231 = scmp.eq.s32.totalorder %s85, 0
      %p232 = por %p230, %p231
      %p233 = scmp.ne.s32.totalorder %s221, %s222
      %p234 = scmp.eq.s32.totalorder %s86, 1
      %p235 = por %p233, %p234
      %p237 = scmp.ne.s32.totalorder %s222, %s236
      %p238 = scmp.eq.s32.totalorder %s86, 0
      %p239 = por %p237, %p238
      %s241 = sadd.s32 %s240, 1
      %p244 = scmp.eq.s32.totalorder %s80, 1
      %p245 = scmp.ne.s32.totalorder %s240, %s242
      %p246 = scmp.eq.s32.totalorder %s80, 0
      %p247 = por %p245, %p246
      %p248 = scmp.ne.s32.totalorder %s240, %s242
      %p249 = scmp.eq.s32.totalorder %s85, 1
      %p250 = por %p248, %p249
      %p251 = scmp.ne.s32.totalorder %s242, %s243
      %p252 = scmp.eq.s32.totalorder %s85, 0
      %p253 = por %p251, %p252
      %p254 = scmp.ne.s32.totalorder %s242, %s243
      %p255 = scmp.eq.s32.totalorder %s86, 1
      %p256 = por %p254, %p255
      %p258 = scmp.ne.s32.totalorder %s243, %s257
      %p259 = scmp.eq.s32.totalorder %s86, 0
      %p260 = por %p258, %p259
      %s262 = sadd.s32 %s261, 1
      %p265 = scmp.eq.s32.totalorder %s80, 1
      %p266 = scmp.ne.s32.totalorder %s261, %s263
      %p267 = scmp.eq.s32.totalorder %s80, 0
      %p268 = por %p266, %p267
      %p269 = scmp.ne.s32.totalorder %s261, %s263
      %p270 = scmp.eq.s32.totalorder %s85, 1
      %p271 = por %p269, %p270
      %p272 = scmp.ne.s32.totalorder %s263, %s264
      %p273 = scmp.eq.s32.totalorder %s85, 0
      %p274 = por %p272, %p273
      %p275 = scmp.ne.s32.totalorder %s263, %s264
      %p276 = scmp.eq.s32.totalorder %s86, 1
      %p277 = por %p275, %p276
      %p279 = scmp.ne.s32.totalorder %s264, %s278
      %p280 = scmp.eq.s32.totalorder %s86, 0
      %p281 = por %p279, %p280
      %s283 = sadd.s32 %s282, 1
      %p286 = scmp.eq.s32.totalorder %s80, 1
      %p287 = scmp.ne.s32.totalorder %s282, %s284
      %p288 = scmp.eq.s32.totalorder %s80, 0
      %p289 = por %p287, %p288
      %p290 = scmp.ne.s32.totalorder %s282, %s284
      %p291 = scmp.eq.s32.totalorder %s85, 1
      %p292 = por %p290, %p291
      %p293 = scmp.ne.s32.totalorder %s284, %s285
      %p294 = scmp.eq.s32.totalorder %s85, 0
      %p295 = por %p293, %p294
      %p296 = scmp.ne.s32.totalorder %s284, %s285
      %p297 = scmp.eq.s32.totalorder %s86, 1
      %p298 = por %p296, %p297
      %p300 = scmp.ne.s32.totalorder %s285, %s299
      %p301 = scmp.eq.s32.totalorder %s86, 0
      %p302 = por %p300, %p301
      %s304 = sadd.s32 %s303, 1
      %p307 = scmp.eq.s32.totalorder %s80, 1
      %p308 = scmp.ne.s32.totalorder %s303, %s305
      %p309 = scmp.eq.s32.totalorder %s80, 0
      %p310 = por %p308, %p309
      %p311 = scmp.ne.s32.totalorder %s303, %s305
      %p312 = scmp.eq.s32.totalorder %s85, 1
      %p313 = por %p311, %p312
      %p314 = scmp.ne.s32.totalorder %s305, %s306
      %p315 = scmp.eq.s32.totalorder %s85, 0
      %p316 = por %p314, %p315
      %p317 = scmp.ne.s32.totalorder %s305, %s306
      %p318 = scmp.eq.s32.totalorder %s86, 1
      %p319 = por %p317, %p318
      %p321 = scmp.ne.s32.totalorder %s306, %s320
      %p322 = scmp.eq.s32.totalorder %s86, 0
      %p323 = por %p321, %p322
      %s325 = sadd.s32 %s324, 1
      %p328 = scmp.eq.s32.totalorder %s80, 1
      %p329 = scmp.ne.s32.totalorder %s324, %s326
      %p330 = scmp.eq.s32.totalorder %s80, 0
      %p331 = por %p329, %p330
      %p332 = scmp.ne.s32.totalorder %s324, %s326
      %p333 = scmp.eq.s32.totalorder %s85, 1
      %p334 = por %p332, %p333
      %p335 = scmp.ne.s32.totalorder %s326, %s327
      %p336 = scmp.eq.s32.totalorder %s85, 0
      %p337 = por %p335, %p336
      %p338 = scmp.ne.s32.totalorder %s326, %s327
      %p339 = scmp.eq.s32.totalorder %s86, 1
      %p340 = por %p338, %p339
      %p342 = scmp.ne.s32.totalorder %s327, %s341
      %p343 = scmp.eq.s32.totalorder %s86, 0
      %p344 = por %p342, %p343
      %s346 = sadd.s32 %s345, 1
      %p349 = scmp.eq.s32.totalorder %s80, 1
      %p350 = scmp.ne.s32.totalorder %s345, %s347
      %p351 = scmp.eq.s32.totalorder %s80, 0
      %p352 = por %p350, %p351
      %p353 = scmp.ne.s32.totalorder %s345, %s347
      %p354 = scmp.eq.s32.totalorder %s85, 1
      %p355 = por %p353, %p354
      %p356 = scmp.ne.s32.totalorder %s347, %s348
      %p357 = scmp.eq.s32.totalorder %s85, 0
      %p358 = por %p356, %p357
      %p359 = scmp.ne.s32.totalorder %s347, %s348
      %p360 = scmp.eq.s32.totalorder %s86, 1
      %p361 = por %p359, %p360
      %p363 = scmp.ne.s32.totalorder %s348, %s362
      %p364 = scmp.eq.s32.totalorder %s86, 0
      %p365 = por %p363, %p364
      %s367 = sadd.s32 %s366, 1
      %p370 = scmp.eq.s32.totalorder %s80, 1
      %p371 = scmp.ne.s32.totalorder %s366, %s368
      %p372 = scmp.eq.s32.totalorder %s80, 0
      %p373 = por %p371, %p372
      %p374 = scmp.ne.s32.totalorder %s366, %s368
      %p375 = scmp.eq.s32.totalorder %s85, 1
      %p376 = por %p374, %p375
      %p377 = scmp.ne.s32.totalorder %s368, %s369
      %p378 = scmp.eq.s32.totalorder %s85, 0
      %p379 = por %p377, %p378
      %p380 = scmp.ne.s32.totalorder %s368, %s369
      %p381 = scmp.eq.s32.totalorder %s86, 1
      %p382 = por %p380, %p381
      %p384 = scmp.ne.s32.totalorder %s369, %s383
      %p385 = scmp.eq.s32.totalorder %s86, 0
      %p386 = por %p384, %p385
      %s388 = sadd.s32 %s387, 1
      %p391 = scmp.eq.s32.totalorder %s80, 1
      %p392 = scmp.ne.s32.totalorder %s387, %s389
      %p393 = scmp.eq.s32.totalorder %s80, 0
      %p394 = por %p392, %p393
      %p395 = scmp.ne.s32.totalorder %s387, %s389
      %p396 = scmp.eq.s32.totalorder %s85, 1
      %p397 = por %p395, %p396
      %p398 = scmp.ne.s32.totalorder %s389, %s390
      %p399 = scmp.eq.s32.totalorder %s85, 0
      %p400 = por %p398, %p399
      %p401 = scmp.ne.s32.totalorder %s389, %s390
      %p402 = scmp.eq.s32.totalorder %s86, 1
      %p403 = por %p401, %p402
      %p405 = scmp.ne.s32.totalorder %s390, %s404
      %p406 = scmp.eq.s32.totalorder %s86, 0
      %p407 = por %p405, %p406
      %s409 = sadd.s32 %s408, 1
      %p412 = scmp.eq.s32.totalorder %s80, 1
      %p413 = scmp.ne.s32.totalorder %s408, %s410
      %p414 = scmp.eq.s32.totalorder %s80, 0
      %p415 = por %p413, %p414
      %p416 = scmp.ne.s32.totalorder %s408, %s410
      %p417 = scmp.eq.s32.totalorder %s85, 1
      %p418 = por %p416, %p417
      %p419 = scmp.ne.s32.totalorder %s410, %s411
      %p420 = scmp.eq.s32.totalorder %s85, 0
      %p421 = por %p419, %p420
      %p422 = scmp.ne.s32.totalorder %s410, %s411
      %p423 = scmp.eq.s32.totalorder %s86, 1
      %p424 = por %p422, %p423
      %p426 = scmp.ne.s32.totalorder %s411, %s425
      %p427 = scmp.eq.s32.totalorder %s86, 0
      %p428 = por %p426, %p427
      %s430 = sadd.s32 %s429, 1
      %p433 = scmp.eq.s32.totalorder %s80, 1
      %p434 = scmp.ne.s32.totalorder %s429, %s431
      %p435 = scmp.eq.s32.totalorder %s80, 0
      %p436 = por %p434, %p435
      %p437 = scmp.ne.s32.totalorder %s429, %s431
      %p438 = scmp.eq.s32.totalorder %s85, 1
      %p439 = por %p437, %p438
      %p440 = scmp.ne.s32.totalorder %s431, %s432
      %p441 = scmp.eq.s32.totalorder %s85, 0
      %p442 = por %p440, %p441
      %p443 = scmp.ne.s32.totalorder %s431, %s432
      %p444 = scmp.eq.s32.totalorder %s86, 1
      %p445 = por %p443, %p444
      %p447 = scmp.ne.s32.totalorder %s432, %s446
      %p448 = scmp.eq.s32.totalorder %s86, 0
      %p449 = por %p447, %p448
      %s451 = sadd.s32 %s450, 1
      %p454 = scmp.eq.s32.totalorder %s80, 1
      %p455 = scmp.ne.s32.totalorder %s450, %s452
      %p456 = scmp.eq.s32.totalorder %s80, 0
      %p457 = por %p455, %p456
      %p458 = scmp.ne.s32.totalorder %s450, %s452
      %p459 = scmp.eq.s32.totalorder %s85, 1
      %p460 = por %p458, %p459
      %p461 = scmp.ne.s32.totalorder %s452, %s453
      %p462 = scmp.eq.s32.totalorder %s85, 0
      %p463 = por %p461, %p462
      %p464 = scmp.ne.s32.totalorder %s452, %s453
      %p465 = scmp.eq.s32.totalorder %s86, 1
      %p466 = por %p464, %p465
      %p468 = scmp.ne.s32.totalorder %s453, %s467
      %p469 = scmp.eq.s32.totalorder %s86, 0
      %p470 = por %p468, %p469
      %s472 = sadd.s32 %s471, 1
      %p475 = scmp.eq.s32.totalorder %s80, 1
      %p476 = scmp.ne.s32.totalorder %s471, %s473
      %p477 = scmp.eq.s32.totalorder %s80, 0
      %p478 = por %p476, %p477
      %p479 = scmp.ne.s32.totalorder %s471, %s473
      %p480 = scmp.eq.s32.totalorder %s85, 1
      %p481 = por %p479, %p480
      %p482 = scmp.ne.s32.totalorder %s473, %s474
      %p483 = scmp.eq.s32.totalorder %s85, 0
      %p484 = por %p482, %p483
      %p485 = scmp.ne.s32.totalorder %s473, %s474
      %p486 = scmp.eq.s32.totalorder %s86, 1
      %p487 = por %p485, %p486
      %p489 = scmp.ne.s32.totalorder %s474, %s488
      %p490 = scmp.eq.s32.totalorder %s86, 0
      %p491 = por %p489, %p490
      %s493 = sadd.s32 %s492, 1
      %p496 = scmp.eq.s32.totalorder %s80, 1
      %p497 = scmp.ne.s32.totalorder %s492, %s494
      %p498 = scmp.eq.s32.totalorder %s80, 0
      %p499 = por %p497, %p498
      %p500 = scmp.ne.s32.totalorder %s492, %s494
      %p501 = scmp.eq.s32.totalorder %s85, 1
      %p502 = por %p500, %p501
      %p503 = scmp.ne.s32.totalorder %s494, %s495
      %p504 = scmp.eq.s32.totalorder %s85, 0
      %p505 = por %p503, %p504
      %p506 = scmp.ne.s32.totalorder %s494, %s495
      %p507 = scmp.eq.s32.totalorder %s86, 1
      %p508 = por %p506, %p507
      %p510 = scmp.ne.s32.totalorder %s495, %s509
      %p511 = scmp.eq.s32.totalorder %s86, 0
      %p512 = por %p510, %p511
      %s514 = sadd.s32 %s513, 1
      %p517 = scmp.eq.s32.totalorder %s80, 1
      %p518 = scmp.ne.s32.totalorder %s513, %s515
      %p519 = scmp.eq.s32.totalorder %s80, 0
      %p520 = por %p518, %p519
      %p521 = scmp.ne.s32.totalorder %s513, %s515
      %p522 = scmp.eq.s32.totalorder %s85, 1
      %p523 = por %p521, %p522
      %p524 = scmp.ne.s32.totalorder %s515, %s516
      %p525 = scmp.eq.s32.totalorder %s85, 0
      %p526 = por %p524, %p525
      %p527 = scmp.ne.s32.totalorder %s515, %s516
      %p528 = scmp.eq.s32.totalorder %s86, 1
      %p529 = por %p527, %p528
      %p531 = scmp.ne.s32.totalorder %s516, %s530
      %p532 = scmp.eq.s32.totalorder %s86, 0
      %p533 = por %p531, %p532
      %s535 = sadd.s32 %s534, 1
      %p538 = scmp.eq.s32.totalorder %s80, 1
      %p539 = scmp.ne.s32.totalorder %s534, %s536
      %p540 = scmp.eq.s32.totalorder %s80, 0
      %p541 = por %p539, %p540
      %p542 = scmp.ne.s32.totalorder %s534, %s536
      %p543 = scmp.eq.s32.totalorder %s85, 1
      %p544 = por %p542, %p543
      %p545 = scmp.ne.s32.totalorder %s536, %s537
      %p546 = scmp.eq.s32.totalorder %s85, 0
      %p547 = por %p545, %p546
      %p548 = scmp.ne.s32.totalorder %s536, %s537
      %p549 = scmp.eq.s32.totalorder %s86, 1
      %p550 = por %p548, %p549
      %p552 = scmp.ne.s32.totalorder %s537, %s551
      %p553 = scmp.eq.s32.totalorder %s86, 0
      %p554 = por %p552, %p553
      %s556 = sadd.s32 %s555, 1
      %p559 = scmp.eq.s32.totalorder %s80, 1
      %p560 = scmp.ne.s32.totalorder %s555, %s557
      %p561 = scmp.eq.s32.totalorder %s80, 0
      %p562 = por %p560, %p561
      %p563 = scmp.ne.s32.totalorder %s555, %s557
      %p564 = scmp.eq.s32.totalorder %s85, 1
      %p565 = por %p563, %p564
      %p566 = scmp.ne.s32.totalorder %s557, %s558
      %p567 = scmp.eq.s32.totalorder %s85, 0
      %p568 = por %p566, %p567
      %p569 = scmp.ne.s32.totalorder %s557, %s558
      %p570 = scmp.eq.s32.totalorder %s86, 1
      %p571 = por %p569, %p570
      %p573 = scmp.ne.s32.totalorder %s558, %s572
      %p574 = scmp.eq.s32.totalorder %s86, 0
      %p575 = por %p573, %p574
      %s577 = sadd.s32 %s576, 1
      %p580 = scmp.eq.s32.totalorder %s80, 1
      %p581 = scmp.ne.s32.totalorder %s576, %s578
      %p582 = scmp.eq.s32.totalorder %s80, 0
      %p583 = por %p581, %p582
      %p584 = scmp.ne.s32.totalorder %s576, %s578
      %p585 = scmp.eq.s32.totalorder %s85, 1
      %p586 = por %p584, %p585
      %p587 = scmp.ne.s32.totalorder %s578, %s579
      %p588 = scmp.eq.s32.totalorder %s85, 0
      %p589 = por %p587, %p588
      %p590 = scmp.ne.s32.totalorder %s578, %s579
      %p591 = scmp.eq.s32.totalorder %s86, 1
      %p592 = por %p590, %p591
      %p594 = scmp.ne.s32.totalorder %s579, %s593
      %p595 = scmp.eq.s32.totalorder %s86, 0
      %p596 = por %p594, %p595
      %s598 = sadd.s32 %s597, 1
      %p601 = scmp.eq.s32.totalorder %s80, 1
      %p602 = scmp.ne.s32.totalorder %s597, %s599
      %p603 = scmp.eq.s32.totalorder %s80, 0
      %p604 = por %p602, %p603
      %p605 = scmp.ne.s32.totalorder %s597, %s599
      %p606 = scmp.eq.s32.totalorder %s85, 1
      %p607 = por %p605, %p606
      %p608 = scmp.ne.s32.totalorder %s599, %s600
      %p609 = scmp.eq.s32.totalorder %s85, 0
      %p610 = por %p608, %p609
      %p611 = scmp.ne.s32.totalorder %s599, %s600
      %p612 = scmp.eq.s32.totalorder %s86, 1
      %p613 = por %p611, %p612
      %p615 = scmp.ne.s32.totalorder %s600, %s614
      %p616 = scmp.eq.s32.totalorder %s86, 0
      %p617 = por %p615, %p616
      %s619 = sadd.s32 %s618, 1
      %p622 = scmp.eq.s32.totalorder %s80, 1
      %p623 = scmp.ne.s32.totalorder %s618, %s620
      %p624 = scmp.eq.s32.totalorder %s80, 0
      %p625 = por %p623, %p624
      %p626 = scmp.ne.s32.totalorder %s618, %s620
      %p627 = scmp.eq.s32.totalorder %s85, 1
      %p628 = por %p626, %p627
      %p629 = scmp.ne.s32.totalorder %s620, %s621
      %p630 = scmp.eq.s32.totalorder %s85, 0
      %p631 = por %p629, %p630
      %p632 = scmp.ne.s32.totalorder %s620, %s621
      %p633 = scmp.eq.s32.totalorder %s86, 1
      %p634 = por %p632, %p633
      %p636 = scmp.ne.s32.totalorder %s621, %s635
      %p637 = scmp.eq.s32.totalorder %s86, 0
      %p638 = por %p636, %p637
      %s640 = sadd.s32 %s639, 1
      %p643 = scmp.eq.s32.totalorder %s80, 1
      %p644 = scmp.ne.s32.totalorder %s639, %s641
      %p645 = scmp.eq.s32.totalorder %s80, 0
      %p646 = por %p644, %p645
      %p647 = scmp.ne.s32.totalorder %s639, %s641
      %p648 = scmp.eq.s32.totalorder %s85, 1
      %p649 = por %p647, %p648
      %p650 = scmp.ne.s32.totalorder %s641, %s642
      %p651 = scmp.eq.s32.totalorder %s85, 0
      %p652 = por %p650, %p651
      %p653 = scmp.ne.s32.totalorder %s641, %s642
      %p654 = scmp.eq.s32.totalorder %s86, 1
      %p655 = por %p653, %p654
      %p657 = scmp.ne.s32.totalorder %s642, %s656
      %p658 = scmp.eq.s32.totalorder %s86, 0
      %p659 = por %p657, %p658
      %s661 = sadd.s32 %s660, 1
      %p664 = scmp.eq.s32.totalorder %s80, 1
      %p665 = scmp.ne.s32.totalorder %s660, %s662
      %p666 = scmp.eq.s32.totalorder %s80, 0
      %p667 = por %p665, %p666
      %p668 = scmp.ne.s32.totalorder %s660, %s662
      %p669 = scmp.eq.s32.totalorder %s85, 1
      %p670 = por %p668, %p669
      %p671 = scmp.ne.s32.totalorder %s662, %s663
      %p672 = scmp.eq.s32.totalorder %s85, 0
      %p673 = por %p671, %p672
      %p674 = scmp.ne.s32.totalorder %s662, %s663
      %p675 = scmp.eq.s32.totalorder %s86, 1
      %p676 = por %p674, %p675
      %p678 = scmp.ne.s32.totalorder %s663, %s677
      %p679 = scmp.eq.s32.totalorder %s86, 0
      %p680 = por %p678, %p679
      %s682 = sadd.s32 %s681, 1
      %p685 = scmp.eq.s32.totalorder %s80, 1
      %p686 = scmp.ne.s32.totalorder %s681, %s683
      %p687 = scmp.eq.s32.totalorder %s80, 0
      %p688 = por %p686, %p687
      %p689 = scmp.ne.s32.totalorder %s681, %s683
      %p690 = scmp.eq.s32.totalorder %s85, 1
      %p691 = por %p689, %p690
      %p692 = scmp.ne.s32.totalorder %s683, %s684
      %p693 = scmp.eq.s32.totalorder %s85, 0
      %p694 = por %p692, %p693
      %p695 = scmp.ne.s32.totalorder %s683, %s684
      %p696 = scmp.eq.s32.totalorder %s86, 1
      %p697 = por %p695, %p696
      %p699 = scmp.ne.s32.totalorder %s684, %s698
      %p700 = scmp.eq.s32.totalorder %s86, 0
      %p701 = por %p699, %p700
      %s703 = sadd.s32 %s702, 1
      %p706 = scmp.eq.s32.totalorder %s80, 1
      %p707 = scmp.ne.s32.totalorder %s702, %s704
      %p708 = scmp.eq.s32.totalorder %s80, 0
      %p709 = por %p707, %p708
      %p710 = scmp.ne.s32.totalorder %s702, %s704
      %p711 = scmp.eq.s32.totalorder %s85, 1
      %p712 = por %p710, %p711
      %p713 = scmp.ne.s32.totalorder %s704, %s705
      %p714 = scmp.eq.s32.totalorder %s85, 0
      %p715 = por %p713, %p714
      %p716 = scmp.ne.s32.totalorder %s704, %s705
      %p717 = scmp.eq.s32.totalorder %s86, 1
      %p718 = por %p716, %p717
      %p720 = scmp.ne.s32.totalorder %s705, %s719
      %p721 = scmp.eq.s32.totalorder %s86, 0
      %p722 = por %p720, %p721
      %s724 = sadd.s32 %s723, 1
      %p727 = scmp.eq.s32.totalorder %s80, 1
      %p728 = scmp.ne.s32.totalorder %s723, %s725
      %p729 = scmp.eq.s32.totalorder %s80, 0
      %p730 = por %p728, %p729
      %p731 = scmp.ne.s32.totalorder %s723, %s725
      %p732 = scmp.eq.s32.totalorder %s85, 1
      %p733 = por %p731, %p732
      %p734 = scmp.ne.s32.totalorder %s725, %s726
      %p735 = scmp.eq.s32.totalorder %s85, 0
      %p736 = por %p734, %p735
      %p737 = scmp.ne.s32.totalorder %s725, %s726
      %p738 = scmp.eq.s32.totalorder %s86, 1
      %p739 = por %p737, %p738
      %p741 = scmp.ne.s32.totalorder %s726, %s740
      %p742 = scmp.eq.s32.totalorder %s86, 0
      %p743 = por %p741, %p742
      %s745 = sadd.s32 %s744, 1
      %p748 = scmp.eq.s32.totalorder %s80, 1
      %p749 = scmp.ne.s32.totalorder %s744, %s746
      %p750 = scmp.eq.s32.totalorder %s80, 0
      %p751 = por %p749, %p750
      %p752 = scmp.ne.s32.totalorder %s744, %s746
      %p753 = scmp.eq.s32.totalorder %s85, 1
      %p754 = por %p752, %p753
      %p755 = scmp.ne.s32.totalorder %s746, %s747
      %p756 = scmp.eq.s32.totalorder %s85, 0
      %p757 = por %p755, %p756
      %p758 = scmp.ne.s32.totalorder %s746, %s747
      %p759 = scmp.eq.s32.totalorder %s86, 1
      %p760 = por %p758, %p759
      %p762 = scmp.ne.s32.totalorder %s747, %s761
      %p763 = scmp.eq.s32.totalorder %s86, 0
      %p764 = por %p762, %p763
      %s766 = sadd.s32 %s765, 1
      %p769 = scmp.eq.s32.totalorder %s80, 1
      %p770 = scmp.ne.s32.totalorder %s765, %s767
      %p771 = scmp.eq.s32.totalorder %s80, 0
      %p772 = por %p770, %p771
      %p773 = scmp.ne.s32.totalorder %s765, %s767
      %p774 = scmp.eq.s32.totalorder %s85, 1
      %p775 = por %p773, %p774
      %p776 = scmp.ne.s32.totalorder %s767, %s768
      %p777 = scmp.eq.s32.totalorder %s85, 0
      %p778 = por %p776, %p777
      %p779 = scmp.ne.s32.totalorder %s767, %s768
      %p780 = scmp.eq.s32.totalorder %s86, 1
      %p781 = por %p779, %p780
      %p783 = scmp.ne.s32.totalorder %s768, %s782
      %p784 = scmp.eq.s32.totalorder %s86, 0
      %p785 = por %p783, %p784
      %s787 = sadd.s32 %s786, 1
      %p790 = scmp.eq.s32.totalorder %s80, 1
      %p791 = scmp.ne.s32.totalorder %s786, %s788
      %p792 = scmp.eq.s32.totalorder %s80, 0
      %p793 = por %p791, %p792
      %p794 = scmp.ne.s32.totalorder %s786, %s788
      %p795 = scmp.eq.s32.totalorder %s85, 1
      %p796 = por %p794, %p795
      %p797 = scmp.ne.s32.totalorder %s788, %s789
      %p798 = scmp.eq.s32.totalorder %s85, 0
      %p799 = por %p797, %p798
      %p800 = scmp.ne.s32.totalorder %s788, %s789
      %p801 = scmp.eq.s32.totalorder %s86, 1
      %p802 = por %p800, %p801
      %p804 = scmp.ne.s32.totalorder %s789, %s803
      %p805 = scmp.eq.s32.totalorder %s86, 0
      %p806 = por %p804, %p805
      %s808 = sadd.s32 %s807, 1
      %p811 = scmp.eq.s32.totalorder %s80, 1
      %p812 = scmp.ne.s32.totalorder %s807, %s809
      %p813 = scmp.eq.s32.totalorder %s80, 0
      %p814 = por %p812, %p813
      %p815 = scmp.ne.s32.totalorder %s807, %s809
      %p816 = scmp.eq.s32.totalorder %s85, 1
      %p817 = por %p815, %p816
      %p818 = scmp.ne.s32.totalorder %s809, %s810
      %p819 = scmp.eq.s32.totalorder %s85, 0
      %p820 = por %p818, %p819
      %p821 = scmp.ne.s32.totalorder %s809, %s810
      %p822 = scmp.eq.s32.totalorder %s86, 1
      %p823 = por %p821, %p822
      %p825 = scmp.ne.s32.totalorder %s810, %s824
      %p826 = scmp.eq.s32.totalorder %s86, 0
      %p827 = por %p825, %p826
      %s828 = ssub.s32 %s80, %s87
      %p829 = scmp.eq.s32.totalorder %s828, 0
      %s831 = sadd.s32 %s830, 1
      %s832 = scalar_select %p829, %s830, %s831
      %p835 = pneg %p829
      %p836 = scmp.eq.s32.totalorder %s80, 1
      %p837 = por %p835, %p836
      %p838 = scmp.ne.s32.totalorder %s830, %s833
      %p839 = scmp.eq.s32.totalorder %s80, 0
      %p840 = por %p838, %p839
      %p841 = scmp.ne.s32.totalorder %s830, %s833
      %p842 = scmp.eq.s32.totalorder %s85, 1
      %p843 = por %p841, %p842
      %p844 = scmp.ne.s32.totalorder %s833, %s834
      %p845 = scmp.eq.s32.totalorder %s85, 0
      %p846 = por %p844, %p845
      %p847 = scmp.ne.s32.totalorder %s833, %s834
      %p848 = scmp.eq.s32.totalorder %s86, 1
      %p849 = por %p847, %p848
      %p851 = scmp.ne.s32.totalorder %s834, %s850
      %p852 = scmp.eq.s32.totalorder %s86, 0
      %p853 = por %p851, %p852
      %p854 = scmp.le.s32.totalorder 1, %s80
      %p855 = scmp.lt.s32.totalorder %s80, 3
      %p856 = pnand %p854, %p855
      %p857 = pneg %p856
      // Predicated region
      $region9: #{bridge_forward.1} parent=5 // pred_check
        _
      $region10: #{bridge_forward.1} parent=5 // pred_check_branch
        %859 = sbr.rel (%p856) target = $region12
      $region11: #{bridge_forward.1} parent=5 // pred_region
        %s860 = ssub.s32 %s80, 1
        // Predicated region
        $region13: #{bridge_forward.1} parent=11 // pred_check
          %p861 = pneg %p127
        $region14: #{bridge_forward.1} parent=11 // pred_check_branch
          %863 = sbr.rel (%p861) target = $region16
        $region15: #{bridge_forward.1} parent=11 // pred_region
          _
        $region16: #{bridge_forward.1} parent=11 // pred_fallthru
          _
        // Predicated region
        $region17: #{bridge_forward.1} parent=11 // pred_check
          %p864 = pneg %p148
        $region18: #{bridge_forward.1} parent=11 // pred_check_branch
          %866 = sbr.rel (%p864) target = $region20
        $region19: #{bridge_forward.1} parent=11 // pred_region
          _
        $region20: #{bridge_forward.1} parent=11 // pred_fallthru
          _
        // Predicated region
        $region21: #{bridge_forward.1} parent=11 // pred_check
          %p867 = pneg %p169
        $region22: #{bridge_forward.1} parent=11 // pred_check_branch
          %869 = sbr.rel (%p867) target = $region24
        $region23: #{bridge_forward.1} parent=11 // pred_region
          _
        $region24: #{bridge_forward.1} parent=11 // pred_fallthru
          _
        // Predicated region
        $region25: #{bridge_forward.1} parent=11 // pred_check
          %p870 = pneg %p190
        $region26: #{bridge_forward.1} parent=11 // pred_check_branch
          %872 = sbr.rel (%p870) target = $region28
        $region27: #{bridge_forward.1} parent=11 // pred_region
          _
        $region28: #{bridge_forward.1} parent=11 // pred_fallthru
          _
        // Predicated region
        $region29: #{bridge_forward.1} parent=11 // pred_check
          %p873 = pneg %p211
        $region30: #{bridge_forward.1} parent=11 // pred_check_branch
          %875 = sbr.rel (%p873) target = $region32
        $region31: #{bridge_forward.1} parent=11 // pred_region
          _
        $region32: #{bridge_forward.1} parent=11 // pred_fallthru
          _
        // Predicated region
        $region33: #{bridge_forward.1} parent=11 // pred_check
          %p876 = pneg %p232
        $region34: #{bridge_forward.1} parent=11 // pred_check_branch
          %878 = sbr.rel (%p876) target = $region36
        $region35: #{bridge_forward.1} parent=11 // pred_region
          _
        $region36: #{bridge_forward.1} parent=11 // pred_fallthru
          _
        // Predicated region
        $region37: #{bridge_forward.1} parent=11 // pred_check
          %p879 = pneg %p253
        $region38: #{bridge_forward.1} parent=11 // pred_check_branch
          %881 = sbr.rel (%p879) target = $region40
        $region39: #{bridge_forward.1} parent=11 // pred_region
          _
        $region40: #{bridge_forward.1} parent=11 // pred_fallthru
          _
        // Predicated region
        $region41: #{bridge_forward.1} parent=11 // pred_check
          %p882 = pneg %p274
        $region42: #{bridge_forward.1} parent=11 // pred_check_branch
          %884 = sbr.rel (%p882) target = $region44
        $region43: #{bridge_forward.1} parent=11 // pred_region
          _
        $region44: #{bridge_forward.1} parent=11 // pred_fallthru
          _
        // Predicated region
        $region45: #{bridge_forward.1} parent=11 // pred_check
          %p885 = pneg %p295
        $region46: #{bridge_forward.1} parent=11 // pred_check_branch
          %887 = sbr.rel (%p885) target = $region48
        $region47: #{bridge_forward.1} parent=11 // pred_region
          _
        $region48: #{bridge_forward.1} parent=11 // pred_fallthru
          _
        // Predicated region
        $region49: #{bridge_forward.1} parent=11 // pred_check
          %p888 = pneg %p316
        $region50: #{bridge_forward.1} parent=11 // pred_check_branch
          %890 = sbr.rel (%p888) target = $region52
        $region51: #{bridge_forward.1} parent=11 // pred_region
          _
        $region52: #{bridge_forward.1} parent=11 // pred_fallthru
          _
        // Predicated region
        $region53: #{bridge_forward.1} parent=11 // pred_check
          %p891 = pneg %p337
        $region54: #{bridge_forward.1} parent=11 // pred_check_branch
          %893 = sbr.rel (%p891) target = $region56
        $region55: #{bridge_forward.1} parent=11 // pred_region
          _
        $region56: #{bridge_forward.1} parent=11 // pred_fallthru
          _
        // Predicated region
        $region57: #{bridge_forward.1} parent=11 // pred_check
          %p894 = pneg %p358
        $region58: #{bridge_forward.1} parent=11 // pred_check_branch
          %896 = sbr.rel (%p894) target = $region60
        $region59: #{bridge_forward.1} parent=11 // pred_region
          _
        $region60: #{bridge_forward.1} parent=11 // pred_fallthru
          _
        // Predicated region
        $region61: #{bridge_forward.1} parent=11 // pred_check
          %p897 = pneg %p379
        $region62: #{bridge_forward.1} parent=11 // pred_check_branch
          %899 = sbr.rel (%p897) target = $region64
        $region63: #{bridge_forward.1} parent=11 // pred_region
          _
        $region64: #{bridge_forward.1} parent=11 // pred_fallthru
          _
        // Predicated region
        $region65: #{bridge_forward.1} parent=11 // pred_check
          %p900 = pneg %p400
        $region66: #{bridge_forward.1} parent=11 // pred_check_branch
          %902 = sbr.rel (%p900) target = $region68
        $region67: #{bridge_forward.1} parent=11 // pred_region
          _
        $region68: #{bridge_forward.1} parent=11 // pred_fallthru
          _
        // Predicated region
        $region69: #{bridge_forward.1} parent=11 // pred_check
          %p903 = pneg %p421
        $region70: #{bridge_forward.1} parent=11 // pred_check_branch
          %905 = sbr.rel (%p903) target = $region72
        $region71: #{bridge_forward.1} parent=11 // pred_region
          _
        $region72: #{bridge_forward.1} parent=11 // pred_fallthru
          _
        // Predicated region
        $region73: #{bridge_forward.1} parent=11 // pred_check
          %p906 = pneg %p442
        $region74: #{bridge_forward.1} parent=11 // pred_check_branch
          %908 = sbr.rel (%p906) target = $region76
        $region75: #{bridge_forward.1} parent=11 // pred_region
          _
        $region76: #{bridge_forward.1} parent=11 // pred_fallthru
          _
        // Predicated region
        $region77: #{bridge_forward.1} parent=11 // pred_check
          %p909 = pneg %p463
        $region78: #{bridge_forward.1} parent=11 // pred_check_branch
          %911 = sbr.rel (%p909) target = $region80
        $region79: #{bridge_forward.1} parent=11 // pred_region
          _
        $region80: #{bridge_forward.1} parent=11 // pred_fallthru
          _
        // Predicated region
        $region81: #{bridge_forward.1} parent=11 // pred_check
          %p912 = pneg %p484
        $region82: #{bridge_forward.1} parent=11 // pred_check_branch
          %914 = sbr.rel (%p912) target = $region84
        $region83: #{bridge_forward.1} parent=11 // pred_region
          _
        $region84: #{bridge_forward.1} parent=11 // pred_fallthru
          _
        // Predicated region
        $region85: #{bridge_forward.1} parent=11 // pred_check
          %p915 = pneg %p505
        $region86: #{bridge_forward.1} parent=11 // pred_check_branch
          %917 = sbr.rel (%p915) target = $region88
        $region87: #{bridge_forward.1} parent=11 // pred_region
          _
        $region88: #{bridge_forward.1} parent=11 // pred_fallthru
          _
        // Predicated region
        $region89: #{bridge_forward.1} parent=11 // pred_check
          %p918 = pneg %p526
        $region90: #{bridge_forward.1} parent=11 // pred_check_branch
          %920 = sbr.rel (%p918) target = $region92
        $region91: #{bridge_forward.1} parent=11 // pred_region
          _
        $region92: #{bridge_forward.1} parent=11 // pred_fallthru
          _
        // Predicated region
        $region93: #{bridge_forward.1} parent=11 // pred_check
          %p921 = pneg %p547
        $region94: #{bridge_forward.1} parent=11 // pred_check_branch
          %923 = sbr.rel (%p921) target = $region96
        $region95: #{bridge_forward.1} parent=11 // pred_region
          _
        $region96: #{bridge_forward.1} parent=11 // pred_fallthru
          _
        // Predicated region
        $region97: #{bridge_forward.1} parent=11 // pred_check
          %p924 = pneg %p568
        $region98: #{bridge_forward.1} parent=11 // pred_check_branch
          %926 = sbr.rel (%p924) target = $region100
        $region99: #{bridge_forward.1} parent=11 // pred_region
          _
        $region100: #{bridge_forward.1} parent=11 // pred_fallthru
          _
        // Predicated region
        $region101: #{bridge_forward.1} parent=11 // pred_check
          %p927 = pneg %p589
        $region102: #{bridge_forward.1} parent=11 // pred_check_branch
          %929 = sbr.rel (%p927) target = $region104
        $region103: #{bridge_forward.1} parent=11 // pred_region
          _
        $region104: #{bridge_forward.1} parent=11 // pred_fallthru
          _
        // Predicated region
        $region105: #{bridge_forward.1} parent=11 // pred_check
          %p930 = pneg %p610
        $region106: #{bridge_forward.1} parent=11 // pred_check_branch
          %932 = sbr.rel (%p930) target = $region108
        $region107: #{bridge_forward.1} parent=11 // pred_region
          _
        $region108: #{bridge_forward.1} parent=11 // pred_fallthru
          _
        // Predicated region
        $region109: #{bridge_forward.1} parent=11 // pred_check
          %p933 = pneg %p631
        $region110: #{bridge_forward.1} parent=11 // pred_check_branch
          %935 = sbr.rel (%p933) target = $region112
        $region111: #{bridge_forward.1} parent=11 // pred_region
          _
        $region112: #{bridge_forward.1} parent=11 // pred_fallthru
          _
        // Predicated region
        $region113: #{bridge_forward.1} parent=11 // pred_check
          %p936 = pneg %p652
        $region114: #{bridge_forward.1} parent=11 // pred_check_branch
          %938 = sbr.rel (%p936) target = $region116
        $region115: #{bridge_forward.1} parent=11 // pred_region
          _
        $region116: #{bridge_forward.1} parent=11 // pred_fallthru
          _
        // Predicated region
        $region117: #{bridge_forward.1} parent=11 // pred_check
          %p939 = pneg %p673
        $region118: #{bridge_forward.1} parent=11 // pred_check_branch
          %941 = sbr.rel (%p939) target = $region120
        $region119: #{bridge_forward.1} parent=11 // pred_region
          _
        $region120: #{bridge_forward.1} parent=11 // pred_fallthru
          _
        // Predicated region
        $region121: #{bridge_forward.1} parent=11 // pred_check
          %p942 = pneg %p694
        $region122: #{bridge_forward.1} parent=11 // pred_check_branch
          %944 = sbr.rel (%p942) target = $region124
        $region123: #{bridge_forward.1} parent=11 // pred_region
          _
        $region124: #{bridge_forward.1} parent=11 // pred_fallthru
          _
        // Predicated region
        $region125: #{bridge_forward.1} parent=11 // pred_check
          %p945 = pneg %p715
        $region126: #{bridge_forward.1} parent=11 // pred_check_branch
          %947 = sbr.rel (%p945) target = $region128
        $region127: #{bridge_forward.1} parent=11 // pred_region
          _
        $region128: #{bridge_forward.1} parent=11 // pred_fallthru
          _
        // Predicated region
        $region129: #{bridge_forward.1} parent=11 // pred_check
          %p948 = pneg %p736
        $region130: #{bridge_forward.1} parent=11 // pred_check_branch
          %950 = sbr.rel (%p948) target = $region132
        $region131: #{bridge_forward.1} parent=11 // pred_region
          _
        $region132: #{bridge_forward.1} parent=11 // pred_fallthru
          _
        // Predicated region
        $region133: #{bridge_forward.1} parent=11 // pred_check
          %p951 = pneg %p757
        $region134: #{bridge_forward.1} parent=11 // pred_check_branch
          %953 = sbr.rel (%p951) target = $region136
        $region135: #{bridge_forward.1} parent=11 // pred_region
          _
        $region136: #{bridge_forward.1} parent=11 // pred_fallthru
          _
        // Predicated region
        $region137: #{bridge_forward.1} parent=11 // pred_check
          %p954 = pneg %p778
        $region138: #{bridge_forward.1} parent=11 // pred_check_branch
          %956 = sbr.rel (%p954) target = $region140
        $region139: #{bridge_forward.1} parent=11 // pred_region
          _
        $region140: #{bridge_forward.1} parent=11 // pred_fallthru
          _
        // Predicated region
        $region141: #{bridge_forward.1} parent=11 // pred_check
          %p957 = pneg %p799
        $region142: #{bridge_forward.1} parent=11 // pred_check_branch
          %959 = sbr.rel (%p957) target = $region144
        $region143: #{bridge_forward.1} parent=11 // pred_region
          _
        $region144: #{bridge_forward.1} parent=11 // pred_fallthru
          _
        // Predicated region
        $region145: #{bridge_forward.1} parent=11 // pred_check
          %p960 = pneg %p820
        $region146: #{bridge_forward.1} parent=11 // pred_check_branch
          %962 = sbr.rel (%p960) target = $region148
        $region147: #{bridge_forward.1} parent=11 // pred_region
          _
        $region148: #{bridge_forward.1} parent=11 // pred_fallthru
          _
      $region12: #{bridge_forward.1} parent=5 // pred_fallthru
        _
      %p963 = scmp.lt.s32.totalorder %s80, 2
      // Predicated region
      $region149: #{bridge_forward.1} parent=5 // pred_check
        %p964 = pneg %p963
      $region150: #{bridge_forward.1} parent=5 // pred_check_branch
        %966 = sbr.rel (%p964) target = $region152
      $region151: #{bridge_forward.1} parent=5 // pred_region
        // Predicated region
        $region153: #{bridge_forward.1} parent=151 // pred_check
          %p967 = pneg %p100
        $region154: #{bridge_forward.1} parent=151 // pred_check_branch
          %969 = sbr.rel (%p967) target = $region156
        $region155: #{bridge_forward.1} parent=151 // pred_region
          %p970 = scmp.lt.s32.totalorder %s80, 1
          %s971 = scalar_select %p970, %s80, 1
          %s972 = smul.addr %s971, 8
          %s973 = smul.addr %s972, 8
          %s974 = scalar_lea.vmem %s1, %s973
        $region156: #{bridge_forward.1} parent=151 // pred_fallthru
          _
      $region152: #{bridge_forward.1} parent=5 // pred_fallthru
        _
      %p975 = scmp.le.s32.totalorder 1, %s80
      %p976 = scmp.lt.s32.totalorder %s80, 3
      %p977 = pnand %p975, %p976
      %p978 = pneg %p977
      // Predicated region
      $region157: #{bridge_forward.1} parent=5 // pred_check
        _
      $region158: #{bridge_forward.1} parent=5 // pred_check_branch
        %980 = sbr.rel (%p977) target = $region160
      $region159: #{bridge_forward.1} parent=5 // pred_region
        %s981 = ssub.s32 %s80, 1
        %p982 = scmp.lt.s32.totalorder %s85, 1
        %s983 = scalar_select %p982, %s85, 1
        %s984 = smul.addr %s983, 8
        %s985 = smul.addr %s984, 8
        %s986 = scalar_lea.vmem %s1, %s985
        %p987 = pneg %p106
        %p988 = pneg %p103
        %p989 = pneg %p127
        %p990 = pneg %p124
        %p991 = pneg %p148
        %p992 = pneg %p145
        %p993 = pneg %p169
        %p994 = pneg %p166
        %p995 = pneg %p190
        %p996 = pneg %p187
        %p997 = pneg %p211
        %p998 = pneg %p208
        %p999 = pneg %p232
        %p1000 = pneg %p229
        %p1001 = pneg %p253
        %p1002 = pneg %p250
        %p1003 = pneg %p274
        %p1004 = pneg %p271
        %p1005 = pneg %p295
        %p1006 = pneg %p292
        %p1007 = pneg %p316
        %p1008 = pneg %p313
        %p1009 = pneg %p337
        %p1010 = pneg %p334
        %p1011 = pneg %p358
        %p1012 = pneg %p355
        %p1013 = pneg %p379
        %p1014 = pneg %p376
        %p1015 = pneg %p400
        %p1016 = pneg %p397
        %p1017 = pneg %p421
        %p1018 = pneg %p418
        %p1019 = pneg %p442
        %p1020 = pneg %p439
        %p1021 = pneg %p463
        %p1022 = pneg %p460
        %p1023 = pneg %p484
        %p1024 = pneg %p481
        %p1025 = pneg %p505
        %p1026 = pneg %p502
        %p1027 = pneg %p526
        %p1028 = pneg %p523
        %p1029 = pneg %p547
        %p1030 = pneg %p544
        %p1031 = pneg %p568
        %p1032 = pneg %p565
        %p1033 = pneg %p589
        %p1034 = pneg %p586
        %p1035 = pneg %p610
        %p1036 = pneg %p607
        %p1037 = pneg %p631
        %p1038 = pneg %p628
        %p1039 = pneg %p652
        %p1040 = pneg %p649
        %p1041 = pneg %p673
        %p1042 = pneg %p670
        %p1043 = pneg %p694
        %p1044 = pneg %p691
        %p1045 = pneg %p715
        %p1046 = pneg %p712
        %p1047 = pneg %p736
        %p1048 = pneg %p733
        %p1049 = pneg %p757
        %p1050 = pneg %p754
        %p1051 = pneg %p778
        %p1052 = pneg %p775
        %p1053 = pneg %p799
        %p1054 = pneg %p796
        %p1055 = pneg %p820
        %p1056 = pneg %p817
        %p1057 = pneg %p846
        %p1058 = pneg %p843
        %s1059 = sand.u32 %s833, 1
        %s1060 = scalar_lea.sflag [#allocation4], %s1059
        %s1061 = sand.u32 %s833, 1
        %s1062 = smul.addr %s1061, 64
        %s1063 = scalar_lea.vmem [#allocation3], %s1062
        %p1064 = scmp.lt.s32.totalorder %s85, 1
        %s1065 = scalar_select %p1064, %s85, 1
        %s1066 = smul.addr %s1065, 8
        %s1067 = smul.addr %s1066, 8
        %s1068 = scalar_lea.vmem %s1, %s1067
        %v1070 = vld [vmem:[%s1068] sm:$0xff]
        %v1071 = vld [vmem:[%s1068 + $0x8] sm:$0xff]
        %v1072 = vld [vmem:[%s1068 + $0x10] sm:$0xff]
        %v1073 = vld [vmem:[%s1068 + $0x18] sm:$0xff]
        %v1074 = vld [vmem:[%s1068 + $0x20] sm:$0xff]
        %v1075 = vld [vmem:[%s1068 + $0x28] sm:$0xff]
        %v1076 = vld [vmem:[%s1068 + $0x30] sm:$0xff]
        %v1077 = vld [vmem:[%s1068 + $0x38] sm:$0xff]
        %v1078 = vld [vmem:[%s3] sm:$0x1]
        %v1080 = vlaneseq
        %v1081 = vshrl.u32 %v1080, 7
        %v1082 = vsub.s32 0, %v1081
        %v1083 = vrot.slane %v1078, %v1082
        %v1085 = vmul.f32 %v1070, %v1083
        %v1086 = vmul.f32 %v1071, %v1083
        %v1087 = vmul.f32 %v1072, %v1083
        %v1088 = vmul.f32 %v1073, %v1083
        %v1089 = vmul.f32 %v1074, %v1083
        %v1090 = vmul.f32 %v1075, %v1083
        %v1091 = vmul.f32 %v1076, %v1083
        %v1092 = vmul.f32 %v1077, %v1083
        %v1093 = vld [vmem:[%s5] sm:$0x1]
        %v1095 = vlaneseq
        %v1096 = vshrl.u32 %v1095, 7
        %v1097 = vsub.s32 0, %v1096
        %v1098 = vrot.slane %v1093, %v1097
        %v1100 = vadd.f32 %v1085, %v1098
        %v1101 = vadd.f32 %v1086, %v1098
        %v1102 = vadd.f32 %v1087, %v1098
        %v1103 = vadd.f32 %v1088, %v1098
        %v1104 = vadd.f32 %v1089, %v1098
        %v1105 = vadd.f32 %v1090, %v1098
        %v1106 = vadd.f32 %v1091, %v1098
        %v1107 = vadd.f32 %v1092, %v1098
        %v1108 = vmax.f32 %v1100, 0.0
        %v1109 = vmax.f32 %v1101, 0.0
        %v1110 = vmax.f32 %v1102, 0.0
        %v1111 = vmax.f32 %v1103, 0.0
        %v1112 = vmax.f32 %v1104, 0.0
        %v1113 = vmax.f32 %v1105, 0.0
        %v1114 = vmax.f32 %v1106, 0.0
        %v1115 = vmax.f32 %v1107, 0.0
        %v1116 = vld [vmem:[%s7] sm:$0xff]
        %v1117 = vld [vmem:[%s7 + $0x8] sm:$0xff]
        %v1118 = vld [vmem:[%s7 + $0x10] sm:$0xff]
        %v1119 = vld [vmem:[%s7 + $0x18] sm:$0xff]
        %v1120 = vpack.c.bf16 %v1109, %v1108
        %v1121 = vpack.c.bf16 %v1111, %v1110
        %v1122 = vpack.c.bf16 %v1113, %v1112
        %v1123 = vpack.c.bf16 %v1115, %v1114
        %v1124 = vpack.c.bf16 %v1117, %v1116
        %v1125 = vpack.c.bf16 %v1119, %v1118
        %vm1126 = vcmask 261120
        %v1128 = vsel %vm1126, %v1120, 0
        %v1131 = vsel %vm1126, %v1121, 0
        %v1134 = vsel %vm1126, %v1122, 0
        %v1137 = vsel %vm1126, %v1123, 0
        %1139 = vmatprep.subr.bf16.mxu0 0
        %1140 = vmatpush1.bf16.msra.mxu0 %v1124
        %1141 = vmatprep.subr.bf16.mxu0 0
        %1142 = vmatpush1.bf16.msra.mxu0 %v1125
        %1143 = vmatprep.subr.bf16.mxu0 0
        %1144 = vmatpush1.bf16.msra.mxu0 0
        %1145 = vmatprep.subr.bf16.mxu0 0
        %1146 = vmatpush1.bf16.msra.mxu0 0
        %1147 = vmatprep.subr.bf16.mxu0 0
        %1148 = vmatpush1.bf16.msra.mxu0 0
        %1149 = vmatprep.subr.bf16.mxu0 0
        %1150 = vmatpush1.bf16.msra.mxu0 0
        %1151 = vmatprep.subr.bf16.mxu0 0
        %1152 = vmatpush1.bf16.msra.mxu0 0
        %1153 = vmatprep.subr.bf16.mxu0 0
        %1154 = vmatpush1.bf16.msra.mxu0 0
        %1155 = vmatprep.subr.bf16.mxu0 0
        %1156 = vmatpush1.bf16.msra.mxu0 0
        %1157 = vmatprep.subr.bf16.mxu0 0
        %1158 = vmatpush1.bf16.msra.mxu0 0
        %1159 = vmatprep.subr.bf16.mxu0 0
        %1160 = vmatpush1.bf16.msra.mxu0 0
        %1161 = vmatprep.subr.bf16.mxu0 0
        %1162 = vmatpush1.bf16.msra.mxu0 0
        %1163 = vmatprep.subr.bf16.mxu0 0
        %1164 = vmatpush1.bf16.msra.mxu0 0
        %1165 = vmatprep.subr.bf16.mxu0 0
        %1166 = vmatpush1.bf16.msra.mxu0 0
        %1167 = vmatprep.subr.bf16.mxu0 0
        %1168 = vmatpush1.bf16.msra.mxu0 0
        %1169 = vmatprep.subr.bf16.mxu0 0
        %1170 = vmatpush1.bf16.msra.mxu0 0
        %1171 = vmatprep.mubr.bf16.mxu0 0
        %1172 = vmatmul.mubr.bf16.gmra.mrb[0].mxu0 %v1128
        %v1173 = vpop.f32.mrb[0].mxu0
        %v1174 = vadd.f32 0.0, %v1173
        %v1175 = vpop.f32.mrb[0].mxu0
        %v1176 = vpop.f32.mrb[0].mxu0
        %v1177 = vadd.f32 0.0, %v1176
        %v1178 = vpop.f32.mrb[0].mxu0
        %1179 = vmatprep.mubr.bf16.mxu0 0
        %1180 = vmatmul.mubr.bf16.gmra.mrb[0].mxu0 %v1131
        %v1181 = vpop.f32.mrb[0].mxu0
        %v1182 = vadd.f32 0.0, %v1181
        %v1183 = vpop.f32.mrb[0].mxu0
        %v1184 = vpop.f32.mrb[0].mxu0
        %v1185 = vadd.f32 0.0, %v1184
        %v1186 = vpop.f32.mrb[0].mxu0
        %1187 = vmatprep.mubr.bf16.mxu0 0
        %1188 = vmatmul.mubr.bf16.gmra.mrb[0].mxu0 %v1134
        %v1189 = vpop.f32.mrb[0].mxu0
        %v1190 = vadd.f32 0.0, %v1189
        %v1191 = vpop.f32.mrb[0].mxu0
        %v1192 = vpop.f32.mrb[0].mxu0
        %v1193 = vadd.f32 0.0, %v1192
        %v1194 = vpop.f32.mrb[0].mxu0
        %1195 = vmatprep.mubr.bf16.mxu0 0
        %1196 = vmatmul.mubr.bf16.gmra.mrb[0].mxu0 %v1137
        %v1197 = vpop.f32.mrb[0].mxu0
        %v1198 = vadd.f32 0.0, %v1197
        %v1199 = vpop.f32.mrb[0].mxu0
        %v1200 = vpop.f32.mrb[0].mxu0
        %v1201 = vadd.f32 0.0, %v1200
        %v1202 = vpop.f32.mrb[0].mxu0
        %1203 = vdwg.mxu0
        %v1204 = vld [vmem:[%s9] sm:$0x1]
        %v1206 = vlaneseq
        %v1207 = vshrl.u32 %v1206, 7
        %v1208 = vsub.s32 0, %v1207
        %v1209 = vrot.slane %v1204, %v1208
        %v1211 = vmul.f32 %v1174, %v1209
        %v1212 = vmul.f32 %v1177, %v1209
        %v1213 = vmul.f32 %v1182, %v1209
        %v1214 = vmul.f32 %v1185, %v1209
        %v1215 = vmul.f32 %v1190, %v1209
        %v1216 = vmul.f32 %v1193, %v1209
        %v1217 = vmul.f32 %v1198, %v1209
        %v1218 = vmul.f32 %v1201, %v1209
        %v1219 = vld [vmem:[%s11] sm:$0x1]
        %v1221 = vlaneseq
        %v1222 = vshrl.u32 %v1221, 7
        %v1223 = vsub.s32 0, %v1222
        %v1224 = vrot.slane %v1219, %v1223
        %v1226 = vadd.f32 %v1211, %v1224
        %v1227 = vadd.f32 %v1212, %v1224
        %v1228 = vadd.f32 %v1213, %v1224
        %v1229 = vadd.f32 %v1214, %v1224
        %v1230 = vadd.f32 %v1215, %v1224
        %v1231 = vadd.f32 %v1216, %v1224
        %v1232 = vadd.f32 %v1217, %v1224
        %v1233 = vadd.f32 %v1218, %v1224
        %v1234 = vmax.f32 %v1226, 0.0
        %v1235 = vmax.f32 %v1227, 0.0
        %v1236 = vmax.f32 %v1228, 0.0
        %v1237 = vmax.f32 %v1229, 0.0
        %v1238 = vmax.f32 %v1230, 0.0
        %v1239 = vmax.f32 %v1231, 0.0
        %v1240 = vmax.f32 %v1232, 0.0
        %v1241 = vmax.f32 %v1233, 0.0
        %v1242 = vld [vmem:[%s13] sm:$0xff]
        %v1243 = vld [vmem:[%s13 + $0x8] sm:$0xff]
        %v1244 = vpack.c.bf16 %v1235, %v1234
        %v1245 = vpack.c.bf16 %v1237, %v1236
        %v1246 = vpack.c.bf16 %v1239, %v1238
        %v1247 = vpack.c.bf16 %v1241, %v1240
        %v1248 = vpack.c.bf16 %v1243, %v1242
        %v1249 = vld [vmem:[%s15] sm:$0x1]
        %v1251 = vlaneseq
        %v1252 = vshrl.u32 %v1251, 7
        %v1253 = vsub.s32 0, %v1252
        %v1254 = vrot.slane %v1249, %v1253
        %vm1256 = vcmask 130048
        %v1258 = vsel %vm1256, %v1244, 0
        %v1261 = vsel %vm1256, %v1245, 0
        %v1264 = vsel %vm1256, %v1246, 0
        %v1267 = vsel %vm1256, %v1247, 0
        %1269 = vmatprep.subr.bf16.mxu0 0
        %1270 = vmatpush1.bf16.msra.mxu0 %v1248
        %1271 = vmatprep.subr.bf16.mxu0 0
        %1272 = vmatpush1.bf16.msra.mxu0 0
        %1273 = vmatprep.subr.bf16.mxu0 0
        %1274 = vmatpush1.bf16.msra.mxu0 0
        %1275 = vmatprep.subr.bf16.mxu0 0
        %1276 = vmatpush1.bf16.msra.mxu0 0
        %1277 = vmatprep.subr.bf16.mxu0 0
        %1278 = vmatpush1.bf16.msra.mxu0 0
        %1279 = vmatprep.subr.bf16.mxu0 0
        %1280 = vmatpush1.bf16.msra.mxu0 0
        %1281 = vmatprep.subr.bf16.mxu0 0
        %1282 = vmatpush1.bf16.msra.mxu0 0
        %1283 = vmatprep.subr.bf16.mxu0 0
        %1284 = vmatpush1.bf16.msra.mxu0 0
        %1285 = vmatprep.subr.bf16.mxu0 0
        %1286 = vmatpush1.bf16.msra.mxu0 0
        %1287 = vmatprep.subr.bf16.mxu0 0
        %1288 = vmatpush1.bf16.msra.mxu0 0
        %1289 = vmatprep.subr.bf16.mxu0 0
        %1290 = vmatpush1.bf16.msra.mxu0 0
        %1291 = vmatprep.subr.bf16.mxu0 0
        %1292 = vmatpush1.bf16.msra.mxu0 0
        %1293 = vmatprep.subr.bf16.mxu0 0
        %1294 = vmatpush1.bf16.msra.mxu0 0
        %1295 = vmatprep.subr.bf16.mxu0 0
        %1296 = vmatpush1.bf16.msra.mxu0 0
        %1297 = vmatprep.subr.bf16.mxu0 0
        %1298 = vmatpush1.bf16.msra.mxu0 0
        %1299 = vmatprep.subr.bf16.mxu0 0
        %1300 = vmatpush1.bf16.msra.mxu0 0
        %1301 = vmatprep.mubr.bf16.mxu0 0
        %1302 = vmatmul.mubr.bf16.gmra.mrb[0].mxu0 %v1258
        %v1303 = vpop.f32.mrb[0].mxu0
        %v1304 = vadd.f32 %v1254, %v1303
        %v1305 = vpop.f32.mrb[0].mxu0
        %v1306 = vpop.f32.mrb[0].mxu0
        %v1307 = vadd.f32 %v1254, %v1306
        %v1308 = vpop.f32.mrb[0].mxu0
        %1309 = vmatprep.mubr.bf16.mxu0 0
        %1310 = vmatmul.mubr.bf16.gmra.mrb[0].mxu0 %v1261
        %v1311 = vpop.f32.mrb[0].mxu0
        %v1312 = vadd.f32 %v1254, %v1311
        %v1313 = vpop.f32.mrb[0].mxu0
        %v1314 = vpop.f32.mrb[0].mxu0
        %v1315 = vadd.f32 %v1254, %v1314
        %v1316 = vpop.f32.mrb[0].mxu0
        %1317 = vmatprep.mubr.bf16.mxu0 0
        %1318 = vmatmul.mubr.bf16.gmra.mrb[0].mxu0 %v1264
        %v1319 = vpop.f32.mrb[0].mxu0
        %v1320 = vadd.f32 %v1254, %v1319
        %v1321 = vpop.f32.mrb[0].mxu0
        %v1322 = vpop.f32.mrb[0].mxu0
        %v1323 = vadd.f32 %v1254, %v1322
        %v1324 = vpop.f32.mrb[0].mxu0
        %1325 = vmatprep.mubr.bf16.mxu0 0
        %1326 = vmatmul.mubr.bf16.gmra.mrb[0].mxu0 %v1267
        %v1327 = vpop.f32.mrb[0].mxu0
        %v1328 = vadd.f32 %v1254, %v1327
        %v1329 = vpop.f32.mrb[0].mxu0
        %v1330 = vpop.f32.mrb[0].mxu0
        %v1331 = vadd.f32 %v1254, %v1330
        %v1332 = vpop.f32.mrb[0].mxu0
        %1333 = vdwg.mxu0
        %v1334 = vld [vmem:[%s17] sm:$0x1]
        %v1336 = vlaneseq
        %v1337 = vshrl.u32 %v1336, 7
        %v1338 = vsub.s32 0, %v1337
        %v1339 = vrot.slane %v1334, %v1338
        %v1341 = vmul.f32 %v1304, %v1339
        %v1342 = vmul.f32 %v1307, %v1339
        %v1343 = vmul.f32 %v1312, %v1339
        %v1344 = vmul.f32 %v1315, %v1339
        %v1345 = vmul.f32 %v1320, %v1339
        %v1346 = vmul.f32 %v1323, %v1339
        %v1347 = vmul.f32 %v1328, %v1339
        %v1348 = vmul.f32 %v1331, %v1339
        %v1349 = vld [vmem:[%s19] sm:$0x1]
        %v1351 = vlaneseq
        %v1352 = vshrl.u32 %v1351, 7
        %v1353 = vsub.s32 0, %v1352
        %v1354 = vrot.slane %v1349, %v1353
        %v1356 = vadd.f32 %v1341, %v1354
        %v1357 = vadd.f32 %v1342, %v1354
        %v1358 = vadd.f32 %v1343, %v1354
        %v1359 = vadd.f32 %v1344, %v1354
        %v1360 = vadd.f32 %v1345, %v1354
        %v1361 = vadd.f32 %v1346, %v1354
        %v1362 = vadd.f32 %v1347, %v1354
        %v1363 = vadd.f32 %v1348, %v1354
        %v1364 = vmax.f32 %v1356, 0.0
        %v1365 = vmax.f32 %v1357, 0.0
        %v1366 = vmax.f32 %v1358, 0.0
        %v1367 = vmax.f32 %v1359, 0.0
        %v1368 = vmax.f32 %v1360, 0.0
        %v1369 = vmax.f32 %v1361, 0.0
        %v1370 = vmax.f32 %v1362, 0.0
        %v1371 = vmax.f32 %v1363, 0.0
        %vm1372 = vcmask 523264
        %v1373 = vsel %vm1372, %v1364, 0.0
        %v1374 = vsel %vm1372, %v1365, 0.0
        %v1375 = vadd.f32 %v1373, %v1374
        %v1376 = vsel %vm1372, %v1366, 0.0
        %v1377 = vadd.f32 %v1375, %v1376
        %v1378 = vsel %vm1372, %v1367, 0.0
        %v1379 = vadd.f32 %v1377, %v1378
        %v1380 = vsel %vm1372, %v1368, 0.0
        %v1381 = vadd.f32 %v1379, %v1380
        %v1382 = vsel %vm1372, %v1369, 0.0
        %v1383 = vadd.f32 %v1381, %v1382
        %v1384 = vsel %vm1372, %v1370, 0.0
        %v1385 = vadd.f32 %v1383, %v1384
        %v1386 = vsel %vm1372, %v1371, 0.0
        %v1387 = vadd.f32 %v1385, %v1386
        %v1388 = vrot.slane %v1387, 4
        %v1389 = vadd.f32 %v1387, %v1388
        %v1390 = vrot.slane %v1389, 2
        %v1391 = vadd.f32 %v1389, %v1390
        %v1392 = vrot.slane %v1391, 1
        %v1393 = vadd.f32 %v1391, %v1392
        %v1394 = vrcp.pop 64.0
        %v1395 = vmul.f32 %v1393, %v1394
        %v1396 = vld [vmem:[%s21] sm:$0xff]
        %v1397 = vld [vmem:[%s21 + $0x8] sm:$0xff]
        %v1398 = vld [vmem:[%s21 + $0x10] sm:$0xff]
        %v1399 = vld [vmem:[%s21 + $0x18] sm:$0xff]
        %v1400 = vld [vmem:[%s21 + $0x20] sm:$0xff]
        %v1401 = vld [vmem:[%s21 + $0x28] sm:$0xff]
        %v1402 = vld [vmem:[%s21 + $0x30] sm:$0xff]
        %v1403 = vld [vmem:[%s21 + $0x38] sm:$0xff]
        %v1404 = vld [vmem:[%s23] sm:$0x1]
        %v1406 = vsel %vm1372, %v1395, 0
        %1408 = vmatprep.subr.mxu0 0.0
        %1409 = vmatpush1.msra.mxu0 %v1396
        %1410 = vmatprep.subr.mxu0 0.0
        %1411 = vmatpush1.msra.mxu0 %v1397
        %1412 = vmatprep.subr.mxu0 0.0
        %1413 = vmatpush1.msra.mxu0 %v1398
        %1414 = vmatprep.subr.mxu0 0.0
        %1415 = vmatpush1.msra.mxu0 %v1399
        %1416 = vmatprep.subr.mxu0 0.0
        %1417 = vmatpush1.msra.mxu0 %v1400
        %1418 = vmatprep.subr.mxu0 0.0
        %1419 = vmatpush1.msra.mxu0 %v1401
        %1420 = vmatprep.subr.mxu0 0.0
        %1421 = vmatpush1.msra.mxu0 %v1402
        %1422 = vmatprep.subr.mxu0 0.0
        %1423 = vmatpush1.msra.mxu0 %v1403
        %1424 = vmatprep.subr.mxu0 0.0
        %1425 = vmatpush1.msra.mxu0 0.0
        %1426 = vmatprep.subr.mxu0 0.0
        %1427 = vmatpush1.msra.mxu0 0.0
        %1428 = vmatprep.subr.mxu0 0.0
        %1429 = vmatpush1.msra.mxu0 0.0
        %1430 = vmatprep.subr.mxu0 0.0
        %1431 = vmatpush1.msra.mxu0 0.0
        %1432 = vmatprep.subr.mxu0 0.0
        %1433 = vmatpush1.msra.mxu0 0.0
        %1434 = vmatprep.subr.mxu0 0.0
        %1435 = vmatpush1.msra.mxu0 0.0
        %1436 = vmatprep.subr.mxu0 0.0
        %1437 = vmatpush1.msra.mxu0 0.0
        %1438 = vmatprep.subr.mxu0 0.0
        %1439 = vmatpush1.msra.mxu0 0.0
        %1440 = vmatprep.subr.mxu0 0.0
        %1441 = vmatpush1.msra.mxu0 0.0
        %1442 = vmatprep.subr.mxu0 0.0
        %1443 = vmatpush1.msra.mxu0 0.0
        %1444 = vmatprep.subr.mxu0 0.0
        %1445 = vmatpush1.msra.mxu0 0.0
        %1446 = vmatprep.subr.mxu0 0.0
        %1447 = vmatpush1.msra.mxu0 0.0
        %1448 = vmatprep.subr.mxu0 0.0
        %1449 = vmatpush1.msra.mxu0 0.0
        %1450 = vmatprep.subr.mxu0 0.0
        %1451 = vmatpush1.msra.mxu0 0.0
        %1452 = vmatprep.subr.mxu0 0.0
        %1453 = vmatpush1.msra.mxu0 0.0
        %1454 = vmatprep.subr.mxu0 0.0
        %1455 = vmatpush1.msra.mxu0 0.0
        %1456 = vmatprep.subr.mxu0 0.0
        %1457 = vmatpush1.msra.mxu0 0.0
        %1458 = vmatprep.subr.mxu0 0.0
        %1459 = vmatpush1.msra.mxu0 0.0
        %1460 = vmatprep.subr.mxu0 0.0
        %1461 = vmatpush1.msra.mxu0 0.0
        %1462 = vmatprep.subr.mxu0 0.0
        %1463 = vmatpush1.msra.mxu0 0.0
        %1464 = vmatprep.subr.mxu0 0.0
        %1465 = vmatpush1.msra.mxu0 0.0
        %1466 = vmatprep.subr.mxu0 0.0
        %1467 = vmatpush1.msra.mxu0 0.0
        %1468 = vmatprep.subr.mxu0 0.0
        %1469 = vmatpush1.msra.mxu0 0.0
        %1470 = vmatprep.subr.mxu0 0.0
        %1471 = vmatpush1.msra.mxu0 0.0
        %1472 = vmatprep.mubr.f32.mxu0 0.0
        %1473 = vmatmul.mubr.f32.gmra.mrb[0].mxu0 %v1406
        %v1474 = vpop.f32.mrb[0].mxu0
        %v1475 = vadd.f32 %v1404, %v1474
        %v1476 = vpop.f32.mrb[0].mxu0
        %1477 = vdwg.mxu0
        %v1478 = vmax.f32 %v1475, 0.0
        %v1479 = vld [vmem:[%s25] sm:$0x3]
        %v1480 = vld [vmem:[%s27] sm:$0x1]
        %vm1481 = vcmask 15360
        %v1483 = vsel %vm1481, %v1478, 0
        %vm1485 = vcmask 1041408
        %v1487 = vsel %vm1485, %v1479, 0
        %1489 = vmatprep.subr.mxu0 0.0
        %1490 = vmatpush1.msra.mxu0 %v1487
        %1491 = vmatprep.subr.mxu0 0.0
        %1492 = vmatpush1.msra.mxu0 0.0
        %1493 = vmatprep.subr.mxu0 0.0
        %1494 = vmatpush1.msra.mxu0 0.0
        %1495 = vmatprep.subr.mxu0 0.0
        %1496 = vmatpush1.msra.mxu0 0.0
        %1497 = vmatprep.subr.mxu0 0.0
        %1498 = vmatpush1.msra.mxu0 0.0
        %1499 = vmatprep.subr.mxu0 0.0
        %1500 = vmatpush1.msra.mxu0 0.0
        %1501 = vmatprep.subr.mxu0 0.0
        %1502 = vmatpush1.msra.mxu0 0.0
        %1503 = vmatprep.subr.mxu0 0.0
        %1504 = vmatpush1.msra.mxu0 0.0
        %1505 = vmatprep.subr.mxu0 0.0
        %1506 = vmatpush1.msra.mxu0 0.0
        %1507 = vmatprep.subr.mxu0 0.0
        %1508 = vmatpush1.msra.mxu0 0.0
        %1509 = vmatprep.subr.mxu0 0.0
        %1510 = vmatpush1.msra.mxu0 0.0
        %1511 = vmatprep.subr.mxu0 0.0
        %1512 = vmatpush1.msra.mxu0 0.0
        %1513 = vmatprep.subr.mxu0 0.0
        %1514 = vmatpush1.msra.mxu0 0.0
        %1515 = vmatprep.subr.mxu0 0.0
        %1516 = vmatpush1.msra.mxu0 0.0
        %1517 = vmatprep.subr.mxu0 0.0
        %1518 = vmatpush1.msra.mxu0 0.0
        %1519 = vmatprep.subr.mxu0 0.0
        %1520 = vmatpush1.msra.mxu0 0.0
        %1521 = vmatprep.subr.mxu0 0.0
        %1522 = vmatpush1.msra.mxu0 0.0
        %1523 = vmatprep.subr.mxu0 0.0
        %1524 = vmatpush1.msra.mxu0 0.0
        %1525 = vmatprep.subr.mxu0 0.0
        %1526 = vmatpush1.msra.mxu0 0.0
        %1527 = vmatprep.subr.mxu0 0.0
        %1528 = vmatpush1.msra.mxu0 0.0
        %1529 = vmatprep.subr.mxu0 0.0
        %1530 = vmatpush1.msra.mxu0 0.0
        %1531 = vmatprep.subr.mxu0 0.0
        %1532 = vmatpush1.msra.mxu0 0.0
        %1533 = vmatprep.subr.mxu0 0.0
        %1534 = vmatpush1.msra.mxu0 0.0
        %1535 = vmatprep.subr.mxu0 0.0
        %1536 = vmatpush1.msra.mxu0 0.0
        %1537 = vmatprep.subr.mxu0 0.0
        %1538 = vmatpush1.msra.mxu0 0.0
        %1539 = vmatprep.subr.mxu0 0.0
        %1540 = vmatpush1.msra.mxu0 0.0
        %1541 = vmatprep.subr.mxu0 0.0
        %1542 = vmatpush1.msra.mxu0 0.0
        %1543 = vmatprep.subr.mxu0 0.0
        %1544 = vmatpush1.msra.mxu0 0.0
        %1545 = vmatprep.subr.mxu0 0.0
        %1546 = vmatpush1.msra.mxu0 0.0
        %1547 = vmatprep.subr.mxu0 0.0
        %1548 = vmatpush1.msra.mxu0 0.0
        %1549 = vmatprep.subr.mxu0 0.0
        %1550 = vmatpush1.msra.mxu0 0.0
        %1551 = vmatprep.subr.mxu0 0.0
        %1552 = vmatpush1.msra.mxu0 0.0
        %1553 = vmatprep.mubr.f32.mxu0 0.0
        %1554 = vmatmul.mubr.f32.gmra.mrb[0].mxu0 %v1483
        %v1555 = vpop.f32.mrb[0].mxu0
        %v1556 = vadd.f32 %v1480, %v1555
        %v1557 = vpop.f32.mrb[0].mxu0
        %1558 = vdwg.mxu0
        %v1559 = vxor.u32 %v1556, 2147483648
        %v1560 = vmul.f32 %v1559, 1.442695
        %v1561 = vpow.pop %v1560
        %v1562 = vadd.f32 %v1561, 1.0
        %v1563 = vrcp.pop %v1562
        %v1564 = vmul.f32 1.0, %v1563
        %vm1565 = vcmask 64512
        %1566 = vst.msk [vmem:[#allocation2] sm:$0xff] %vm1565, 0.0
        %1567 = vst.msk [vmem:[#allocation2 + $0x8] sm:$0xff] %vm1565, 0.0
        %1568 = vst.msk [vmem:[#allocation2 + $0x50] sm:$0xff] %vm1565, 0.0
        %1569 = vst.msk [vmem:[#allocation2 + $0x58] sm:$0xff] %vm1565, 0.0
        %v1570 = vlaneseq
        %v1571 = vshrl.u32 %v1570, 7
        %v1572 = vadd.s32 %v1571, 8
        %v1573 = vadd.s32 %v1571, 16
        %v1574 = vadd.s32 %v1571, 24
        %v1575 = vadd.s32 %v1571, 32
        %v1576 = vadd.s32 %v1571, 40
        %v1577 = vadd.s32 %v1571, 48
        %v1578 = vadd.s32 %v1571, 56
        %vm1579 = vcmp.lt.s32.totalorder %v1571, 0
        %v1580 = vsub.s32 0, %v1571
        %v1581 = vsel %vm1579, %v1580, %v1571
        %v1582 = vshrl.u32 %v1581, 3
        %v1583 = vand.u32 %v1581, 7
        %v1584 = vsub.s32 0, %v1583
        %v1585 = vsel %vm1579, %v1584, %v1583
        %vm1586 = vcmp.lt.s32.totalorder %v1572, 0
        %v1587 = vsub.s32 0, %v1572
        %v1588 = vsel %vm1586, %v1587, %v1572
        %v1589 = vshrl.u32 %v1588, 3
        %v1590 = vand.u32 %v1588, 7
        %v1591 = vsub.s32 0, %v1590
        %v1592 = vsel %vm1586, %v1591, %v1590
        %vm1593 = vcmp.lt.s32.totalorder %v1573, 0
        %v1594 = vsub.s32 0, %v1573
        %v1595 = vsel %vm1593, %v1594, %v1573
        %v1596 = vshrl.u32 %v1595, 3
        %v1597 = vand.u32 %v1595, 7
        %v1598 = vsub.s32 0, %v1597
        %v1599 = vsel %vm1593, %v1598, %v1597
        %vm1600 = vcmp.lt.s32.totalorder %v1574, 0
        %v1601 = vsub.s32 0, %v1574
        %v1602 = vsel %vm1600, %v1601, %v1574
        %v1603 = vshrl.u32 %v1602, 3
        %v1604 = vand.u32 %v1602, 7
        %v1605 = vsub.s32 0, %v1604
        %v1606 = vsel %vm1600, %v1605, %v1604
        %vm1607 = vcmp.lt.s32.totalorder %v1575, 0
        %v1608 = vsub.s32 0, %v1575
        %v1609 = vsel %vm1607, %v1608, %v1575
        %v1610 = vshrl.u32 %v1609, 3
        %v1611 = vand.u32 %v1609, 7
        %v1612 = vsub.s32 0, %v1611
        %v1613 = vsel %vm1607, %v1612, %v1611
        %vm1614 = vcmp.lt.s32.totalorder %v1576, 0
        %v1615 = vsub.s32 0, %v1576
        %v1616 = vsel %vm1614, %v1615, %v1576
        %v1617 = vshrl.u32 %v1616, 3
        %v1618 = vand.u32 %v1616, 7
        %v1619 = vsub.s32 0, %v1618
        %v1620 = vsel %vm1614, %v1619, %v1618
        %vm1621 = vcmp.lt.s32.totalorder %v1577, 0
        %v1622 = vsub.s32 0, %v1577
        %v1623 = vsel %vm1621, %v1622, %v1577
        %v1624 = vshrl.u32 %v1623, 3
        %v1625 = vand.u32 %v1623, 7
        %v1626 = vsub.s32 0, %v1625
        %v1627 = vsel %vm1621, %v1626, %v1625
        %vm1628 = vcmp.lt.s32.totalorder %v1578, 0
        %v1629 = vsub.s32 0, %v1578
        %v1630 = vsel %vm1628, %v1629, %v1578
        %v1631 = vshrl.u32 %v1630, 3
        %v1632 = vand.u32 %v1630, 7
        %v1633 = vsub.s32 0, %v1632
        %v1634 = vsel %vm1628, %v1633, %v1632
        %vm1635 = vcmp.ne.s32.totalorder %v1585, 0
        %vm1636 = vcmp.ne.s32.totalorder %v1592, 0
        %vm1637 = vcmp.ne.s32.totalorder %v1599, 0
        %vm1638 = vcmp.ne.s32.totalorder %v1606, 0
        %vm1639 = vcmp.ne.s32.totalorder %v1613, 0
        %vm1640 = vcmp.ne.s32.totalorder %v1620, 0
        %vm1641 = vcmp.ne.s32.totalorder %v1627, 0
        %vm1642 = vcmp.ne.s32.totalorder %v1634, 0
        %vm1643 = vcmp.lt.s32.totalorder %v1585, 0
        %vm1644 = vcmp.lt.s32.totalorder %v1592, 0
        %vm1645 = vcmp.lt.s32.totalorder %v1599, 0
        %vm1646 = vcmp.lt.s32.totalorder %v1606, 0
        %vm1647 = vcmp.lt.s32.totalorder %v1613, 0
        %vm1648 = vcmp.lt.s32.totalorder %v1620, 0
        %vm1649 = vcmp.lt.s32.totalorder %v1627, 0
        %vm1650 = vcmp.lt.s32.totalorder %v1634, 0
        %vm1651 = vmand %vm1643, %vm1635
        %vm1652 = vmand %vm1644, %vm1636
        %vm1653 = vmand %vm1645, %vm1637
        %vm1654 = vmand %vm1646, %vm1638
        %vm1655 = vmand %vm1647, %vm1639
        %vm1656 = vmand %vm1648, %vm1640
        %vm1657 = vmand %vm1649, %vm1641
        %vm1658 = vmand %vm1650, %vm1642
        %v1659 = vadd.s32 %v1585, 8
        %v1660 = vadd.s32 %v1592, 8
        %v1661 = vadd.s32 %v1599, 8
        %v1662 = vadd.s32 %v1606, 8
        %v1663 = vadd.s32 %v1613, 8
        %v1664 = vadd.s32 %v1620, 8
        %v1665 = vadd.s32 %v1627, 8
        %v1666 = vadd.s32 %v1634, 8
        %v1667 = vsel %vm1651, %v1659, %v1585
        %v1668 = vsel %vm1652, %v1660, %v1592
        %v1669 = vsel %vm1653, %v1661, %v1599
        %v1670 = vsel %vm1654, %v1662, %v1606
        %v1671 = vsel %vm1655, %v1663, %v1613
        %v1672 = vsel %vm1656, %v1664, %v1620
        %v1673 = vsel %vm1657, %v1665, %v1627
        %v1674 = vsel %vm1658, %v1666, %v1634
        %vm1675 = vcmp.ge.s32.totalorder %v1667, 1
        %vm1676 = vcmp.ge.s32.totalorder %v1668, 1
        %vm1677 = vcmp.ge.s32.totalorder %v1669, 1
        %vm1678 = vcmp.ge.s32.totalorder %v1670, 1
        %vm1679 = vcmp.ge.s32.totalorder %v1671, 1
        %vm1680 = vcmp.ge.s32.totalorder %v1672, 1
        %vm1681 = vcmp.ge.s32.totalorder %v1673, 1
        %vm1682 = vcmp.ge.s32.totalorder %v1674, 1
        %vm1683 = vcmp.le.s32.totalorder %v1667, 6
        %vm1684 = vcmp.le.s32.totalorder %v1668, 6
        %vm1685 = vcmp.le.s32.totalorder %v1669, 6
        %vm1686 = vcmp.le.s32.totalorder %v1670, 6
        %vm1687 = vcmp.le.s32.totalorder %v1671, 6
        %vm1688 = vcmp.le.s32.totalorder %v1672, 6
        %vm1689 = vcmp.le.s32.totalorder %v1673, 6
        %vm1690 = vcmp.le.s32.totalorder %v1674, 6
        %v1691 = vld [vmem:[%s29] sm:$0x1]
        %v1693 = vlaneseq
        %v1694 = vshrl.u32 %v1693, 7
        %v1695 = vsub.s32 0, %v1694
        %v1696 = vrot.slane %v1691, %v1695
        %v1698 = vmul.f32 %v1304, %v1696
        %v1699 = vmul.f32 %v1307, %v1696
        %v1700 = vmul.f32 %v1312, %v1696
        %v1701 = vmul.f32 %v1315, %v1696
        %v1702 = vmul.f32 %v1320, %v1696
        %v1703 = vmul.f32 %v1323, %v1696
        %v1704 = vmul.f32 %v1328, %v1696
        %v1705 = vmul.f32 %v1331, %v1696
        %v1706 = vld [vmem:[%s31] sm:$0x1]
        %v1708 = vlaneseq
        %v1709 = vshrl.u32 %v1708, 7
        %v1710 = vsub.s32 0, %v1709
        %v1711 = vrot.slane %v1706, %v1710
        %v1713 = vadd.f32 %v1698, %v1711
        %v1714 = vadd.f32 %v1699, %v1711
        %v1715 = vadd.f32 %v1700, %v1711
        %v1716 = vadd.f32 %v1701, %v1711
        %v1717 = vadd.f32 %v1702, %v1711
        %v1718 = vadd.f32 %v1703, %v1711
        %v1719 = vadd.f32 %v1704, %v1711
        %v1720 = vadd.f32 %v1705, %v1711
        %v1721 = vmax.f32 %v1713, 0.0
        %v1722 = vmax.f32 %v1714, 0.0
        %v1723 = vmax.f32 %v1715, 0.0
        %v1724 = vmax.f32 %v1716, 0.0
        %v1725 = vmax.f32 %v1717, 0.0
        %v1726 = vmax.f32 %v1718, 0.0
        %v1727 = vmax.f32 %v1719, 0.0
        %v1728 = vmax.f32 %v1720, 0.0
        %v1729 = vld [vmem:[%s33] sm:$0xff]
        %v1730 = vld [vmem:[%s33 + $0x8] sm:$0xff]
        %v1731 = vld [vmem:[%s33 + $0x10] sm:$0xff]
        %v1732 = vld [vmem:[%s33 + $0x18] sm:$0xff]
        %v1733 = vld [vmem:[%s33 + $0x20] sm:$0xff]
        %v1734 = vld [vmem:[%s33 + $0x28] sm:$0xff]
        %v1735 = vld [vmem:[%s33 + $0x30] sm:$0xff]
        %v1736 = vld [vmem:[%s33 + $0x38] sm:$0xff]
        %v1737 = vpack.c.bf16 %v1722, %v1721
        %v1738 = vpack.c.bf16 %v1724, %v1723
        %v1739 = vpack.c.bf16 %v1726, %v1725
        %v1740 = vpack.c.bf16 %v1728, %v1727
        %v1741 = vpack.c.bf16 %v1730, %v1729
        %v1742 = vpack.c.bf16 %v1732, %v1731
        %v1743 = vpack.c.bf16 %v1734, %v1733
        %v1744 = vpack.c.bf16 %v1736, %v1735
        %v1746 = vsel %vm1372, %v1737, 0
        %v1749 = vsel %vm1372, %v1738, 0
        %v1752 = vsel %vm1372, %v1739, 0
        %v1755 = vsel %vm1372, %v1740, 0
        %1757 = vmatprep.subr.bf16.mxu0 0
        %1758 = vmatpush1.bf16.msra.mxu0 %v1741
        %1759 = vmatprep.subr.bf16.mxu0 0
        %1760 = vmatpush1.bf16.msra.mxu0 %v1742
        %1761 = vmatprep.subr.bf16.mxu0 0
        %1762 = vmatpush1.bf16.msra.mxu0 %v1743
        %1763 = vmatprep.subr.bf16.mxu0 0
        %1764 = vmatpush1.bf16.msra.mxu0 %v1744
        %1765 = vmatprep.subr.bf16.mxu0 0
        %1766 = vmatpush1.bf16.msra.mxu0 0
        %1767 = vmatprep.subr.bf16.mxu0 0
        %1768 = vmatpush1.bf16.msra.mxu0 0
        %1769 = vmatprep.subr.bf16.mxu0 0
        %1770 = vmatpush1.bf16.msra.mxu0 0
        %1771 = vmatprep.subr.bf16.mxu0 0
        %1772 = vmatpush1.bf16.msra.mxu0 0
        %1773 = vmatprep.subr.bf16.mxu0 0
        %1774 = vmatpush1.bf16.msra.mxu0 0
        %1775 = vmatprep.subr.bf16.mxu0 0
        %1776 = vmatpush1.bf16.msra.mxu0 0
        %1777 = vmatprep.subr.bf16.mxu0 0
        %1778 = vmatpush1.bf16.msra.mxu0 0
        %1779 = vmatprep.subr.bf16.mxu0 0
        %1780 = vmatpush1.bf16.msra.mxu0 0
        %1781 = vmatprep.subr.bf16.mxu0 0
        %1782 = vmatpush1.bf16.msra.mxu0 0
        %1783 = vmatprep.subr.bf16.mxu0 0
        %1784 = vmatpush1.bf16.msra.mxu0 0
        %1785 = vmatprep.subr.bf16.mxu0 0
        %1786 = vmatpush1.bf16.msra.mxu0 0
        %1787 = vmatprep.subr.bf16.mxu0 0
        %1788 = vmatpush1.bf16.msra.mxu0 0
        %1789 = vmatprep.mubr.bf16.mxu0 0
        %1790 = vmatmul.mubr.bf16.gmra.mrb[0].mxu0 %v1746
        %v1791 = vpop.f32.mrb[0].mxu0
        %v1792 = vadd.f32 0.0, %v1791
        %v1793 = vpop.f32.mrb[0].mxu0
        %v1794 = vpop.f32.mrb[0].mxu0
        %v1795 = vadd.f32 0.0, %v1794
        %v1796 = vpop.f32.mrb[0].mxu0
        %1797 = vmatprep.mubr.bf16.mxu0 0
        %1798 = vmatmul.mubr.bf16.gmra.mrb[0].mxu0 %v1749
        %v1799 = vpop.f32.mrb[0].mxu0
        %v1800 = vadd.f32 0.0, %v1799
        %v1801 = vpop.f32.mrb[0].mxu0
        %v1802 = vpop.f32.mrb[0].mxu0
        %v1803 = vadd.f32 0.0, %v1802
        %v1804 = vpop.f32.mrb[0].mxu0
        %1805 = vmatprep.mubr.bf16.mxu0 0
        %1806 = vmatmul.mubr.bf16.gmra.mrb[0].mxu0 %v1752
        %v1807 = vpop.f32.mrb[0].mxu0
        %v1808 = vadd.f32 0.0, %v1807
        %v1809 = vpop.f32.mrb[0].mxu0
        %v1810 = vpop.f32.mrb[0].mxu0
        %v1811 = vadd.f32 0.0, %v1810
        %v1812 = vpop.f32.mrb[0].mxu0
        %1813 = vmatprep.mubr.bf16.mxu0 0
        %1814 = vmatmul.mubr.bf16.gmra.mrb[0].mxu0 %v1755
        %v1815 = vpop.f32.mrb[0].mxu0
        %v1816 = vadd.f32 0.0, %v1815
        %v1817 = vpop.f32.mrb[0].mxu0
        %v1818 = vpop.f32.mrb[0].mxu0
        %v1819 = vadd.f32 0.0, %v1818
        %v1820 = vpop.f32.mrb[0].mxu0
        %1821 = vdwg.mxu0
        %v1822 = vld [vmem:[%s35] sm:$0x1]
        %v1824 = vlaneseq
        %v1825 = vshrl.u32 %v1824, 7
        %v1826 = vsub.s32 0, %v1825
        %v1827 = vrot.slane %v1822, %v1826
        %v1829 = vmul.f32 %v1792, %v1827
        %v1830 = vmul.f32 %v1795, %v1827
        %v1831 = vmul.f32 %v1800, %v1827
        %v1832 = vmul.f32 %v1803, %v1827
        %v1833 = vmul.f32 %v1808, %v1827
        %v1834 = vmul.f32 %v1811, %v1827
        %v1835 = vmul.f32 %v1816, %v1827
        %v1836 = vmul.f32 %v1819, %v1827
        %v1837 = vld [vmem:[%s37] sm:$0x1]
        %v1839 = vlaneseq
        %v1840 = vshrl.u32 %v1839, 7
        %v1841 = vsub.s32 0, %v1840
        %v1842 = vrot.slane %v1837, %v1841
        %v1844 = vadd.f32 %v1829, %v1842
        %v1845 = vadd.f32 %v1830, %v1842
        %v1846 = vadd.f32 %v1831, %v1842
        %v1847 = vadd.f32 %v1832, %v1842
        %v1848 = vadd.f32 %v1833, %v1842
        %v1849 = vadd.f32 %v1834, %v1842
        %v1850 = vadd.f32 %v1835, %v1842
        %v1851 = vadd.f32 %v1836, %v1842
        %v1852 = vmax.f32 %v1844, 0.0
        %v1853 = vmax.f32 %v1845, 0.0
        %v1854 = vmax.f32 %v1846, 0.0
        %v1855 = vmax.f32 %v1847, 0.0
        %v1856 = vmax.f32 %v1848, 0.0
        %v1857 = vmax.f32 %v1849, 0.0
        %v1858 = vmax.f32 %v1850, 0.0
        %v1859 = vmax.f32 %v1851, 0.0
        %1860 = vst.msk [vmem:[#allocation2 + $0x10] sm:$0xff] %vm1565, %v1852
        %1861 = vst.msk [vmem:[#allocation2 + $0x18] sm:$0xff] %vm1565, %v1853
        %1862 = vst.msk [vmem:[#allocation2 + $0x20] sm:$0xff] %vm1565, %v1854
        %1863 = vst.msk [vmem:[#allocation2 + $0x28] sm:$0xff] %vm1565, %v1855
        %1864 = vst.msk [vmem:[#allocation2 + $0x30] sm:$0xff] %vm1565, %v1856
        %1865 = vst.msk [vmem:[#allocation2 + $0x38] sm:$0xff] %vm1565, %v1857
        %1866 = vst.msk [vmem:[#allocation2 + $0x40] sm:$0xff] %vm1565, %v1858
        %1867 = vst.msk [vmem:[#allocation2 + $0x48] sm:$0xff] %vm1565, %v1859
        %v1868 = vld [vmem:[#allocation2 + $0x7] sm:$0xff]
        %v1869 = vld [vmem:[#allocation2 + $0xf] sm:$0xff]
        %v1870 = vld [vmem:[#allocation2 + $0x17] sm:$0xff]
        %v1871 = vld [vmem:[#allocation2 + $0x1f] sm:$0xff]
        %v1872 = vld [vmem:[#allocation2 + $0x27] sm:$0xff]
        %v1873 = vld [vmem:[#allocation2 + $0x2f] sm:$0xff]
        %v1874 = vld [vmem:[#allocation2 + $0x37] sm:$0xff]
        %v1875 = vld [vmem:[#allocation2 + $0x3f] sm:$0xff]
        %v1876 = vsel %vm1675, %v1868, 0.0
        %v1877 = vsel %vm1676, %v1869, 0.0
        %v1878 = vsel %vm1677, %v1870, 0.0
        %v1879 = vsel %vm1678, %v1871, 0.0
        %v1880 = vsel %vm1679, %v1872, 0.0
        %v1881 = vsel %vm1680, %v1873, 0.0
        %v1882 = vsel %vm1681, %v1874, 0.0
        %v1883 = vsel %vm1682, %v1875, 0.0
        %v1884 = vld [vmem:[#allocation2 + $0x8] sm:$0xff]
        %v1885 = vld [vmem:[#allocation2 + $0x10] sm:$0xff]
        %v1886 = vld [vmem:[#allocation2 + $0x18] sm:$0xff]
        %v1887 = vld [vmem:[#allocation2 + $0x20] sm:$0xff]
        %v1888 = vld [vmem:[#allocation2 + $0x28] sm:$0xff]
        %v1889 = vld [vmem:[#allocation2 + $0x30] sm:$0xff]
        %v1890 = vld [vmem:[#allocation2 + $0x38] sm:$0xff]
        %v1891 = vld [vmem:[#allocation2 + $0x40] sm:$0xff]
        %v1892 = vld [vmem:[#allocation2 + $0x9] sm:$0xff]
        %v1893 = vld [vmem:[#allocation2 + $0x11] sm:$0xff]
        %v1894 = vld [vmem:[#allocation2 + $0x19] sm:$0xff]
        %v1895 = vld [vmem:[#allocation2 + $0x21] sm:$0xff]
        %v1896 = vld [vmem:[#allocation2 + $0x29] sm:$0xff]
        %v1897 = vld [vmem:[#allocation2 + $0x31] sm:$0xff]
        %v1898 = vld [vmem:[#allocation2 + $0x39] sm:$0xff]
        %v1899 = vld [vmem:[#allocation2 + $0x41] sm:$0xff]
        %v1900 = vsel %vm1683, %v1892, 0.0
        %v1901 = vsel %vm1684, %v1893, 0.0
        %v1902 = vsel %vm1685, %v1894, 0.0
        %v1903 = vsel %vm1686, %v1895, 0.0
        %v1904 = vsel %vm1687, %v1896, 0.0
        %v1905 = vsel %vm1688, %v1897, 0.0
        %v1906 = vsel %vm1689, %v1898, 0.0
        %v1907 = vsel %vm1690, %v1899, 0.0
        %v1908 = vld [vmem:[#allocation2 + $0x47] sm:$0xff]
        %v1909 = vsel %vm1675, %v1869, 0.0
        %v1910 = vsel %vm1676, %v1870, 0.0
        %v1911 = vsel %vm1677, %v1871, 0.0
        %v1912 = vsel %vm1678, %v1872, 0.0
        %v1913 = vsel %vm1679, %v1873, 0.0
        %v1914 = vsel %vm1680, %v1874, 0.0
        %v1915 = vsel %vm1681, %v1875, 0.0
        %v1916 = vsel %vm1682, %v1908, 0.0
        %v1917 = vld [vmem:[#allocation2 + $0x48] sm:$0xff]
        %v1918 = vld [vmem:[#allocation2 + $0x49] sm:$0xff]
        %v1919 = vsel %vm1683, %v1893, 0.0
        %v1920 = vsel %vm1684, %v1894, 0.0
        %v1921 = vsel %vm1685, %v1895, 0.0
        %v1922 = vsel %vm1686, %v1896, 0.0
        %v1923 = vsel %vm1687, %v1897, 0.0
        %v1924 = vsel %vm1688, %v1898, 0.0
        %v1925 = vsel %vm1689, %v1899, 0.0
        %v1926 = vsel %vm1690, %v1918, 0.0
        %v1927 = vld [vmem:[#allocation2 + $0x4f] sm:$0xff]
        %v1928 = vsel %vm1675, %v1870, 0.0
        %v1929 = vsel %vm1676, %v1871, 0.0
        %v1930 = vsel %vm1677, %v1872, 0.0
        %v1931 = vsel %vm1678, %v1873, 0.0
        %v1932 = vsel %vm1679, %v1874, 0.0
        %v1933 = vsel %vm1680, %v1875, 0.0
        %v1934 = vsel %vm1681, %v1908, 0.0
        %v1935 = vsel %vm1682, %v1927, 0.0
        %v1936 = vld [vmem:[#allocation2 + $0x50] sm:$0xff]
        %v1937 = vld [vmem:[#allocation2 + $0x51] sm:$0xff]
        %v1938 = vsel %vm1683, %v1894, 0.0
        %v1939 = vsel %vm1684, %v1895, 0.0
        %v1940 = vsel %vm1685, %v1896, 0.0
        %v1941 = vsel %vm1686, %v1897, 0.0
        %v1942 = vsel %vm1687, %v1898, 0.0
        %v1943 = vsel %vm1688, %v1899, 0.0
        %v1944 = vsel %vm1689, %v1918, 0.0
        %v1945 = vsel %vm1690, %v1937, 0.0
        %1954 = vrot.lane.b32.xlu0 %v1884, 8
        %v1955 = vpop.permute.xlu0 %1954
        %1956 = vrot.lane.b32.xlu0 %v1885, 8
        %v1957 = vpop.permute.xlu0 %1956
        %1958 = vrot.lane.b32.xlu0 %v1886, 8
        %v1959 = vpop.permute.xlu0 %1958
        %1960 = vrot.lane.b32.xlu0 %v1887, 8
        %v1961 = vpop.permute.xlu0 %1960
        %1962 = vrot.lane.b32.xlu0 %v1888, 8
        %v1963 = vpop.permute.xlu0 %1962
        %1964 = vrot.lane.b32.xlu0 %v1889, 8
        %v1965 = vpop.permute.xlu0 %1964
        %1966 = vrot.lane.b32.xlu0 %v1890, 8
        %v1967 = vpop.permute.xlu0 %1966
        %1968 = vrot.lane.b32.xlu0 %v1891, 8
        %v1969 = vpop.permute.xlu0 %1968
        %1986 = vrot.lane.b32.xlu0 %v1900, 16
        %v1987 = vpop.permute.xlu0 %1986
        %1988 = vrot.lane.b32.xlu0 %v1901, 16
        %v1989 = vpop.permute.xlu0 %1988
        %1990 = vrot.lane.b32.xlu0 %v1902, 16
        %v1991 = vpop.permute.xlu0 %1990
        %1992 = vrot.lane.b32.xlu0 %v1903, 16
        %v1993 = vpop.permute.xlu0 %1992
        %1994 = vrot.lane.b32.xlu0 %v1904, 16
        %v1995 = vpop.permute.xlu0 %1994
        %1996 = vrot.lane.b32.xlu0 %v1905, 16
        %v1997 = vpop.permute.xlu0 %1996
        %1998 = vrot.lane.b32.xlu0 %v1906, 16
        %v1999 = vpop.permute.xlu0 %1998
        %2000 = vrot.lane.b32.xlu0 %v1907, 16
        %v2001 = vpop.permute.xlu0 %2000
        %2018 = vrot.lane.b32.xlu0 %v1909, 24
        %v2019 = vpop.permute.xlu0 %2018
        %2020 = vrot.lane.b32.xlu0 %v1910, 24
        %v2021 = vpop.permute.xlu0 %2020
        %2022 = vrot.lane.b32.xlu0 %v1911, 24
        %v2023 = vpop.permute.xlu0 %2022
        %2024 = vrot.lane.b32.xlu0 %v1912, 24
        %v2025 = vpop.permute.xlu0 %2024
        %2026 = vrot.lane.b32.xlu0 %v1913, 24
        %v2027 = vpop.permute.xlu0 %2026
        %2028 = vrot.lane.b32.xlu0 %v1914, 24
        %v2029 = vpop.permute.xlu0 %2028
        %2030 = vrot.lane.b32.xlu0 %v1915, 24
        %v2031 = vpop.permute.xlu0 %2030
        %2032 = vrot.lane.b32.xlu0 %v1916, 24
        %v2033 = vpop.permute.xlu0 %2032
        %2043 = vrot.lane.b32.xlu0 %v1885, 32
        %v2044 = vpop.permute.xlu0 %2043
        %2045 = vrot.lane.b32.xlu0 %v1886, 32
        %v2046 = vpop.permute.xlu0 %2045
        %2047 = vrot.lane.b32.xlu0 %v1887, 32
        %v2048 = vpop.permute.xlu0 %2047
        %2049 = vrot.lane.b32.xlu0 %v1888, 32
        %v2050 = vpop.permute.xlu0 %2049
        %2051 = vrot.lane.b32.xlu0 %v1889, 32
        %v2052 = vpop.permute.xlu0 %2051
        %2053 = vrot.lane.b32.xlu0 %v1890, 32
        %v2054 = vpop.permute.xlu0 %2053
        %2055 = vrot.lane.b32.xlu0 %v1891, 32
        %v2056 = vpop.permute.xlu0 %2055
        %2057 = vrot.lane.b32.xlu0 %v1917, 32
        %v2058 = vpop.permute.xlu0 %2057
        %2075 = vrot.lane.b32.xlu0 %v1919, 40
        %v2076 = vpop.permute.xlu0 %2075
        %2077 = vrot.lane.b32.xlu0 %v1920, 40
        %v2078 = vpop.permute.xlu0 %2077
        %2079 = vrot.lane.b32.xlu0 %v1921, 40
        %v2080 = vpop.permute.xlu0 %2079
        %2081 = vrot.lane.b32.xlu0 %v1922, 40
        %v2082 = vpop.permute.xlu0 %2081
        %2083 = vrot.lane.b32.xlu0 %v1923, 40
        %v2084 = vpop.permute.xlu0 %2083
        %2085 = vrot.lane.b32.xlu0 %v1924, 40
        %v2086 = vpop.permute.xlu0 %2085
        %2087 = vrot.lane.b32.xlu0 %v1925, 40
        %v2088 = vpop.permute.xlu0 %2087
        %2089 = vrot.lane.b32.xlu0 %v1926, 40
        %v2090 = vpop.permute.xlu0 %2089
        %2107 = vrot.lane.b32.xlu0 %v1928, 48
        %v2108 = vpop.permute.xlu0 %2107
        %2109 = vrot.lane.b32.xlu0 %v1929, 48
        %v2110 = vpop.permute.xlu0 %2109
        %2111 = vrot.lane.b32.xlu0 %v1930, 48
        %v2112 = vpop.permute.xlu0 %2111
        %2113 = vrot.lane.b32.xlu0 %v1931, 48
        %v2114 = vpop.permute.xlu0 %2113
        %2115 = vrot.lane.b32.xlu0 %v1932, 48
        %v2116 = vpop.permute.xlu0 %2115
        %2117 = vrot.lane.b32.xlu0 %v1933, 48
        %v2118 = vpop.permute.xlu0 %2117
        %2119 = vrot.lane.b32.xlu0 %v1934, 48
        %v2120 = vpop.permute.xlu0 %2119
        %2121 = vrot.lane.b32.xlu0 %v1935, 48
        %v2122 = vpop.permute.xlu0 %2121
        %2132 = vrot.lane.b32.xlu0 %v1886, 56
        %v2133 = vpop.permute.xlu0 %2132
        %2134 = vrot.lane.b32.xlu0 %v1887, 56
        %v2135 = vpop.permute.xlu0 %2134
        %2136 = vrot.lane.b32.xlu0 %v1888, 56
        %v2137 = vpop.permute.xlu0 %2136
        %2138 = vrot.lane.b32.xlu0 %v1889, 56
        %v2139 = vpop.permute.xlu0 %2138
        %2140 = vrot.lane.b32.xlu0 %v1890, 56
        %v2141 = vpop.permute.xlu0 %2140
        %2142 = vrot.lane.b32.xlu0 %v1891, 56
        %v2143 = vpop.permute.xlu0 %2142
        %2144 = vrot.lane.b32.xlu0 %v1917, 56
        %v2145 = vpop.permute.xlu0 %2144
        %2146 = vrot.lane.b32.xlu0 %v1936, 56
        %v2147 = vpop.permute.xlu0 %2146
        %2164 = vrot.lane.b32.xlu0 %v1938, 64
        %v2165 = vpop.permute.xlu0 %2164
        %2166 = vrot.lane.b32.xlu0 %v1939, 64
        %v2167 = vpop.permute.xlu0 %2166
        %2168 = vrot.lane.b32.xlu0 %v1940, 64
        %v2169 = vpop.permute.xlu0 %2168
        %2170 = vrot.lane.b32.xlu0 %v1941, 64
        %v2171 = vpop.permute.xlu0 %2170
        %2172 = vrot.lane.b32.xlu0 %v1942, 64
        %v2173 = vpop.permute.xlu0 %2172
        %2174 = vrot.lane.b32.xlu0 %v1943, 64
        %v2175 = vpop.permute.xlu0 %2174
        %2176 = vrot.lane.b32.xlu0 %v1944, 64
        %v2177 = vpop.permute.xlu0 %2176
        %2178 = vrot.lane.b32.xlu0 %v1945, 64
        %v2179 = vpop.permute.xlu0 %2178
        %v2188 = vsel %vm1565, %v1876, %v1955
        %v2189 = vsel %vm1565, %v1877, %v1957
        %v2190 = vsel %vm1565, %v1878, %v1959
        %v2191 = vsel %vm1565, %v1879, %v1961
        %v2192 = vsel %vm1565, %v1880, %v1963
        %v2193 = vsel %vm1565, %v1881, %v1965
        %v2194 = vsel %vm1565, %v1882, %v1967
        %v2195 = vsel %vm1565, %v1883, %v1969
        %v2196 = vsel %vm1256, %v2188, %v1987
        %v2197 = vsel %vm1256, %v2189, %v1989
        %v2198 = vsel %vm1256, %v2190, %v1991
        %v2199 = vsel %vm1256, %v2191, %v1993
        %v2200 = vsel %vm1256, %v2192, %v1995
        %v2201 = vsel %vm1256, %v2193, %v1997
        %v2202 = vsel %vm1256, %v2194, %v1999
        %v2203 = vsel %vm1256, %v2195, %v2001
        %vm2204 = vcmask 195584
        %v2205 = vsel %vm2204, %v2196, %v2019
        %v2206 = vsel %vm2204, %v2197, %v2021
        %v2207 = vsel %vm2204, %v2198, %v2023
        %v2208 = vsel %vm2204, %v2199, %v2025
        %v2209 = vsel %vm2204, %v2200, %v2027
        %v2210 = vsel %vm2204, %v2201, %v2029
        %v2211 = vsel %vm2204, %v2202, %v2031
        %v2212 = vsel %vm2204, %v2203, %v2033
        %v2213 = vsel %vm1126, %v2205, %v2044
        %v2214 = vsel %vm1126, %v2206, %v2046
        %v2215 = vsel %vm1126, %v2207, %v2048
        %v2216 = vsel %vm1126, %v2208, %v2050
        %v2217 = vsel %vm1126, %v2209, %v2052
        %v2218 = vsel %vm1126, %v2210, %v2054
        %v2219 = vsel %vm1126, %v2211, %v2056
        %v2220 = vsel %vm1126, %v2212, %v2058
        %vm2221 = vcmask 326656
        %v2222 = vsel %vm2221, %v2213, %v2076
        %v2223 = vsel %vm2221, %v2214, %v2078
        %v2224 = vsel %vm2221, %v2215, %v2080
        %v2225 = vsel %vm2221, %v2216, %v2082
        %v2226 = vsel %vm2221, %v2217, %v2084
        %v2227 = vsel %vm2221, %v2218, %v2086
        %v2228 = vsel %vm2221, %v2219, %v2088
        %v2229 = vsel %vm2221, %v2220, %v2090
        %vm2230 = vcmask 392192
        %v2231 = vsel %vm2230, %v2222, %v2108
        %v2232 = vsel %vm2230, %v2223, %v2110
        %v2233 = vsel %vm2230, %v2224, %v2112
        %v2234 = vsel %vm2230, %v2225, %v2114
        %v2235 = vsel %vm2230, %v2226, %v2116
        %v2236 = vsel %vm2230, %v2227, %v2118
        %v2237 = vsel %vm2230, %v2228, %v2120
        %v2238 = vsel %vm2230, %v2229, %v2122
        %vm2239 = vcmask 457728
        %v2240 = vsel %vm2239, %v2231, %v2133
        %v2241 = vsel %vm2239, %v2232, %v2135
        %v2242 = vsel %vm2239, %v2233, %v2137
        %v2243 = vsel %vm2239, %v2234, %v2139
        %v2244 = vsel %vm2239, %v2235, %v2141
        %v2245 = vsel %vm2239, %v2236, %v2143
        %v2246 = vsel %vm2239, %v2237, %v2145
        %v2247 = vsel %vm2239, %v2238, %v2147
        %v2248 = vsel %vm1372, %v2240, %v2165
        %v2249 = vsel %vm1372, %v2241, %v2167
        %v2250 = vsel %vm1372, %v2242, %v2169
        %v2251 = vsel %vm1372, %v2243, %v2171
        %v2252 = vsel %vm1372, %v2244, %v2173
        %v2253 = vsel %vm1372, %v2245, %v2175
        %v2254 = vsel %vm1372, %v2246, %v2177
        %v2255 = vsel %vm1372, %v2247, %v2179
        %v2256 = vld [vmem:[%s39] sm:$0xff]
        %v2257 = vld [vmem:[%s39 + $0x8] sm:$0xff]
        %v2258 = vld [vmem:[%s39 + $0x10] sm:$0xff]
        %v2259 = vld [vmem:[%s39 + $0x18] sm:$0xff]
        %v2260 = vld [vmem:[%s39 + $0x20] sm:$0xff]
        %v2261 = vld [vmem:[%s39 + $0x28] sm:$0xff]
        %v2262 = vld [vmem:[%s39 + $0x30] sm:$0xff]
        %v2263 = vld [vmem:[%s39 + $0x38] sm:$0xff]
        %v2264 = vld [vmem:[%s39 + $0x40] sm:$0xff]
        %v2265 = vpack.c.bf16 %v2249, %v2248
        %v2266 = vpack.c.bf16 %v2251, %v2250
        %v2267 = vpack.c.bf16 %v2253, %v2252
        %v2268 = vpack.c.bf16 %v2255, %v2254
        %v2269 = vpack.c.bf16 %v2257, %v2256
        %v2270 = vpack.c.bf16 %v2259, %v2258
        %v2271 = vpack.c.bf16 %v2261, %v2260
        %v2272 = vpack.c.bf16 %v2263, %v2262
        %v2273 = vpack.c.bf16 %v2264, %v2264
        %vm2274 = vcmask 588800
        %v2276 = vsel %vm2274, %v2265, 0
        %v2279 = vsel %vm2274, %v2266, 0
        %v2282 = vsel %vm2274, %v2267, 0
        %v2285 = vsel %vm2274, %v2268, 0
        %vm2287 = vcmask 1043456
        %v2289 = vsel %vm2287, %v2273, 0
        %2291 = vmatprep.subr.bf16.mxu0 0
        %2292 = vmatpush1.bf16.msra.mxu0 %v2269
        %2293 = vmatprep.subr.bf16.mxu0 0
        %2294 = vmatpush1.bf16.msra.mxu0 %v2270
        %2295 = vmatprep.subr.bf16.mxu0 0
        %2296 = vmatpush1.bf16.msra.mxu0 %v2271
        %2297 = vmatprep.subr.bf16.mxu0 0
        %2298 = vmatpush1.bf16.msra.mxu0 %v2272
        %2299 = vmatprep.subr.bf16.mxu0 0
        %2300 = vmatpush1.bf16.msra.mxu0 %v2289
        %2301 = vmatprep.subr.bf16.mxu0 0
        %2302 = vmatpush1.bf16.msra.mxu0 0
        %2303 = vmatprep.subr.bf16.mxu0 0
        %2304 = vmatpush1.bf16.msra.mxu0 0
        %2305 = vmatprep.subr.bf16.mxu0 0
        %2306 = vmatpush1.bf16.msra.mxu0 0
        %2307 = vmatprep.subr.bf16.mxu0 0
        %2308 = vmatpush1.bf16.msra.mxu0 0
        %2309 = vmatprep.subr.bf16.mxu0 0
        %2310 = vmatpush1.bf16.msra.mxu0 0
        %2311 = vmatprep.subr.bf16.mxu0 0
        %2312 = vmatpush1.bf16.msra.mxu0 0
        %2313 = vmatprep.subr.bf16.mxu0 0
        %2314 = vmatpush1.bf16.msra.mxu0 0
        %2315 = vmatprep.subr.bf16.mxu0 0
        %2316 = vmatpush1.bf16.msra.mxu0 0
        %2317 = vmatprep.subr.bf16.mxu0 0
        %2318 = vmatpush1.bf16.msra.mxu0 0
        %2319 = vmatprep.subr.bf16.mxu0 0
        %2320 = vmatpush1.bf16.msra.mxu0 0
        %2321 = vmatprep.subr.bf16.mxu0 0
        %2322 = vmatpush1.bf16.msra.mxu0 0
        %2323 = vmatprep.mubr.bf16.mxu0 0
        %2324 = vmatmul.mubr.bf16.gmra.mrb[0].mxu0 %v2276
        %v2325 = vpop.f32.mrb[0].mxu0
        %v2326 = vadd.f32 0.0, %v2325
        %v2327 = vpop.f32.mrb[0].mxu0
        %v2328 = vpop.f32.mrb[0].mxu0
        %v2329 = vadd.f32 0.0, %v2328
        %v2330 = vpop.f32.mrb[0].mxu0
        %2331 = vmatprep.mubr.bf16.mxu0 0
        %2332 = vmatmul.mubr.bf16.gmra.mrb[0].mxu0 %v2279
        %v2333 = vpop.f32.mrb[0].mxu0
        %v2334 = vadd.f32 0.0, %v2333
        %v2335 = vpop.f32.mrb[0].mxu0
        %v2336 = vpop.f32.mrb[0].mxu0
        %v2337 = vadd.f32 0.0, %v2336
        %v2338 = vpop.f32.mrb[0].mxu0
        %2339 = vmatprep.mubr.bf16.mxu0 0
        %2340 = vmatmul.mubr.bf16.gmra.mrb[0].mxu0 %v2282
        %v2341 = vpop.f32.mrb[0].mxu0
        %v2342 = vadd.f32 0.0, %v2341
        %v2343 = vpop.f32.mrb[0].mxu0
        %v2344 = vpop.f32.mrb[0].mxu0
        %v2345 = vadd.f32 0.0, %v2344
        %v2346 = vpop.f32.mrb[0].mxu0
        %2347 = vmatprep.mubr.bf16.mxu0 0
        %2348 = vmatmul.mubr.bf16.gmra.mrb[0].mxu0 %v2285
        %v2349 = vpop.f32.mrb[0].mxu0
        %v2350 = vadd.f32 0.0, %v2349
        %v2351 = vpop.f32.mrb[0].mxu0
        %v2352 = vpop.f32.mrb[0].mxu0
        %v2353 = vadd.f32 0.0, %v2352
        %v2354 = vpop.f32.mrb[0].mxu0
        %2355 = vdwg.mxu0
        %v2356 = vld [vmem:[%s41] sm:$0x1]
        %v2358 = vlaneseq
        %v2359 = vshrl.u32 %v2358, 7
        %v2360 = vsub.s32 0, %v2359
        %v2361 = vrot.slane %v2356, %v2360
        %v2363 = vmul.f32 %v2326, %v2361
        %v2364 = vmul.f32 %v2329, %v2361
        %v2365 = vmul.f32 %v2334, %v2361
        %v2366 = vmul.f32 %v2337, %v2361
        %v2367 = vmul.f32 %v2342, %v2361
        %v2368 = vmul.f32 %v2345, %v2361
        %v2369 = vmul.f32 %v2350, %v2361
        %v2370 = vmul.f32 %v2353, %v2361
        %v2371 = vld [vmem:[%s43] sm:$0x1]
        %v2373 = vlaneseq
        %v2374 = vshrl.u32 %v2373, 7
        %v2375 = vsub.s32 0, %v2374
        %v2376 = vrot.slane %v2371, %v2375
        %v2378 = vadd.f32 %v2363, %v2376
        %v2379 = vadd.f32 %v2364, %v2376
        %v2380 = vadd.f32 %v2365, %v2376
        %v2381 = vadd.f32 %v2366, %v2376
        %v2382 = vadd.f32 %v2367, %v2376
        %v2383 = vadd.f32 %v2368, %v2376
        %v2384 = vadd.f32 %v2369, %v2376
        %v2385 = vadd.f32 %v2370, %v2376
        %v2386 = vmax.f32 %v2378, 0.0
        %v2387 = vmax.f32 %v2379, 0.0
        %v2388 = vmax.f32 %v2380, 0.0
        %v2389 = vmax.f32 %v2381, 0.0
        %v2390 = vmax.f32 %v2382, 0.0
        %v2391 = vmax.f32 %v2383, 0.0
        %v2392 = vmax.f32 %v2384, 0.0
        %v2393 = vmax.f32 %v2385, 0.0
        %v2394 = vld [vmem:[%s45] sm:$0xff]
        %v2395 = vpack.c.bf16 %v2387, %v2386
        %v2396 = vpack.c.bf16 %v2389, %v2388
        %v2397 = vpack.c.bf16 %v2391, %v2390
        %v2398 = vpack.c.bf16 %v2393, %v2392
        %v2399 = vpack.c.bf16 %v2394, %v2394
        %v2400 = vld [vmem:[%s47] sm:$0x1]
        %v2402 = vlaneseq
        %v2403 = vshrl.u32 %v2402, 7
        %v2404 = vsub.s32 0, %v2403
        %v2405 = vrot.slane %v2400, %v2404
        %v2407 = vmul.f32 %v1304, %v2405
        %v2408 = vmul.f32 %v1307, %v2405
        %v2409 = vmul.f32 %v1312, %v2405
        %v2410 = vmul.f32 %v1315, %v2405
        %v2411 = vmul.f32 %v1320, %v2405
        %v2412 = vmul.f32 %v1323, %v2405
        %v2413 = vmul.f32 %v1328, %v2405
        %v2414 = vmul.f32 %v1331, %v2405
        %v2415 = vld [vmem:[%s49] sm:$0x1]
        %v2417 = vlaneseq
        %v2418 = vshrl.u32 %v2417, 7
        %v2419 = vsub.s32 0, %v2418
        %v2420 = vrot.slane %v2415, %v2419
        %v2422 = vadd.f32 %v2407, %v2420
        %v2423 = vadd.f32 %v2408, %v2420
        %v2424 = vadd.f32 %v2409, %v2420
        %v2425 = vadd.f32 %v2410, %v2420
        %v2426 = vadd.f32 %v2411, %v2420
        %v2427 = vadd.f32 %v2412, %v2420
        %v2428 = vadd.f32 %v2413, %v2420
        %v2429 = vadd.f32 %v2414, %v2420
        %v2430 = vmax.f32 %v2422, 0.0
        %v2431 = vmax.f32 %v2423, 0.0
        %v2432 = vmax.f32 %v2424, 0.0
        %v2433 = vmax.f32 %v2425, 0.0
        %v2434 = vmax.f32 %v2426, 0.0
        %v2435 = vmax.f32 %v2427, 0.0
        %v2436 = vmax.f32 %v2428, 0.0
        %v2437 = vmax.f32 %v2429, 0.0
        %v2438 = vld [vmem:[%s51] sm:$0xff]
        %v2439 = vld [vmem:[%s51 + $0x8] sm:$0xff]
        %v2440 = vld [vmem:[%s51 + $0x10] sm:$0xff]
        %v2441 = vld [vmem:[%s51 + $0x18] sm:$0xff]
        %v2442 = vld [vmem:[%s51 + $0x20] sm:$0xff]
        %v2443 = vld [vmem:[%s51 + $0x28] sm:$0xff]
        %v2444 = vld [vmem:[%s51 + $0x30] sm:$0xff]
        %v2445 = vld [vmem:[%s51 + $0x38] sm:$0xff]
        %v2446 = vpack.c.bf16 %v2431, %v2430
        %v2447 = vpack.c.bf16 %v2433, %v2432
        %v2448 = vpack.c.bf16 %v2435, %v2434
        %v2449 = vpack.c.bf16 %v2437, %v2436
        %v2450 = vpack.c.bf16 %v2439, %v2438
        %v2451 = vpack.c.bf16 %v2441, %v2440
        %v2452 = vpack.c.bf16 %v2443, %v2442
        %v2453 = vpack.c.bf16 %v2445, %v2444
        %v2455 = vsel %vm1372, %v2446, 0
        %v2458 = vsel %vm1372, %v2447, 0
        %v2461 = vsel %vm1372, %v2448, 0
        %v2464 = vsel %vm1372, %v2449, 0
        %2466 = vmatprep.subr.bf16.mxu0 0
        %2467 = vmatpush1.bf16.msra.mxu0 %v2450
        %2468 = vmatprep.subr.bf16.mxu0 0
        %2469 = vmatpush1.bf16.msra.mxu0 %v2451
        %2470 = vmatprep.subr.bf16.mxu0 0
        %2471 = vmatpush1.bf16.msra.mxu0 %v2452
        %2472 = vmatprep.subr.bf16.mxu0 0
        %2473 = vmatpush1.bf16.msra.mxu0 %v2453
        %2474 = vmatprep.subr.bf16.mxu0 0
        %2475 = vmatpush1.bf16.msra.mxu0 0
        %2476 = vmatprep.subr.bf16.mxu0 0
        %2477 = vmatpush1.bf16.msra.mxu0 0
        %2478 = vmatprep.subr.bf16.mxu0 0
        %2479 = vmatpush1.bf16.msra.mxu0 0
        %2480 = vmatprep.subr.bf16.mxu0 0
        %2481 = vmatpush1.bf16.msra.mxu0 0
        %2482 = vmatprep.subr.bf16.mxu0 0
        %2483 = vmatpush1.bf16.msra.mxu0 0
        %2484 = vmatprep.subr.bf16.mxu0 0
        %2485 = vmatpush1.bf16.msra.mxu0 0
        %2486 = vmatprep.subr.bf16.mxu0 0
        %2487 = vmatpush1.bf16.msra.mxu0 0
        %2488 = vmatprep.subr.bf16.mxu0 0
        %2489 = vmatpush1.bf16.msra.mxu0 0
        %2490 = vmatprep.subr.bf16.mxu0 0
        %2491 = vmatpush1.bf16.msra.mxu0 0
        %2492 = vmatprep.subr.bf16.mxu0 0
        %2493 = vmatpush1.bf16.msra.mxu0 0
        %2494 = vmatprep.subr.bf16.mxu0 0
        %2495 = vmatpush1.bf16.msra.mxu0 0
        %2496 = vmatprep.subr.bf16.mxu0 0
        %2497 = vmatpush1.bf16.msra.mxu0 0
        %2498 = vmatprep.mubr.bf16.mxu0 0
        %2499 = vmatmul.mubr.bf16.gmra.mrb[0].mxu0 %v2455
        %v2500 = vpop.f32.mrb[0].mxu0
        %v2501 = vadd.f32 0.0, %v2500
        %v2502 = vpop.f32.mrb[0].mxu0
        %v2503 = vpop.f32.mrb[0].mxu0
        %v2504 = vadd.f32 0.0, %v2503
        %v2505 = vpop.f32.mrb[0].mxu0
        %2506 = vmatprep.mubr.bf16.mxu0 0
        %2507 = vmatmul.mubr.bf16.gmra.mrb[0].mxu0 %v2458
        %v2508 = vpop.f32.mrb[0].mxu0
        %v2509 = vadd.f32 0.0, %v2508
        %v2510 = vpop.f32.mrb[0].mxu0
        %v2511 = vpop.f32.mrb[0].mxu0
        %v2512 = vadd.f32 0.0, %v2511
        %v2513 = vpop.f32.mrb[0].mxu0
        %2514 = vmatprep.mubr.bf16.mxu0 0
        %2515 = vmatmul.mubr.bf16.gmra.mrb[0].mxu0 %v2461
        %v2516 = vpop.f32.mrb[0].mxu0
        %v2517 = vadd.f32 0.0, %v2516
        %v2518 = vpop.f32.mrb[0].mxu0
        %v2519 = vpop.f32.mrb[0].mxu0
        %v2520 = vadd.f32 0.0, %v2519
        %v2521 = vpop.f32.mrb[0].mxu0
        %2522 = vmatprep.mubr.bf16.mxu0 0
        %2523 = vmatmul.mubr.bf16.gmra.mrb[0].mxu0 %v2464
        %v2524 = vpop.f32.mrb[0].mxu0
        %v2525 = vadd.f32 0.0, %v2524
        %v2526 = vpop.f32.mrb[0].mxu0
        %v2527 = vpop.f32.mrb[0].mxu0
        %v2528 = vadd.f32 0.0, %v2527
        %v2529 = vpop.f32.mrb[0].mxu0
        %2530 = vdwg.mxu0
        %v2532 = vsel %vm1565, %v2395, 0
        %v2535 = vsel %vm1565, %v2396, 0
        %v2538 = vsel %vm1565, %v2397, 0
        %v2541 = vsel %vm1565, %v2398, 0
        %v2544 = vsel %vm2287, %v2399, 0
        %2546 = vmatprep.subr.bf16.mxu0 0
        %2547 = vmatpush1.bf16.msra.mxu0 %v2544
        %2548 = vmatprep.subr.bf16.mxu0 0
        %2549 = vmatpush1.bf16.msra.mxu0 0
        %2550 = vmatprep.subr.bf16.mxu0 0
        %2551 = vmatpush1.bf16.msra.mxu0 0
        %2552 = vmatprep.subr.bf16.mxu0 0
        %2553 = vmatpush1.bf16.msra.mxu0 0
        %2554 = vmatprep.subr.bf16.mxu0 0
        %2555 = vmatpush1.bf16.msra.mxu0 0
        %2556 = vmatprep.subr.bf16.mxu0 0
        %2557 = vmatpush1.bf16.msra.mxu0 0
        %2558 = vmatprep.subr.bf16.mxu0 0
        %2559 = vmatpush1.bf16.msra.mxu0 0
        %2560 = vmatprep.subr.bf16.mxu0 0
        %2561 = vmatpush1.bf16.msra.mxu0 0
        %2562 = vmatprep.subr.bf16.mxu0 0
        %2563 = vmatpush1.bf16.msra.mxu0 0
        %2564 = vmatprep.subr.bf16.mxu0 0
        %2565 = vmatpush1.bf16.msra.mxu0 0
        %2566 = vmatprep.subr.bf16.mxu0 0
        %2567 = vmatpush1.bf16.msra.mxu0 0
        %2568 = vmatprep.subr.bf16.mxu0 0
        %2569 = vmatpush1.bf16.msra.mxu0 0
        %2570 = vmatprep.subr.bf16.mxu0 0
        %2571 = vmatpush1.bf16.msra.mxu0 0
        %2572 = vmatprep.subr.bf16.mxu0 0
        %2573 = vmatpush1.bf16.msra.mxu0 0
        %2574 = vmatprep.subr.bf16.mxu0 0
        %2575 = vmatpush1.bf16.msra.mxu0 0
        %2576 = vmatprep.subr.bf16.mxu0 0
        %2577 = vmatpush1.bf16.msra.mxu0 0
        %2578 = vmatprep.mubr.bf16.mxu0 0
        %2579 = vmatmul.mubr.bf16.gmra.mrb[0].mxu0 %v2532
        %v2580 = vpop.f32.mrb[0].mxu0
        %v2581 = vadd.f32 %v2501, %v2580
        %v2582 = vpop.f32.mrb[0].mxu0
        %v2583 = vpop.f32.mrb[0].mxu0
        %v2584 = vadd.f32 %v2504, %v2583
        %v2585 = vpop.f32.mrb[0].mxu0
        %2586 = vmatprep.mubr.bf16.mxu0 0
        %2587 = vmatmul.mubr.bf16.gmra.mrb[0].mxu0 %v2535
        %v2588 = vpop.f32.mrb[0].mxu0
        %v2589 = vadd.f32 %v2509, %v2588
        %v2590 = vpop.f32.mrb[0].mxu0
        %v2591 = vpop.f32.mrb[0].mxu0
        %v2592 = vadd.f32 %v2512, %v2591
        %v2593 = vpop.f32.mrb[0].mxu0
        %2594 = vmatprep.mubr.bf16.mxu0 0
        %2595 = vmatmul.mubr.bf16.gmra.mrb[0].mxu0 %v2538
        %v2596 = vpop.f32.mrb[0].mxu0
        %v2597 = vadd.f32 %v2517, %v2596
        %v2598 = vpop.f32.mrb[0].mxu0
        %v2599 = vpop.f32.mrb[0].mxu0
        %v2600 = vadd.f32 %v2520, %v2599
        %v2601 = vpop.f32.mrb[0].mxu0
        %2602 = vmatprep.mubr.bf16.mxu0 0
        %2603 = vmatmul.mubr.bf16.gmra.mrb[0].mxu0 %v2541
        %v2604 = vpop.f32.mrb[0].mxu0
        %v2605 = vadd.f32 %v2525, %v2604
        %v2606 = vpop.f32.mrb[0].mxu0
        %v2607 = vpop.f32.mrb[0].mxu0
        %v2608 = vadd.f32 %v2528, %v2607
        %v2609 = vpop.f32.mrb[0].mxu0
        %2610 = vdwg.mxu0
        %v2611 = vld [vmem:[%s53] sm:$0x1]
        %v2613 = vlaneseq
        %v2614 = vshrl.u32 %v2613, 7
        %v2615 = vsub.s32 0, %v2614
        %v2616 = vrot.slane %v2611, %v2615
        %v2618 = vmul.f32 %v2581, %v2616
        %v2619 = vmul.f32 %v2584, %v2616
        %v2620 = vmul.f32 %v2589, %v2616
        %v2621 = vmul.f32 %v2592, %v2616
        %v2622 = vmul.f32 %v2597, %v2616
        %v2623 = vmul.f32 %v2600, %v2616
        %v2624 = vmul.f32 %v2605, %v2616
        %v2625 = vmul.f32 %v2608, %v2616
        %v2626 = vld [vmem:[%s55] sm:$0x1]
        %v2628 = vlaneseq
        %v2629 = vshrl.u32 %v2628, 7
        %v2630 = vsub.s32 0, %v2629
        %v2631 = vrot.slane %v2626, %v2630
        %v2633 = vadd.f32 %v2618, %v2631
        %v2634 = vadd.f32 %v2619, %v2631
        %v2635 = vadd.f32 %v2620, %v2631
        %v2636 = vadd.f32 %v2621, %v2631
        %v2637 = vadd.f32 %v2622, %v2631
        %v2638 = vadd.f32 %v2623, %v2631
        %v2639 = vadd.f32 %v2624, %v2631
        %v2640 = vadd.f32 %v2625, %v2631
        %v2641 = vmax.f32 %v2633, 0.0
        %v2642 = vmax.f32 %v2634, 0.0
        %v2643 = vmax.f32 %v2635, 0.0
        %v2644 = vmax.f32 %v2636, 0.0
        %v2645 = vmax.f32 %v2637, 0.0
        %v2646 = vmax.f32 %v2638, 0.0
        %v2647 = vmax.f32 %v2639, 0.0
        %v2648 = vmax.f32 %v2640, 0.0
        %v2649 = vld [vmem:[%s57] sm:$0xff]
        %v2650 = vld [vmem:[%s57 + $0x8] sm:$0xff]
        %v2651 = vld [vmem:[%s57 + $0x10] sm:$0xff]
        %v2652 = vld [vmem:[%s57 + $0x18] sm:$0xff]
        %v2653 = vpack.c.bf16 %v2642, %v2641
        %v2654 = vpack.c.bf16 %v2644, %v2643
        %v2655 = vpack.c.bf16 %v2646, %v2645
        %v2656 = vpack.c.bf16 %v2648, %v2647
        %v2657 = vpack.c.bf16 %v2650, %v2649
        %v2658 = vpack.c.bf16 %v2652, %v2651
        %v2660 = vsel %vm1126, %v2653, 0
        %v2663 = vsel %vm1126, %v2654, 0
        %v2666 = vsel %vm1126, %v2655, 0
        %v2669 = vsel %vm1126, %v2656, 0
        %2671 = vmatprep.subr.bf16.mxu0 0
        %2672 = vmatpush1.bf16.msra.mxu0 %v2657
        %2673 = vmatprep.subr.bf16.mxu0 0
        %2674 = vmatpush1.bf16.msra.mxu0 %v2658
        %2675 = vmatprep.subr.bf16.mxu0 0
        %2676 = vmatpush1.bf16.msra.mxu0 0
        %2677 = vmatprep.subr.bf16.mxu0 0
        %2678 = vmatpush1.bf16.msra.mxu0 0
        %2679 = vmatprep.subr.bf16.mxu0 0
        %2680 = vmatpush1.bf16.msra.mxu0 0
        %2681 = vmatprep.subr.bf16.mxu0 0
        %2682 = vmatpush1.bf16.msra.mxu0 0
        %2683 = vmatprep.subr.bf16.mxu0 0
        %2684 = vmatpush1.bf16.msra.mxu0 0
        %2685 = vmatprep.subr.bf16.mxu0 0
        %2686 = vmatpush1.bf16.msra.mxu0 0
        %2687 = vmatprep.subr.bf16.mxu0 0
        %2688 = vmatpush1.bf16.msra.mxu0 0
        %2689 = vmatprep.subr.bf16.mxu0 0
        %2690 = vmatpush1.bf16.msra.mxu0 0
        %2691 = vmatprep.subr.bf16.mxu0 0
        %2692 = vmatpush1.bf16.msra.mxu0 0
        %2693 = vmatprep.subr.bf16.mxu0 0
        %2694 = vmatpush1.bf16.msra.mxu0 0
        %2695 = vmatprep.subr.bf16.mxu0 0
        %2696 = vmatpush1.bf16.msra.mxu0 0
        %2697 = vmatprep.subr.bf16.mxu0 0
        %2698 = vmatpush1.bf16.msra.mxu0 0
        %2699 = vmatprep.subr.bf16.mxu0 0
        %2700 = vmatpush1.bf16.msra.mxu0 0
        %2701 = vmatprep.subr.bf16.mxu0 0
        %2702 = vmatpush1.bf16.msra.mxu0 0
        %2703 = vmatprep.mubr.bf16.mxu0 0
        %2704 = vmatmul.mubr.bf16.gmra.mrb[0].mxu0 %v2660
        %v2705 = vpop.f32.mrb[0].mxu0
        %v2706 = vadd.f32 0.0, %v2705
        %v2707 = vpop.f32.mrb[0].mxu0
        %v2708 = vpop.f32.mrb[0].mxu0
        %v2709 = vadd.f32 0.0, %v2708
        %v2710 = vpop.f32.mrb[0].mxu0
        %2711 = vmatprep.mubr.bf16.mxu0 0
        %2712 = vmatmul.mubr.bf16.gmra.mrb[0].mxu0 %v2663
        %v2713 = vpop.f32.mrb[0].mxu0
        %v2714 = vadd.f32 0.0, %v2713
        %v2715 = vpop.f32.mrb[0].mxu0
        %v2716 = vpop.f32.mrb[0].mxu0
        %v2717 = vadd.f32 0.0, %v2716
        %v2718 = vpop.f32.mrb[0].mxu0
        %2719 = vmatprep.mubr.bf16.mxu0 0
        %2720 = vmatmul.mubr.bf16.gmra.mrb[0].mxu0 %v2666
        %v2721 = vpop.f32.mrb[0].mxu0
        %v2722 = vadd.f32 0.0, %v2721
        %v2723 = vpop.f32.mrb[0].mxu0
        %v2724 = vpop.f32.mrb[0].mxu0
        %v2725 = vadd.f32 0.0, %v2724
        %v2726 = vpop.f32.mrb[0].mxu0
        %2727 = vmatprep.mubr.bf16.mxu0 0
        %2728 = vmatmul.mubr.bf16.gmra.mrb[0].mxu0 %v2669
        %v2729 = vpop.f32.mrb[0].mxu0
        %v2730 = vadd.f32 0.0, %v2729
        %v2731 = vpop.f32.mrb[0].mxu0
        %v2732 = vpop.f32.mrb[0].mxu0
        %v2733 = vadd.f32 0.0, %v2732
        %v2734 = vpop.f32.mrb[0].mxu0
        %2735 = vdwg.mxu0
        %v2736 = vld [vmem:[%s59] sm:$0x1]
        %v2738 = vlaneseq
        %v2739 = vshrl.u32 %v2738, 7
        %v2740 = vsub.s32 0, %v2739
        %v2741 = vrot.slane %v2736, %v2740
        %v2743 = vmul.f32 %v2706, %v2741
        %v2744 = vmul.f32 %v2709, %v2741
        %v2745 = vmul.f32 %v2714, %v2741
        %v2746 = vmul.f32 %v2717, %v2741
        %v2747 = vmul.f32 %v2722, %v2741
        %v2748 = vmul.f32 %v2725, %v2741
        %v2749 = vmul.f32 %v2730, %v2741
        %v2750 = vmul.f32 %v2733, %v2741
        %v2751 = vld [vmem:[%s61] sm:$0x1]
        %v2753 = vlaneseq
        %v2754 = vshrl.u32 %v2753, 7
        %v2755 = vsub.s32 0, %v2754
        %v2756 = vrot.slane %v2751, %v2755
        %v2758 = vadd.f32 %v2743, %v2756
        %v2759 = vadd.f32 %v2744, %v2756
        %v2760 = vadd.f32 %v2745, %v2756
        %v2761 = vadd.f32 %v2746, %v2756
        %v2762 = vadd.f32 %v2747, %v2756
        %v2763 = vadd.f32 %v2748, %v2756
        %v2764 = vadd.f32 %v2749, %v2756
        %v2765 = vadd.f32 %v2750, %v2756
        %v2766 = vmax.f32 %v2758, 0.0
        %v2767 = vmax.f32 %v2759, 0.0
        %v2768 = vmax.f32 %v2760, 0.0
        %v2769 = vmax.f32 %v2761, 0.0
        %v2770 = vmax.f32 %v2762, 0.0
        %v2771 = vmax.f32 %v2763, 0.0
        %v2772 = vmax.f32 %v2764, 0.0
        %v2773 = vmax.f32 %v2765, 0.0
        %2774 = vst.msk [vmem:[#allocation2 + $0x10] sm:$0xff] %vm1565, %v2766
        %2775 = vst.msk [vmem:[#allocation2 + $0x18] sm:$0xff] %vm1565, %v2767
        %2776 = vst.msk [vmem:[#allocation2 + $0x20] sm:$0xff] %vm1565, %v2768
        %2777 = vst.msk [vmem:[#allocation2 + $0x28] sm:$0xff] %vm1565, %v2769
        %2778 = vst.msk [vmem:[#allocation2 + $0x30] sm:$0xff] %vm1565, %v2770
        %2779 = vst.msk [vmem:[#allocation2 + $0x38] sm:$0xff] %vm1565, %v2771
        %2780 = vst.msk [vmem:[#allocation2 + $0x40] sm:$0xff] %vm1565, %v2772
        %2781 = vst.msk [vmem:[#allocation2 + $0x48] sm:$0xff] %vm1565, %v2773
        %v2782 = vld [vmem:[#allocation2 + $0x7] sm:$0xff]
        %v2783 = vld [vmem:[#allocation2 + $0xf] sm:$0xff]
        %v2784 = vld [vmem:[#allocation2 + $0x17] sm:$0xff]
        %v2785 = vld [vmem:[#allocation2 + $0x1f] sm:$0xff]
        %v2786 = vld [vmem:[#allocation2 + $0x27] sm:$0xff]
        %v2787 = vld [vmem:[#allocation2 + $0x2f] sm:$0xff]
        %v2788 = vld [vmem:[#allocation2 + $0x37] sm:$0xff]
        %v2789 = vld [vmem:[#allocation2 + $0x3f] sm:$0xff]
        %v2790 = vsel %vm1675, %v2782, 0.0
        %v2791 = vsel %vm1676, %v2783, 0.0
        %v2792 = vsel %vm1677, %v2784, 0.0
        %v2793 = vsel %vm1678, %v2785, 0.0
        %v2794 = vsel %vm1679, %v2786, 0.0
        %v2795 = vsel %vm1680, %v2787, 0.0
        %v2796 = vsel %vm1681, %v2788, 0.0
        %v2797 = vsel %vm1682, %v2789, 0.0
        %v2798 = vld [vmem:[#allocation2 + $0x8] sm:$0xff]
        %v2799 = vld [vmem:[#allocation2 + $0x10] sm:$0xff]
        %v2800 = vld [vmem:[#allocation2 + $0x18] sm:$0xff]
        %v2801 = vld [vmem:[#allocation2 + $0x20] sm:$0xff]
        %v2802 = vld [vmem:[#allocation2 + $0x28] sm:$0xff]
        %v2803 = vld [vmem:[#allocation2 + $0x30] sm:$0xff]
        %v2804 = vld [vmem:[#allocation2 + $0x38] sm:$0xff]
        %v2805 = vld [vmem:[#allocation2 + $0x40] sm:$0xff]
        %v2806 = vld [vmem:[#allocation2 + $0x9] sm:$0xff]
        %v2807 = vld [vmem:[#allocation2 + $0x11] sm:$0xff]
        %v2808 = vld [vmem:[#allocation2 + $0x19] sm:$0xff]
        %v2809 = vld [vmem:[#allocation2 + $0x21] sm:$0xff]
        %v2810 = vld [vmem:[#allocation2 + $0x29] sm:$0xff]
        %v2811 = vld [vmem:[#allocation2 + $0x31] sm:$0xff]
        %v2812 = vld [vmem:[#allocation2 + $0x39] sm:$0xff]
        %v2813 = vld [vmem:[#allocation2 + $0x41] sm:$0xff]
        %v2814 = vsel %vm1683, %v2806, 0.0
        %v2815 = vsel %vm1684, %v2807, 0.0
        %v2816 = vsel %vm1685, %v2808, 0.0
        %v2817 = vsel %vm1686, %v2809, 0.0
        %v2818 = vsel %vm1687, %v2810, 0.0
        %v2819 = vsel %vm1688, %v2811, 0.0
        %v2820 = vsel %vm1689, %v2812, 0.0
        %v2821 = vsel %vm1690, %v2813, 0.0
        %v2822 = vld [vmem:[#allocation2 + $0x47] sm:$0xff]
        %v2823 = vsel %vm1675, %v2783, 0.0
        %v2824 = vsel %vm1676, %v2784, 0.0
        %v2825 = vsel %vm1677, %v2785, 0.0
        %v2826 = vsel %vm1678, %v2786, 0.0
        %v2827 = vsel %vm1679, %v2787, 0.0
        %v2828 = vsel %vm1680, %v2788, 0.0
        %v2829 = vsel %vm1681, %v2789, 0.0
        %v2830 = vsel %vm1682, %v2822, 0.0
        %v2831 = vld [vmem:[#allocation2 + $0x48] sm:$0xff]
        %v2832 = vld [vmem:[#allocation2 + $0x49] sm:$0xff]
        %v2833 = vsel %vm1683, %v2807, 0.0
        %v2834 = vsel %vm1684, %v2808, 0.0
        %v2835 = vsel %vm1685, %v2809, 0.0
        %v2836 = vsel %vm1686, %v2810, 0.0
        %v2837 = vsel %vm1687, %v2811, 0.0
        %v2838 = vsel %vm1688, %v2812, 0.0
        %v2839 = vsel %vm1689, %v2813, 0.0
        %v2840 = vsel %vm1690, %v2832, 0.0
        %v2841 = vld [vmem:[#allocation2 + $0x4f] sm:$0xff]
        %v2842 = vsel %vm1675, %v2784, 0.0
        %v2843 = vsel %vm1676, %v2785, 0.0
        %v2844 = vsel %vm1677, %v2786, 0.0
        %v2845 = vsel %vm1678, %v2787, 0.0
        %v2846 = vsel %vm1679, %v2788, 0.0
        %v2847 = vsel %vm1680, %v2789, 0.0
        %v2848 = vsel %vm1681, %v2822, 0.0
        %v2849 = vsel %vm1682, %v2841, 0.0
        %v2850 = vld [vmem:[#allocation2 + $0x50] sm:$0xff]
        %v2851 = vld [vmem:[#allocation2 + $0x51] sm:$0xff]
        %v2852 = vsel %vm1683, %v2808, 0.0
        %v2853 = vsel %vm1684, %v2809, 0.0
        %v2854 = vsel %vm1685, %v2810, 0.0
        %v2855 = vsel %vm1686, %v2811, 0.0
        %v2856 = vsel %vm1687, %v2812, 0.0
        %v2857 = vsel %vm1688, %v2813, 0.0
        %v2858 = vsel %vm1689, %v2832, 0.0
        %v2859 = vsel %vm1690, %v2851, 0.0
        %2868 = vrot.lane.b32.xlu0 %v2798, 8
        %v2869 = vpop.permute.xlu0 %2868
        %2870 = vrot.lane.b32.xlu0 %v2799, 8
        %v2871 = vpop.permute.xlu0 %2870
        %2872 = vrot.lane.b32.xlu0 %v2800, 8
        %v2873 = vpop.permute.xlu0 %2872
        %2874 = vrot.lane.b32.xlu0 %v2801, 8
        %v2875 = vpop.permute.xlu0 %2874
        %2876 = vrot.lane.b32.xlu0 %v2802, 8
        %v2877 = vpop.permute.xlu0 %2876
        %2878 = vrot.lane.b32.xlu0 %v2803, 8
        %v2879 = vpop.permute.xlu0 %2878
        %2880 = vrot.lane.b32.xlu0 %v2804, 8
        %v2881 = vpop.permute.xlu0 %2880
        %2882 = vrot.lane.b32.xlu0 %v2805, 8
        %v2883 = vpop.permute.xlu0 %2882
        %2900 = vrot.lane.b32.xlu0 %v2814, 16
        %v2901 = vpop.permute.xlu0 %2900
        %2902 = vrot.lane.b32.xlu0 %v2815, 16
        %v2903 = vpop.permute.xlu0 %2902
        %2904 = vrot.lane.b32.xlu0 %v2816, 16
        %v2905 = vpop.permute.xlu0 %2904
        %2906 = vrot.lane.b32.xlu0 %v2817, 16
        %v2907 = vpop.permute.xlu0 %2906
        %2908 = vrot.lane.b32.xlu0 %v2818, 16
        %v2909 = vpop.permute.xlu0 %2908
        %2910 = vrot.lane.b32.xlu0 %v2819, 16
        %v2911 = vpop.permute.xlu0 %2910
        %2912 = vrot.lane.b32.xlu0 %v2820, 16
        %v2913 = vpop.permute.xlu0 %2912
        %2914 = vrot.lane.b32.xlu0 %v2821, 16
        %v2915 = vpop.permute.xlu0 %2914
        %2932 = vrot.lane.b32.xlu0 %v2823, 24
        %v2933 = vpop.permute.xlu0 %2932
        %2934 = vrot.lane.b32.xlu0 %v2824, 24
        %v2935 = vpop.permute.xlu0 %2934
        %2936 = vrot.lane.b32.xlu0 %v2825, 24
        %v2937 = vpop.permute.xlu0 %2936
        %2938 = vrot.lane.b32.xlu0 %v2826, 24
        %v2939 = vpop.permute.xlu0 %2938
        %2940 = vrot.lane.b32.xlu0 %v2827, 24
        %v2941 = vpop.permute.xlu0 %2940
        %2942 = vrot.lane.b32.xlu0 %v2828, 24
        %v2943 = vpop.permute.xlu0 %2942
        %2944 = vrot.lane.b32.xlu0 %v2829, 24
        %v2945 = vpop.permute.xlu0 %2944
        %2946 = vrot.lane.b32.xlu0 %v2830, 24
        %v2947 = vpop.permute.xlu0 %2946
        %2957 = vrot.lane.b32.xlu0 %v2799, 32
        %v2958 = vpop.permute.xlu0 %2957
        %2959 = vrot.lane.b32.xlu0 %v2800, 32
        %v2960 = vpop.permute.xlu0 %2959
        %2961 = vrot.lane.b32.xlu0 %v2801, 32
        %v2962 = vpop.permute.xlu0 %2961
        %2963 = vrot.lane.b32.xlu0 %v2802, 32
        %v2964 = vpop.permute.xlu0 %2963
        %2965 = vrot.lane.b32.xlu0 %v2803, 32
        %v2966 = vpop.permute.xlu0 %2965
        %2967 = vrot.lane.b32.xlu0 %v2804, 32
        %v2968 = vpop.permute.xlu0 %2967
        %2969 = vrot.lane.b32.xlu0 %v2805, 32
        %v2970 = vpop.permute.xlu0 %2969
        %2971 = vrot.lane.b32.xlu0 %v2831, 32
        %v2972 = vpop.permute.xlu0 %2971
        %2989 = vrot.lane.b32.xlu0 %v2833, 40
        %v2990 = vpop.permute.xlu0 %2989
        %2991 = vrot.lane.b32.xlu0 %v2834, 40
        %v2992 = vpop.permute.xlu0 %2991
        %2993 = vrot.lane.b32.xlu0 %v2835, 40
        %v2994 = vpop.permute.xlu0 %2993
        %2995 = vrot.lane.b32.xlu0 %v2836, 40
        %v2996 = vpop.permute.xlu0 %2995
        %2997 = vrot.lane.b32.xlu0 %v2837, 40
        %v2998 = vpop.permute.xlu0 %2997
        %2999 = vrot.lane.b32.xlu0 %v2838, 40
        %v3000 = vpop.permute.xlu0 %2999
        %3001 = vrot.lane.b32.xlu0 %v2839, 40
        %v3002 = vpop.permute.xlu0 %3001
        %3003 = vrot.lane.b32.xlu0 %v2840, 40
        %v3004 = vpop.permute.xlu0 %3003
        %3021 = vrot.lane.b32.xlu0 %v2842, 48
        %v3022 = vpop.permute.xlu0 %3021
        %3023 = vrot.lane.b32.xlu0 %v2843, 48
        %v3024 = vpop.permute.xlu0 %3023
        %3025 = vrot.lane.b32.xlu0 %v2844, 48
        %v3026 = vpop.permute.xlu0 %3025
        %3027 = vrot.lane.b32.xlu0 %v2845, 48
        %v3028 = vpop.permute.xlu0 %3027
        %3029 = vrot.lane.b32.xlu0 %v2846, 48
        %v3030 = vpop.permute.xlu0 %3029
        %3031 = vrot.lane.b32.xlu0 %v2847, 48
        %v3032 = vpop.permute.xlu0 %3031
        %3033 = vrot.lane.b32.xlu0 %v2848, 48
        %v3034 = vpop.permute.xlu0 %3033
        %3035 = vrot.lane.b32.xlu0 %v2849, 48
        %v3036 = vpop.permute.xlu0 %3035
        %3046 = vrot.lane.b32.xlu0 %v2800, 56
        %v3047 = vpop.permute.xlu0 %3046
        %3048 = vrot.lane.b32.xlu0 %v2801, 56
        %v3049 = vpop.permute.xlu0 %3048
        %3050 = vrot.lane.b32.xlu0 %v2802, 56
        %v3051 = vpop.permute.xlu0 %3050
        %3052 = vrot.lane.b32.xlu0 %v2803, 56
        %v3053 = vpop.permute.xlu0 %3052
        %3054 = vrot.lane.b32.xlu0 %v2804, 56
        %v3055 = vpop.permute.xlu0 %3054
        %3056 = vrot.lane.b32.xlu0 %v2805, 56
        %v3057 = vpop.permute.xlu0 %3056
        %3058 = vrot.lane.b32.xlu0 %v2831, 56
        %v3059 = vpop.permute.xlu0 %3058
        %3060 = vrot.lane.b32.xlu0 %v2850, 56
        %v3061 = vpop.permute.xlu0 %3060
        %3078 = vrot.lane.b32.xlu0 %v2852, 64
        %v3079 = vpop.permute.xlu0 %3078
        %3080 = vrot.lane.b32.xlu0 %v2853, 64
        %v3081 = vpop.permute.xlu0 %3080
        %3082 = vrot.lane.b32.xlu0 %v2854, 64
        %v3083 = vpop.permute.xlu0 %3082
        %3084 = vrot.lane.b32.xlu0 %v2855, 64
        %v3085 = vpop.permute.xlu0 %3084
        %3086 = vrot.lane.b32.xlu0 %v2856, 64
        %v3087 = vpop.permute.xlu0 %3086
        %3088 = vrot.lane.b32.xlu0 %v2857, 64
        %v3089 = vpop.permute.xlu0 %3088
        %3090 = vrot.lane.b32.xlu0 %v2858, 64
        %v3091 = vpop.permute.xlu0 %3090
        %3092 = vrot.lane.b32.xlu0 %v2859, 64
        %v3093 = vpop.permute.xlu0 %3092
        %v3102 = vsel %vm1565, %v2790, %v2869
        %v3103 = vsel %vm1565, %v2791, %v2871
        %v3104 = vsel %vm1565, %v2792, %v2873
        %v3105 = vsel %vm1565, %v2793, %v2875
        %v3106 = vsel %vm1565, %v2794, %v2877
        %v3107 = vsel %vm1565, %v2795, %v2879
        %v3108 = vsel %vm1565, %v2796, %v2881
        %v3109 = vsel %vm1565, %v2797, %v2883
        %v3110 = vsel %vm1256, %v3102, %v2901
        %v3111 = vsel %vm1256, %v3103, %v2903
        %v3112 = vsel %vm1256, %v3104, %v2905
        %v3113 = vsel %vm1256, %v3105, %v2907
        %v3114 = vsel %vm1256, %v3106, %v2909
        %v3115 = vsel %vm1256, %v3107, %v2911
        %v3116 = vsel %vm1256, %v3108, %v2913
        %v3117 = vsel %vm1256, %v3109, %v2915
        %v3118 = vsel %vm2204, %v3110, %v2933
        %v3119 = vsel %vm2204, %v3111, %v2935
        %v3120 = vsel %vm2204, %v3112, %v2937
        %v3121 = vsel %vm2204, %v3113, %v2939
        %v3122 = vsel %vm2204, %v3114, %v2941
        %v3123 = vsel %vm2204, %v3115, %v2943
        %v3124 = vsel %vm2204, %v3116, %v2945
        %v3125 = vsel %vm2204, %v3117, %v2947
        %v3126 = vsel %vm1126, %v3118, %v2958
        %v3127 = vsel %vm1126, %v3119, %v2960
        %v3128 = vsel %vm1126, %v3120, %v2962
        %v3129 = vsel %vm1126, %v3121, %v2964
        %v3130 = vsel %vm1126, %v3122, %v2966
        %v3131 = vsel %vm1126, %v3123, %v2968
        %v3132 = vsel %vm1126, %v3124, %v2970
        %v3133 = vsel %vm1126, %v3125, %v2972
        %v3134 = vsel %vm2221, %v3126, %v2990
        %v3135 = vsel %vm2221, %v3127, %v2992
        %v3136 = vsel %vm2221, %v3128, %v2994
        %v3137 = vsel %vm2221, %v3129, %v2996
        %v3138 = vsel %vm2221, %v3130, %v2998
        %v3139 = vsel %vm2221, %v3131, %v3000
        %v3140 = vsel %vm2221, %v3132, %v3002
        %v3141 = vsel %vm2221, %v3133, %v3004
        %v3142 = vsel %vm2230, %v3134, %v3022
        %v3143 = vsel %vm2230, %v3135, %v3024
        %v3144 = vsel %vm2230, %v3136, %v3026
        %v3145 = vsel %vm2230, %v3137, %v3028
        %v3146 = vsel %vm2230, %v3138, %v3030
        %v3147 = vsel %vm2230, %v3139, %v3032
        %v3148 = vsel %vm2230, %v3140, %v3034
        %v3149 = vsel %vm2230, %v3141, %v3036
        %v3150 = vsel %vm2239, %v3142, %v3047
        %v3151 = vsel %vm2239, %v3143, %v3049
        %v3152 = vsel %vm2239, %v3144, %v3051
        %v3153 = vsel %vm2239, %v3145, %v3053
        %v3154 = vsel %vm2239, %v3146, %v3055
        %v3155 = vsel %vm2239, %v3147, %v3057
        %v3156 = vsel %vm2239, %v3148, %v3059
        %v3157 = vsel %vm2239, %v3149, %v3061
        %v3158 = vsel %vm1372, %v3150, %v3079
        %v3159 = vsel %vm1372, %v3151, %v3081
        %v3160 = vsel %vm1372, %v3152, %v3083
        %v3161 = vsel %vm1372, %v3153, %v3085
        %v3162 = vsel %vm1372, %v3154, %v3087
        %v3163 = vsel %vm1372, %v3155, %v3089
        %v3164 = vsel %vm1372, %v3156, %v3091
        %v3165 = vsel %vm1372, %v3157, %v3093
        %v3166 = vld [vmem:[%s63] sm:$0xff]
        %v3167 = vld [vmem:[%s63 + $0x8] sm:$0xff]
        %v3168 = vld [vmem:[%s63 + $0x10] sm:$0xff]
        %v3169 = vld [vmem:[%s63 + $0x18] sm:$0xff]
        %v3170 = vld [vmem:[%s63 + $0x20] sm:$0xff]
        %v3171 = vld [vmem:[%s63 + $0x28] sm:$0xff]
        %v3172 = vld [vmem:[%s63 + $0x30] sm:$0xff]
        %v3173 = vld [vmem:[%s63 + $0x38] sm:$0xff]
        %v3174 = vld [vmem:[%s63 + $0x40] sm:$0xff]
        %v3175 = vpack.c.bf16 %v3159, %v3158
        %v3176 = vpack.c.bf16 %v3161, %v3160
        %v3177 = vpack.c.bf16 %v3163, %v3162
        %v3178 = vpack.c.bf16 %v3165, %v3164
        %v3179 = vpack.c.bf16 %v3167, %v3166
        %v3180 = vpack.c.bf16 %v3169, %v3168
        %v3181 = vpack.c.bf16 %v3171, %v3170
        %v3182 = vpack.c.bf16 %v3173, %v3172
        %v3183 = vpack.c.bf16 %v3174, %v3174
        %v3185 = vsel %vm2274, %v3175, 0
        %v3188 = vsel %vm2274, %v3176, 0
        %v3191 = vsel %vm2274, %v3177, 0
        %v3194 = vsel %vm2274, %v3178, 0
        %v3197 = vsel %vm2287, %v3183, 0
        %3199 = vmatprep.subr.bf16.mxu0 0
        %3200 = vmatpush1.bf16.msra.mxu0 %v3179
        %3201 = vmatprep.subr.bf16.mxu0 0
        %3202 = vmatpush1.bf16.msra.mxu0 %v3180
        %3203 = vmatprep.subr.bf16.mxu0 0
        %3204 = vmatpush1.bf16.msra.mxu0 %v3181
        %3205 = vmatprep.subr.bf16.mxu0 0
        %3206 = vmatpush1.bf16.msra.mxu0 %v3182
        %3207 = vmatprep.subr.bf16.mxu0 0
        %3208 = vmatpush1.bf16.msra.mxu0 %v3197
        %3209 = vmatprep.subr.bf16.mxu0 0
        %3210 = vmatpush1.bf16.msra.mxu0 0
        %3211 = vmatprep.subr.bf16.mxu0 0
        %3212 = vmatpush1.bf16.msra.mxu0 0
        %3213 = vmatprep.subr.bf16.mxu0 0
        %3214 = vmatpush1.bf16.msra.mxu0 0
        %3215 = vmatprep.subr.bf16.mxu0 0
        %3216 = vmatpush1.bf16.msra.mxu0 0
        %3217 = vmatprep.subr.bf16.mxu0 0
        %3218 = vmatpush1.bf16.msra.mxu0 0
        %3219 = vmatprep.subr.bf16.mxu0 0
        %3220 = vmatpush1.bf16.msra.mxu0 0
        %3221 = vmatprep.subr.bf16.mxu0 0
        %3222 = vmatpush1.bf16.msra.mxu0 0
        %3223 = vmatprep.subr.bf16.mxu0 0
        %3224 = vmatpush1.bf16.msra.mxu0 0
        %3225 = vmatprep.subr.bf16.mxu0 0
        %3226 = vmatpush1.bf16.msra.mxu0 0
        %3227 = vmatprep.subr.bf16.mxu0 0
        %3228 = vmatpush1.bf16.msra.mxu0 0
        %3229 = vmatprep.subr.bf16.mxu0 0
        %3230 = vmatpush1.bf16.msra.mxu0 0
        %3231 = vmatprep.mubr.bf16.mxu0 0
        %3232 = vmatmul.mubr.bf16.gmra.mrb[0].mxu0 %v3185
        %v3233 = vpop.f32.mrb[0].mxu0
        %v3234 = vadd.f32 0.0, %v3233
        %v3235 = vpop.f32.mrb[0].mxu0
        %v3236 = vpop.f32.mrb[0].mxu0
        %v3237 = vadd.f32 0.0, %v3236
        %v3238 = vpop.f32.mrb[0].mxu0
        %3239 = vmatprep.mubr.bf16.mxu0 0
        %3240 = vmatmul.mubr.bf16.gmra.mrb[0].mxu0 %v3188
        %v3241 = vpop.f32.mrb[0].mxu0
        %v3242 = vadd.f32 0.0, %v3241
        %v3243 = vpop.f32.mrb[0].mxu0
        %v3244 = vpop.f32.mrb[0].mxu0
        %v3245 = vadd.f32 0.0, %v3244
        %v3246 = vpop.f32.mrb[0].mxu0
        %3247 = vmatprep.mubr.bf16.mxu0 0
        %3248 = vmatmul.mubr.bf16.gmra.mrb[0].mxu0 %v3191
        %v3249 = vpop.f32.mrb[0].mxu0
        %v3250 = vadd.f32 0.0, %v3249
        %v3251 = vpop.f32.mrb[0].mxu0
        %v3252 = vpop.f32.mrb[0].mxu0
        %v3253 = vadd.f32 0.0, %v3252
        %v3254 = vpop.f32.mrb[0].mxu0
        %3255 = vmatprep.mubr.bf16.mxu0 0
        %3256 = vmatmul.mubr.bf16.gmra.mrb[0].mxu0 %v3194
        %v3257 = vpop.f32.mrb[0].mxu0
        %v3258 = vadd.f32 0.0, %v3257
        %v3259 = vpop.f32.mrb[0].mxu0
        %v3260 = vpop.f32.mrb[0].mxu0
        %v3261 = vadd.f32 0.0, %v3260
        %v3262 = vpop.f32.mrb[0].mxu0
        %3263 = vdwg.mxu0
        %v3264 = vld [vmem:[%s65] sm:$0x1]
        %v3266 = vlaneseq
        %v3267 = vshrl.u32 %v3266, 7
        %v3268 = vsub.s32 0, %v3267
        %v3269 = vrot.slane %v3264, %v3268
        %v3271 = vmul.f32 %v3234, %v3269
        %v3272 = vmul.f32 %v3237, %v3269
        %v3273 = vmul.f32 %v3242, %v3269
        %v3274 = vmul.f32 %v3245, %v3269
        %v3275 = vmul.f32 %v3250, %v3269
        %v3276 = vmul.f32 %v3253, %v3269
        %v3277 = vmul.f32 %v3258, %v3269
        %v3278 = vmul.f32 %v3261, %v3269
        %v3279 = vld [vmem:[%s67] sm:$0x1]
        %v3281 = vlaneseq
        %v3282 = vshrl.u32 %v3281, 7
        %v3283 = vsub.s32 0, %v3282
        %v3284 = vrot.slane %v3279, %v3283
        %v3286 = vadd.f32 %v3271, %v3284
        %v3287 = vadd.f32 %v3272, %v3284
        %v3288 = vadd.f32 %v3273, %v3284
        %v3289 = vadd.f32 %v3274, %v3284
        %v3290 = vadd.f32 %v3275, %v3284
        %v3291 = vadd.f32 %v3276, %v3284
        %v3292 = vadd.f32 %v3277, %v3284
        %v3293 = vadd.f32 %v3278, %v3284
        %v3294 = vmax.f32 %v3286, 0.0
        %v3295 = vmax.f32 %v3287, 0.0
        %v3296 = vmax.f32 %v3288, 0.0
        %v3297 = vmax.f32 %v3289, 0.0
        %v3298 = vmax.f32 %v3290, 0.0
        %v3299 = vmax.f32 %v3291, 0.0
        %v3300 = vmax.f32 %v3292, 0.0
        %v3301 = vmax.f32 %v3293, 0.0
        %v3302 = vld [vmem:[%s69] sm:$0xff]
        %v3303 = vpack.c.bf16 %v3295, %v3294
        %v3304 = vpack.c.bf16 %v3297, %v3296
        %v3305 = vpack.c.bf16 %v3299, %v3298
        %v3306 = vpack.c.bf16 %v3301, %v3300
        %v3307 = vpack.c.bf16 %v3302, %v3302
        %v3309 = vsel %vm1565, %v3303, 0
        %v3312 = vsel %vm1565, %v3304, 0
        %v3315 = vsel %vm1565, %v3305, 0
        %v3318 = vsel %vm1565, %v3306, 0
        %v3321 = vsel %vm2287, %v3307, 0
        %3323 = vmatprep.subr.bf16.mxu0 0
        %3324 = vmatpush1.bf16.msra.mxu0 %v3321
        %3325 = vmatprep.subr.bf16.mxu0 0
        %3326 = vmatpush1.bf16.msra.mxu0 0
        %3327 = vmatprep.subr.bf16.mxu0 0
        %3328 = vmatpush1.bf16.msra.mxu0 0
        %3329 = vmatprep.subr.bf16.mxu0 0
        %3330 = vmatpush1.bf16.msra.mxu0 0
        %3331 = vmatprep.subr.bf16.mxu0 0
        %3332 = vmatpush1.bf16.msra.mxu0 0
        %3333 = vmatprep.subr.bf16.mxu0 0
        %3334 = vmatpush1.bf16.msra.mxu0 0
        %3335 = vmatprep.subr.bf16.mxu0 0
        %3336 = vmatpush1.bf16.msra.mxu0 0
        %3337 = vmatprep.subr.bf16.mxu0 0
        %3338 = vmatpush1.bf16.msra.mxu0 0
        %3339 = vmatprep.subr.bf16.mxu0 0
        %3340 = vmatpush1.bf16.msra.mxu0 0
        %3341 = vmatprep.subr.bf16.mxu0 0
        %3342 = vmatpush1.bf16.msra.mxu0 0
        %3343 = vmatprep.subr.bf16.mxu0 0
        %3344 = vmatpush1.bf16.msra.mxu0 0
        %3345 = vmatprep.subr.bf16.mxu0 0
        %3346 = vmatpush1.bf16.msra.mxu0 0
        %3347 = vmatprep.subr.bf16.mxu0 0
        %3348 = vmatpush1.bf16.msra.mxu0 0
        %3349 = vmatprep.subr.bf16.mxu0 0
        %3350 = vmatpush1.bf16.msra.mxu0 0
        %3351 = vmatprep.subr.bf16.mxu0 0
        %3352 = vmatpush1.bf16.msra.mxu0 0
        %3353 = vmatprep.subr.bf16.mxu0 0
        %3354 = vmatpush1.bf16.msra.mxu0 0
        %3355 = vmatprep.mubr.bf16.mxu0 0
        %3356 = vmatmul.mubr.bf16.gmra.mrb[0].mxu0 %v3309
        %v3357 = vpop.f32.mrb[0].mxu0
        %v3358 = vadd.f32 %v2581, %v3357
        %v3359 = vpop.f32.mrb[0].mxu0
        %v3360 = vpop.f32.mrb[0].mxu0
        %v3361 = vadd.f32 %v2584, %v3360
        %v3362 = vpop.f32.mrb[0].mxu0
        %3363 = vmatprep.mubr.bf16.mxu0 0
        %3364 = vmatmul.mubr.bf16.gmra.mrb[0].mxu0 %v3312
        %v3365 = vpop.f32.mrb[0].mxu0
        %v3366 = vadd.f32 %v2589, %v3365
        %v3367 = vpop.f32.mrb[0].mxu0
        %v3368 = vpop.f32.mrb[0].mxu0
        %v3369 = vadd.f32 %v2592, %v3368
        %v3370 = vpop.f32.mrb[0].mxu0
        %3371 = vmatprep.mubr.bf16.mxu0 0
        %3372 = vmatmul.mubr.bf16.gmra.mrb[0].mxu0 %v3315
        %v3373 = vpop.f32.mrb[0].mxu0
        %v3374 = vadd.f32 %v2597, %v3373
        %v3375 = vpop.f32.mrb[0].mxu0
        %v3376 = vpop.f32.mrb[0].mxu0
        %v3377 = vadd.f32 %v2600, %v3376
        %v3378 = vpop.f32.mrb[0].mxu0
        %3379 = vmatprep.mubr.bf16.mxu0 0
        %3380 = vmatmul.mubr.bf16.gmra.mrb[0].mxu0 %v3318
        %v3381 = vpop.f32.mrb[0].mxu0
        %v3382 = vadd.f32 %v2605, %v3381
        %v3383 = vpop.f32.mrb[0].mxu0
        %v3384 = vpop.f32.mrb[0].mxu0
        %v3385 = vadd.f32 %v2608, %v3384
        %v3386 = vpop.f32.mrb[0].mxu0
        %3387 = vdwg.mxu0
        %v3388 = vlaneseq
        %v3389 = vshrl.u32 %v3388, 7
        %v3390 = vsub.s32 0, %v3389
        %v3391 = vrot.slane %v1564, %v3390
        %v3392 = vmul.f32 %v3358, %v3391
        %v3393 = vmul.f32 %v3361, %v3391
        %v3394 = vmul.f32 %v3366, %v3391
        %v3395 = vmul.f32 %v3369, %v3391
        %v3396 = vmul.f32 %v3374, %v3391
        %v3397 = vmul.f32 %v3377, %v3391
        %v3398 = vmul.f32 %v3382, %v3391
        %v3399 = vmul.f32 %v3385, %v3391
        %v3400 = vadd.f32 %v3392, %v3391
        %v3401 = vadd.f32 %v3393, %v3391
        %v3402 = vadd.f32 %v3394, %v3391
        %v3403 = vadd.f32 %v3395, %v3391
        %v3404 = vadd.f32 %v3396, %v3391
        %v3405 = vadd.f32 %v3397, %v3391
        %v3406 = vadd.f32 %v3398, %v3391
        %v3407 = vadd.f32 %v3399, %v3391
        %3408 = vst.msk [vmem:[%s1063] sm:$0xff] %vm1126, %v3400
        %3409 = vst.msk [vmem:[%s1063 + $0x8] sm:$0xff] %vm1126, %v3401
        %3410 = vst.msk [vmem:[%s1063 + $0x10] sm:$0xff] %vm1126, %v3402
        %3411 = vst.msk [vmem:[%s1063 + $0x18] sm:$0xff] %vm1126, %v3403
        %3412 = vst.msk [vmem:[%s1063 + $0x20] sm:$0xff] %vm1126, %v3404
        %3413 = vst.msk [vmem:[%s1063 + $0x28] sm:$0xff] %vm1126, %v3405
        %3414 = vst.msk [vmem:[%s1063 + $0x30] sm:$0xff] %vm1126, %v3406
        %3415 = vst.msk [vmem:[%s1063 + $0x38] sm:$0xff] %vm1126, %v3407
        %s3416 = sand.u32 %s833, 1
        %s3417 = scalar_lea.sflag [#allocation4], %s3416
        %s3418 = sand.u32 %s833, 1
        %s3419 = smul.addr %s3418, 64
        %s3420 = scalar_lea.vmem [#allocation3], %s3419
        // Predicated region
        $region161: #{bridge_forward.1} parent=159 // pred_check
          %p3421 = pneg %p843
        $region162: #{bridge_forward.1} parent=159 // pred_check_branch
          %3423 = sbr.rel (%p3421) target = $region164
        $region163: #{bridge_forward.1} parent=159 // pred_region
          %s3425 = ssub.s32 1024, 1024
          %3426 = vsyncadd %s3417, %s3425
          %s3427 = smul.addr %s85, 8
          %s3428 = smul.addr %s3427, 128
          %s3429 = scalar_lea.hbm %s71, %s3428
          %s3430 = sshll.u32 %s3420, 4
          %s3431 = int_to_ptr.vmem [resolvable:$true] %s3430
          %3436 = dma.vmem_to_hbm [thread:$0]  %s3431, 1024, %s3429, %s3417, 128, 128, 8
        $region164: #{bridge_forward.1} parent=159 // pred_fallthru
          _
      $region160: #{bridge_forward.1} parent=5 // pred_fallthru
        _
      %p3437 = scmp.le.s32.totalorder 2, %s80
      // Predicated region
      $region165: #{bridge_forward.1} parent=5 // pred_check
        %p3438 = pneg %p3437
      $region166: #{bridge_forward.1} parent=5 // pred_check_branch
        %3440 = sbr.rel (%p3438) target = $region168
      $region167: #{bridge_forward.1} parent=5 // pred_region
        %s3441 = ssub.s32 %s80, 2
        // Predicated region
        $region169: #{bridge_forward.1} parent=167 // pred_check
          %p3442 = pneg %p849
        $region170: #{bridge_forward.1} parent=167 // pred_check_branch
          %3444 = sbr.rel (%p3442) target = $region172
        $region171: #{bridge_forward.1} parent=167 // pred_region
          %s3445 = sand.u32 %s834, 1
          %s3446 = scalar_lea.sflag [#allocation4], %s3445
          %s3447 = sand.u32 %s834, 1
          %s3448 = smul.addr %s3447, 64
          %s3449 = scalar_lea.vmem [#allocation3], %s3448
          %3450 = dma.done %s3446, 1024
        $region172: #{bridge_forward.1} parent=167 // pred_fallthru
          _
      $region168: #{bridge_forward.1} parent=5 // pred_fallthru
        _
    $region6: #{bridge_forward.1} parent=1 // loop_footer
      %s84 = sadd.s32 1, %s80
    $region7: #{bridge_forward.1} parent=1 // loop_footer_branch
      %79 = sbr.rel target = $region3
    $region8: #{bridge_forward.1} parent=1 // loop_exit
      _
    %3451 = vsyncpa [#allocation4], 1
    %s3452 = scalar_lea.sflag [#allocation4], 1
    %3453 = vsyncpa %s3452, 1

</llo_original>
